<compile_context>
chip_gen: v7x
topology: tpu7x:2x2x1
jax: 0.10.0
libtpu: 0.0.40
codegen_flags: <defaults>
</compile_context>

<pallas_src>
import functools

import jax
import jax.numpy as jnp
from jax.experimental import pallas as pl
from jax.experimental.pallas import tpu as pltpu

BN_EPS = 1e-5


def _se_conv_bn_conv_kernel(x_ref, g_ref, w1_ref, gamma_ref, beta_ref, w2_ref,
                            o_ref, yhat_ref, *, fold_gate):
    # x_ref:     (C_in,  P)     activations, channel-major (P = N*H*W)
    # g_ref:     (1,     C_in)  pre-sigmoid per-channel gate (used iff fold_gate)
    # w1_ref:    (C_mid, C_in)  conv1 weight, native (Cout, Cin) orientation
    # gamma_ref: (C_mid, 1)     BN scale (column)
    # beta_ref:  (C_mid, 1)     BN shift (column)
    # w2_ref:    (TN,    C_mid) conv2 weight tile (grid over C_out)
    # o_ref:     (TN,    P)     output tile, channel-major
    # yhat_ref:  (C_mid, P)     bf16 scratch: affine-BN-normalized conv1 output

    # ---- Phase 1: once per core (first step of the inner "arbitrary" axis) ----
    @pl.when(pl.program_id(1) == 0)
    def _():
        w1 = w1_ref[...]
        if fold_gate:
            # gate is per-input-channel and constant over all pixels of the
            # (single) sample: x * sigmoid(g) @ W1 == x @ (W1 * sigmoid(g)).
            w1 = w1 * jax.nn.sigmoid(g_ref[...])
        y = jnp.dot(w1.astype(jnp.bfloat16),
                    x_ref[...].astype(jnp.bfloat16),
                    preferred_element_type=jnp.float32)           # (C_mid, P) f32
        # BatchNorm2d training-mode statistics over all N*H*W positions
        # (biased variance), computed in f32.  gamma/beta are folded here so
        # Phase 2 is a pure matmul.
        mean = jnp.mean(y, axis=1, keepdims=True)                  # (C_mid, 1)
        diff = y - mean
        var = jnp.mean(diff * diff, axis=1, keepdims=True)
        scale = gamma_ref[...] * jax.lax.rsqrt(var + BN_EPS)       # (C_mid, 1)
        yhat_ref[...] = (diff * scale + beta_ref[...]).astype(jnp.bfloat16)

    # ---- Phase 2: every grid step, one C_out tile of the second 1x1 conv ----
    o_ref[...] = jnp.dot(w2_ref[...].astype(jnp.bfloat16), yhat_ref[...],
                         preferred_element_type=jnp.float32)


def _tensorcores_per_device():
    """Best-effort TensorCore count behind one JAX device (megacore sharding)."""
    try:
        info = pltpu.get_tpu_info()
        for attr in ("num_cores", "num_tensorcores", "tensorcore_count",
                     "cores_per_chip"):
            v = getattr(info, attr, None)
            if isinstance(v, int) and v >= 1:
                return v
    except Exception:
        pass
    try:
        kind = jax.devices()[0].device_kind.lower()
    except Exception:
        return 1
    # v7x (and v4/v5p megacore) expose 2 TensorCores per device; v5e/v6e have 1.
    if "v7" in kind:
        return 2
    if ("v4" in kind or "v5p" in kind) and "lite" not in kind:
        return 2
    return 1


def _largest_divisor_mult8(n, cap=768):
    """Largest multiple of 8 that divides n and is <= cap (fallback: n)."""
    best = None
    for cand in range(8, min(n, cap) + 1, 8):
        if n % cand == 0:
            best = cand
    return best if best is not None else n


def forward(x463, x467, w_conv1, bn_gamma, bn_beta, w_conv2):
    """x463: (N, C_in, H, W), x467: (N, C_in, 1, 1) -> NCHW (N, C_out, H, W)."""
    N, C_in, H, W = x463.shape
    C_mid = w_conv1.shape[0]
    C_out = w_conv2.shape[0]
    P = N * H * W

    if N == 1:
        # Metadata-only reshapes: NCHW with N==1 is already channel-major.
        x_cm = x463.reshape(C_in, P)
        g_row = x467.reshape(1, C_in)            # pre-sigmoid gate
        fold_gate = True
    else:
        # General-N path: the gate differs per sample, so apply it to the
        # activations (in XLA) before flattening to channel-major.
        xg = x463 * jax.nn.sigmoid(x467)
        x_cm = jnp.transpose(xg, (1, 0, 2, 3)).reshape(C_in, P)
        g_row = jnp.zeros((1, C_in), dtype=x463.dtype)             # unused
        fold_gate = False

    w1 = w_conv1.reshape(C_mid, C_in)            # native (Cout, Cin) layout
    w2 = w_conv2.reshape(C_out, C_mid)
    gamma = bn_gamma.reshape(C_mid, 1)           # columns: broadcast over pixels
    beta = bn_beta.reshape(C_mid, 1)

    # Tile the second conv over C_out with an EXACT divisor (no padded edge
    # tile).  Shard across the two TensorCores only when they exist; on 1-TC
    # chips (v5e/v6e) halves=1 so Phase 1 runs exactly once.
    n_cores = _tensorcores_per_device()
    halves = 2 if (n_cores >= 2 and C_out % 2 == 0) else 1
    per_half = C_out // halves
    TN = _largest_divisor_mult8(per_half, cap=768)   # 2064 -> 688; 1032 -> 344
    tiles_per_half = per_half // TN

    kernel = functools.partial(_se_conv_bn_conv_kernel, fold_gate=fold_gate)

    out_cm = pl.pallas_call(
        kernel,
        out_shape=jax.ShapeDtypeStruct((C_out, P), jnp.float32),
        grid_spec=pltpu.PrefetchScalarGridSpec(
            num_scalar_prefetch=0,
            grid=(halves, tiles_per_half),
            in_specs=[
                pl.BlockSpec((C_in, P), lambda i, j: (0, 0)),        # x (resident)
                pl.BlockSpec((1, C_in), lambda i, j: (0, 0)),        # gate
                pl.BlockSpec((C_mid, C_in), lambda i, j: (0, 0)),    # W1 (resident)
                pl.BlockSpec((C_mid, 1), lambda i, j: (0, 0)),       # gamma col
                pl.BlockSpec((C_mid, 1), lambda i, j: (0, 0)),       # beta col
                pl.BlockSpec((TN, C_mid),
                             lambda i, j: (i * tiles_per_half + j, 0)),  # W2 tile
            ],
            out_specs=pl.BlockSpec((TN, P),
                                   lambda i, j: (i * tiles_per_half + j, 0)),
            scratch_shapes=[pltpu.VMEM((C_mid, P), jnp.bfloat16)],
        ),
        compiler_params=pltpu.CompilerParams(
            dimension_semantics=("parallel", "arbitrary")),
    )(x_cm, g_row, w1, gamma, beta, w2)

    # (C_out, N*H*W) -> NCHW.  For N == 1 this is a pure reshape (free).
    return jnp.transpose(out_cm.reshape(C_out, N, H, W), (1, 0, 2, 3))


def reference(x463, x467, w_conv1, bn_gamma, bn_beta, w_conv2):
    """Pure-JAX f32 reference mirroring the PyTorch module (training-mode BN)."""
    # TODO(synk): BatchNorm running-stat updates (track_running_stats) are a
    # training side effect and are not reproduced; only the forward output is.
    gate = jax.nn.sigmoid(x467)
    xg = x463 * gate
    y = jnp.einsum("nchw,oc->nohw", xg, w_conv1[:, :, 0, 0],
                   precision=jax.lax.Precision.HIGHEST)
    mean = jnp.mean(y, axis=(0, 2, 3), keepdims=True)
    var = jnp.mean((y - mean) ** 2, axis=(0, 2, 3), keepdims=True)
    yn = (y - mean) / jnp.sqrt(var + BN_EPS)
    yn = yn * bn_gamma[None, :, None, None] + bn_beta[None, :, None, None]
    return jnp.einsum("nchw,oc->nohw", yn, w_conv2[:, :, 0, 0],
                      precision=jax.lax.Precision.HIGHEST)


if __name__ == "__main__":
    # Shapes fixed by the module's conv channel counts.
    N, C_IN, H, W = 1, 1200, 7, 7
    C_MID, C_OUT = 344, 2064

    key = jax.random.PRNGKey(0)
    k1, k2, k3, k4, k5, k6 = jax.random.split(key, 6)

    x463 = jax.random.normal(k1, (N, C_IN, H, W), dtype=jnp.float32)
    x467 = jax.random.normal(k2, (N, C_IN, 1, 1), dtype=jnp.float32)

    # Deterministic synthetic parameters (no checkpoint load).
    w_conv1 = jax.random.normal(k3, (C_MID, C_IN, 1, 1), dtype=jnp.float32) * 0.02
    w_conv2 = jax.random.normal(k4, (C_OUT, C_MID, 1, 1), dtype=jnp.float32) * 0.02
    bn_gamma = jnp.ones((C_MID,), dtype=jnp.float32) + 0.1 * jax.random.normal(k5, (C_MID,))
    bn_beta = 0.1 * jax.random.normal(k6, (C_MID,), dtype=jnp.float32)

    out = jax.jit(forward)(x463, x467, w_conv1, bn_gamma, bn_beta, w_conv2)
    out = jax.block_until_ready(out)
    assert out.shape == (N, C_OUT, H, W), out.shape

    ref = reference(x463, x467, w_conv1, bn_gamma, bn_beta, w_conv2)
    # bf16 MXU operands (f32 accumulation) + bf16 yhat scratch -> loose tolerance.
    max_err = float(jnp.max(jnp.abs(out - ref)))
    assert jnp.allclose(out, ref, atol=2e-2, rtol=2e-2), max_err

    print("KERNEL_OK")
</pallas_src>

<mosaic_0001>
module attributes {stable_mosaic.version = 11 : i64} {
  func.func @_se_conv_bn_conv_kernel(%arg0: i32, %arg1: i32, %arg2: memref<1200x49xf32, #tpu.memory_space<vmem>>, %arg3: memref<1x1200xf32, #tpu.memory_space<vmem>>, %arg4: memref<344x1200xf32, #tpu.memory_space<vmem>>, %arg5: memref<344x1xf32, #tpu.memory_space<vmem>>, %arg6: memref<344x1xf32, #tpu.memory_space<vmem>>, %arg7: memref<688x344xf32, #tpu.memory_space<vmem>>, %arg8: memref<688x49xf32, #tpu.memory_space<vmem>>, %arg9: memref<344x49xbf16, #tpu.memory_space<vmem>>) attributes {dimension_semantics = [#tpu.dimension_semantics<parallel>, #tpu.dimension_semantics<arbitrary>], iteration_bounds = array<i64: 1, 3>, scalar_prefetch = 0 : i64, scratch_operands = 1 : i64, tpu.core_type = #tpu.core_type<tc>, window_params = [{pipeline_mode = #tpu.pipeline_mode<synchronous>, transform_indices = @transform_0, window_bounds = array<i64: 1200, 49>}, {pipeline_mode = #tpu.pipeline_mode<synchronous>, transform_indices = @transform_1, window_bounds = array<i64: 1, 1200>}, {pipeline_mode = #tpu.pipeline_mode<synchronous>, transform_indices = @transform_2, window_bounds = array<i64: 344, 1200>}, {pipeline_mode = #tpu.pipeline_mode<synchronous>, transform_indices = @transform_3, window_bounds = array<i64: 344, 1>}, {pipeline_mode = #tpu.pipeline_mode<synchronous>, transform_indices = @transform_4, window_bounds = array<i64: 344, 1>}, {transform_indices = @transform_5, window_bounds = array<i64: 688, 344>}, {transform_indices = @transform_6, window_bounds = array<i64: 688, 49>}]} {
    %c0_i32 = arith.constant 0 : i32
    %0 = arith.cmpi eq, %arg1, %c0_i32 : i32
    %1 = arith.extui %0 : i1 to i32
    %c0_i32_0 = arith.constant 0 : i32
    %2 = arith.cmpi ne, %1, %c0_i32_0 : i32
    scf.if %2 {
      %c0_6 = arith.constant 0 : index
      %c0_7 = arith.constant 0 : index
      %8 = vector.load %arg4[%c0_6, %c0_7] : memref<344x1200xf32, #tpu.memory_space<vmem>>, vector<344x1200xf32>
      %c0_8 = arith.constant 0 : index
      %c0_9 = arith.constant 0 : index
      %9 = vector.load %arg3[%c0_8, %c0_9] : memref<1x1200xf32, #tpu.memory_space<vmem>>, vector<1x1200xf32>
      %10 = arith.negf %9 : vector<1x1200xf32>
      %11 = math.exp %10 : vector<1x1200xf32>
      %cst_10 = arith.constant 1.000000e+00 : f32
      %12 = vector.broadcast %cst_10 : f32 to vector<1x1200xf32>
      %13 = arith.addf %12, %11 : vector<1x1200xf32>
      %14 = arith.divf %12, %13 : vector<1x1200xf32>
      %15 = vector.broadcast %14 : vector<1x1200xf32> to vector<344x1200xf32>
      %16 = arith.mulf %8, %15 : vector<344x1200xf32>
      %17 = arith.truncf %16 : vector<344x1200xf32> to vector<344x1200xbf16>
      %c0_11 = arith.constant 0 : index
      %c0_12 = arith.constant 0 : index
      %18 = vector.load %arg2[%c0_11, %c0_12] : memref<1200x49xf32, #tpu.memory_space<vmem>>, vector<1200x49xf32>
      %19 = arith.truncf %18 : vector<1200x49xf32> to vector<1200x49xbf16>
      %cst_13 = arith.constant dense<0.000000e+00> : vector<344x49xf32>
      %20 = tpu.matmul %17, %19, %cst_13 {dimension_numbers = #tpu.dot_dimension_numbers<[1], [0], [0], [1], [0, 0, 1, 1], [], []>} : vector<344x1200xbf16>, vector<1200x49xbf16>, vector<344x49xf32> -> vector<344x49xf32>
      %cst_14 = arith.constant dense<0.000000e+00> : vector<344xf32>
      %21 = vector.multi_reduction <add>, %20, %cst_14 [1] : vector<344x49xf32> to vector<344xf32>
      %22 = vector.shape_cast %21 : vector<344xf32> to vector<344x1xf32>
      %cst_15 = arith.constant 4.900000e+01 : f32
      %23 = vector.broadcast %cst_15 : f32 to vector<344x1xf32>
      %24 = arith.divf %22, %23 : vector<344x1xf32>
      %25 = vector.broadcast %24 : vector<344x1xf32> to vector<344x49xf32>
      %26 = arith.subf %20, %25 : vector<344x49xf32>
      %27 = arith.mulf %26, %26 : vector<344x49xf32>
      %cst_16 = arith.constant dense<0.000000e+00> : vector<344xf32>
      %28 = vector.multi_reduction <add>, %27, %cst_16 [1] : vector<344x49xf32> to vector<344xf32>
      %29 = vector.shape_cast %28 : vector<344xf32> to vector<344x1xf32>
      %cst_17 = arith.constant 4.900000e+01 : f32
      %30 = vector.broadcast %cst_17 : f32 to vector<344x1xf32>
      %31 = arith.divf %29, %30 : vector<344x1xf32>
      %c0_18 = arith.constant 0 : index
      %c0_19 = arith.constant 0 : index
      %32 = vector.load %arg5[%c0_18, %c0_19] : memref<344x1xf32, #tpu.memory_space<vmem>>, vector<344x1xf32>
      %cst_20 = arith.constant 9.99999974E-6 : f32
      %33 = vector.broadcast %cst_20 : f32 to vector<344x1xf32>
      %34 = arith.addf %31, %33 : vector<344x1xf32>
      %35 = math.rsqrt %34 : vector<344x1xf32>
      %36 = arith.mulf %32, %35 : vector<344x1xf32>
      %37 = vector.broadcast %36 : vector<344x1xf32> to vector<344x49xf32>
      %38 = arith.mulf %26, %37 : vector<344x49xf32>
      %c0_21 = arith.constant 0 : index
      %c0_22 = arith.constant 0 : index
      %39 = vector.load %arg6[%c0_21, %c0_22] : memref<344x1xf32, #tpu.memory_space<vmem>>, vector<344x1xf32>
      %40 = vector.broadcast %39 : vector<344x1xf32> to vector<344x49xf32>
      %41 = arith.addf %38, %40 : vector<344x49xf32>
      %42 = arith.truncf %41 : vector<344x49xf32> to vector<344x49xbf16>
      %c0_23 = arith.constant 0 : index
      %c0_24 = arith.constant 0 : index
      %43 = vector.load %arg9[%c0_23, %c0_24] : memref<344x49xbf16, #tpu.memory_space<vmem>>, vector<344x49xbf16>
      tpu.vector_store %arg9[%c0_23, %c0_24], %42 {strides = array<i32>} : memref<344x49xbf16, #tpu.memory_space<vmem>>, vector<344x49xbf16>,
    } else {
    }
    %c0 = arith.constant 0 : index
    %c0_1 = arith.constant 0 : index
    %3 = vector.load %arg7[%c0, %c0_1] : memref<688x344xf32, #tpu.memory_space<vmem>>, vector<688x344xf32>
    %4 = arith.truncf %3 : vector<688x344xf32> to vector<688x344xbf16>
    %c0_2 = arith.constant 0 : index
    %c0_3 = arith.constant 0 : index
    %5 = vector.load %arg9[%c0_2, %c0_3] : memref<344x49xbf16, #tpu.memory_space<vmem>>, vector<344x49xbf16>
    %cst = arith.constant dense<0.000000e+00> : vector<688x49xf32>
    %6 = tpu.matmul %4, %5, %cst {dimension_numbers = #tpu.dot_dimension_numbers<[1], [0], [0], [1], [0, 0, 1, 1], [], []>} : vector<688x344xbf16>, vector<344x49xbf16>, vector<688x49xf32> -> vector<688x49xf32>
    %c0_4 = arith.constant 0 : index
    %c0_5 = arith.constant 0 : index
    %7 = vector.load %arg8[%c0_4, %c0_5] : memref<688x49xf32, #tpu.memory_space<vmem>>, vector<688x49xf32>
    tpu.vector_store %arg8[%c0_4, %c0_5], %6 {strides = array<i32>} : memref<688x49xf32, #tpu.memory_space<vmem>>, vector<688x49xf32>,
    return
  }
  func.func @transform_0(%arg0: i32, %arg1: i32) -> (i32, i32) {
    %c0_i32 = arith.constant 0 : i32
    %c0_i32_0 = arith.constant 0 : i32
    %c0_i32_1 = arith.constant 0 : i32
    return %c0_i32, %c0_i32_0 : i32, i32
  }
  func.func @transform_1(%arg0: i32, %arg1: i32) -> (i32, i32) {
    %c0_i32 = arith.constant 0 : i32
    %c0_i32_0 = arith.constant 0 : i32
    %c0_i32_1 = arith.constant 0 : i32
    return %c0_i32, %c0_i32_0 : i32, i32
  }
  func.func @transform_2(%arg0: i32, %arg1: i32) -> (i32, i32) {
    %c0_i32 = arith.constant 0 : i32
    %c0_i32_0 = arith.constant 0 : i32
    %c0_i32_1 = arith.constant 0 : i32
    return %c0_i32, %c0_i32_0 : i32, i32
  }
  func.func @transform_3(%arg0: i32, %arg1: i32) -> (i32, i32) {
    %c0_i32 = arith.constant 0 : i32
    %c0_i32_0 = arith.constant 0 : i32
    %c0_i32_1 = arith.constant 0 : i32
    return %c0_i32, %c0_i32_0 : i32, i32
  }
  func.func @transform_4(%arg0: i32, %arg1: i32) -> (i32, i32) {
    %c0_i32 = arith.constant 0 : i32
    %c0_i32_0 = arith.constant 0 : i32
    %c0_i32_1 = arith.constant 0 : i32
    return %c0_i32, %c0_i32_0 : i32, i32
  }
  func.func @transform_5(%arg0: i32, %arg1: i32) -> (i32, i32) {
    %c3_i32 = arith.constant 3 : i32
    %0 = arith.muli %arg0, %c3_i32 : i32
    %1 = arith.addi %0, %arg1 : i32
    %c0_i32 = arith.constant 0 : i32
    %c0_i32_0 = arith.constant 0 : i32
    return %1, %c0_i32 : i32, i32
  }
  func.func @transform_6(%arg0: i32, %arg1: i32) -> (i32, i32) {
    %c3_i32 = arith.constant 3 : i32
    %0 = arith.muli %arg0, %c3_i32 : i32
    %1 = arith.addi %0, %arg1 : i32
    %c0_i32 = arith.constant 0 : i32
    %c0_i32_0 = arith.constant 0 : i32
    return %1, %c0_i32 : i32, i32
  }
}

</mosaic_0001>

<llo_original>
// kernel: forward.1
$region0: #{forward.1}
  #allocation0 [shape = 'u32[]', space=smem, size = 0x4, offset = 0x4, fixed_abs, tag = 'smem constant byte address 0x4 - core index']
  #allocation1 [shape = 'u32[144,128]{1,0:T(1,128)}', space=vmem, size = 0x12000, scoped, tag = 'internal scratch']
  #allocation2 [shape = 'bf16[344,49]{1,0:T(8,128)(2,1)}', space=vmem, size = 0x15800, scoped, tag = 'scratch operand']
  %s0 = inlined_call_operand.vmem [shape: f32[1200,49], index: 0, kind: input, shape index: {}]
  %s1 = inlined_call_operand.vmem [shape: f32[1,1200], index: 1, kind: input, shape index: {}]
  %s2 = inlined_call_operand.vmem [shape: f32[344,1200], index: 2, kind: input, shape index: {}]
  %s3 = inlined_call_operand.vmem [shape: f32[344,1], index: 3, kind: input, shape index: {}]
  %s4 = inlined_call_operand.vmem [shape: f32[344,1], index: 4, kind: input, shape index: {}]
  %s5 = inlined_call_operand.vmem [shape: f32[2064,344], index: 5, kind: input, shape index: {}]
  %s6 = inlined_call_operand.vmem [shape: f32[2064,49], index: 6, kind: output, shape index: {}]
  %s7 = sld [smem:[#allocation0]]
  $region61: #{forward.1} parent=0
    _
  %s9 = ssub.s32 1, %s7
  %s10 = scalar_select 0, %s9, %s7
  loop: start=0, step=1, limit=5
  $region2: #{forward.1} parent=0 // loop_pre_header
    _
  $region3: #{forward.1} parent=0 // loop_header
    %s12 = sphi 0, %s16
    %p13 = scmp.ge.s32.totalorder %s12, 5
    %s19 = sphi 0, %s31
    %s20 = sphi 0, %s27
    %s21 = sphi 0, %s19
    %s22 = sphi 0, %s20
    %s23 = sphi 0, %s21
    %s24 = sphi 0, %s22
    %s32 = sphi 0, %s32
    %s34 = sphi 0, %s32
    %s35 = sphi 0, %s34
    %s49 = sphi 0, %s35
    %s53 = sphi 0, %s53
    %s55 = sphi 0, %s53
    %s56 = sphi 0, %s55
    %s70 = sphi 0, %s56
    %s74 = sphi 0, %s74
    %s76 = sphi 0, %s74
    %s77 = sphi 0, %s76
    %s91 = sphi 0, %s77
    %s95 = sphi 0, %s95
    %s97 = sphi 0, %s95
    %s98 = sphi 0, %s97
    %s112 = sphi 0, %s98
    %s116 = sphi 0, %s116
    %s118 = sphi 0, %s116
    %s119 = sphi 0, %s118
    %s133 = sphi 0, %s119
    %s143 = sphi 0, %s145
    %s146 = sphi 0, %s143
    %s147 = sphi 0, %s146
    %s163 = sphi 0, %s147
    %s173 = sphi 0, %s175
    %s176 = sphi 0, %s173
    %s177 = sphi 0, %s176
    %s193 = sphi 0, %s177
  $region4: #{forward.1} parent=0 // loop_header_branch
    %15 = sbr.rel (%p13) target = $region8
  $region5: #{forward.1} parent=0 // loop_body
    %s17 = ssub.s32 %s12, 1
    %s18 = ssub.s32 %s12, 2
    %s25 = sadd.s32 1, %s20
    %p26 = scmp.ge.s32.totalorder %s25, 3
    %s27 = scalar_select %p26, 0, %s25
    %s28 = sadd.s32 1, %s19
    %s29 = scalar_select %p26, %s28, %s19
    %p30 = scmp.ge.s32.totalorder %s29, 1
    %s31 = scalar_select %p30, 0, %s29
    %s33 = sadd.s32 %s32, 1
    %p36 = scmp.eq.s32.totalorder %s12, 2
    %p37 = scmp.ne.s32.totalorder %s32, %s34
    %p38 = scmp.eq.s32.totalorder %s12, 0
    %p39 = por %p37, %p38
    %p40 = scmp.ne.s32.totalorder %s32, %s34
    %p41 = scmp.eq.s32.totalorder %s17, 2
    %p42 = por %p40, %p41
    %p43 = scmp.ne.s32.totalorder %s34, %s35
    %p44 = scmp.eq.s32.totalorder %s17, 0
    %p45 = por %p43, %p44
    %p46 = scmp.ne.s32.totalorder %s34, %s35
    %p47 = scmp.eq.s32.totalorder %s18, 2
    %p48 = por %p46, %p47
    %p50 = scmp.ne.s32.totalorder %s35, %s49
    %p51 = scmp.eq.s32.totalorder %s18, 0
    %p52 = por %p50, %p51
    %s54 = sadd.s32 %s53, 1
    %p57 = scmp.eq.s32.totalorder %s12, 2
    %p58 = scmp.ne.s32.totalorder %s53, %s55
    %p59 = scmp.eq.s32.totalorder %s12, 0
    %p60 = por %p58, %p59
    %p61 = scmp.ne.s32.totalorder %s53, %s55
    %p62 = scmp.eq.s32.totalorder %s17, 2
    %p63 = por %p61, %p62
    %p64 = scmp.ne.s32.totalorder %s55, %s56
    %p65 = scmp.eq.s32.totalorder %s17, 0
    %p66 = por %p64, %p65
    %p67 = scmp.ne.s32.totalorder %s55, %s56
    %p68 = scmp.eq.s32.totalorder %s18, 2
    %p69 = por %p67, %p68
    %p71 = scmp.ne.s32.totalorder %s56, %s70
    %p72 = scmp.eq.s32.totalorder %s18, 0
    %p73 = por %p71, %p72
    %s75 = sadd.s32 %s74, 1
    %p78 = scmp.eq.s32.totalorder %s12, 2
    %p79 = scmp.ne.s32.totalorder %s74, %s76
    %p80 = scmp.eq.s32.totalorder %s12, 0
    %p81 = por %p79, %p80
    %p82 = scmp.ne.s32.totalorder %s74, %s76
    %p83 = scmp.eq.s32.totalorder %s17, 2
    %p84 = por %p82, %p83
    %p85 = scmp.ne.s32.totalorder %s76, %s77
    %p86 = scmp.eq.s32.totalorder %s17, 0
    %p87 = por %p85, %p86
    %p88 = scmp.ne.s32.totalorder %s76, %s77
    %p89 = scmp.eq.s32.totalorder %s18, 2
    %p90 = por %p88, %p89
    %p92 = scmp.ne.s32.totalorder %s77, %s91
    %p93 = scmp.eq.s32.totalorder %s18, 0
    %p94 = por %p92, %p93
    %s96 = sadd.s32 %s95, 1
    %p99 = scmp.eq.s32.totalorder %s12, 2
    %p100 = scmp.ne.s32.totalorder %s95, %s97
    %p101 = scmp.eq.s32.totalorder %s12, 0
    %p102 = por %p100, %p101
    %p103 = scmp.ne.s32.totalorder %s95, %s97
    %p104 = scmp.eq.s32.totalorder %s17, 2
    %p105 = por %p103, %p104
    %p106 = scmp.ne.s32.totalorder %s97, %s98
    %p107 = scmp.eq.s32.totalorder %s17, 0
    %p108 = por %p106, %p107
    %p109 = scmp.ne.s32.totalorder %s97, %s98
    %p110 = scmp.eq.s32.totalorder %s18, 2
    %p111 = por %p109, %p110
    %p113 = scmp.ne.s32.totalorder %s98, %s112
    %p114 = scmp.eq.s32.totalorder %s18, 0
    %p115 = por %p113, %p114
    %s117 = sadd.s32 %s116, 1
    %p120 = scmp.eq.s32.totalorder %s12, 2
    %p121 = scmp.ne.s32.totalorder %s116, %s118
    %p122 = scmp.eq.s32.totalorder %s12, 0
    %p123 = por %p121, %p122
    %p124 = scmp.ne.s32.totalorder %s116, %s118
    %p125 = scmp.eq.s32.totalorder %s17, 2
    %p126 = por %p124, %p125
    %p127 = scmp.ne.s32.totalorder %s118, %s119
    %p128 = scmp.eq.s32.totalorder %s17, 0
    %p129 = por %p127, %p128
    %p130 = scmp.ne.s32.totalorder %s118, %s119
    %p131 = scmp.eq.s32.totalorder %s18, 2
    %p132 = por %p130, %p131
    %p134 = scmp.ne.s32.totalorder %s119, %s133
    %p135 = scmp.eq.s32.totalorder %s18, 0
    %p136 = por %p134, %p135
    %s137 = smul.u32 %s19, 3
    %s138 = sadd.s32 %s137, %s20
    %s139 = smul.u32 %s31, 3
    %s140 = sadd.s32 %s139, %s27
    %s141 = ssub.s32 %s138, %s140
    %p142 = scmp.eq.s32.totalorder %s141, 0
    %s144 = sadd.s32 %s143, 1
    %s145 = scalar_select %p142, %s143, %s144
    %p148 = pneg %p142
    %p149 = scmp.eq.s32.totalorder %s12, 2
    %p150 = por %p148, %p149
    %p151 = scmp.ne.s32.totalorder %s143, %s146
    %p152 = scmp.eq.s32.totalorder %s12, 0
    %p153 = por %p151, %p152
    %p154 = scmp.ne.s32.totalorder %s143, %s146
    %p155 = scmp.eq.s32.totalorder %s17, 2
    %p156 = por %p154, %p155
    %p157 = scmp.ne.s32.totalorder %s146, %s147
    %p158 = scmp.eq.s32.totalorder %s17, 0
    %p159 = por %p157, %p158
    %p160 = scmp.ne.s32.totalorder %s146, %s147
    %p161 = scmp.eq.s32.totalorder %s18, 2
    %p162 = por %p160, %p161
    %p164 = scmp.ne.s32.totalorder %s147, %s163
    %p165 = scmp.eq.s32.totalorder %s18, 0
    %p166 = por %p164, %p165
    %s167 = smul.u32 %s19, 3
    %s168 = sadd.s32 %s167, %s20
    %s169 = smul.u32 %s31, 3
    %s170 = sadd.s32 %s169, %s27
    %s171 = ssub.s32 %s168, %s170
    %p172 = scmp.eq.s32.totalorder %s171, 0
    %s174 = sadd.s32 %s173, 1
    %s175 = scalar_select %p172, %s173, %s174
    %p178 = pneg %p172
    %p179 = scmp.eq.s32.totalorder %s12, 2
    %p180 = por %p178, %p179
    %p181 = scmp.ne.s32.totalorder %s173, %s176
    %p182 = scmp.eq.s32.totalorder %s12, 0
    %p183 = por %p181, %p182
    %p184 = scmp.ne.s32.totalorder %s173, %s176
    %p185 = scmp.eq.s32.totalorder %s17, 2
    %p186 = por %p184, %p185
    %p187 = scmp.ne.s32.totalorder %s176, %s177
    %p188 = scmp.eq.s32.totalorder %s17, 0
    %p189 = por %p187, %p188
    %p190 = scmp.ne.s32.totalorder %s176, %s177
    %p191 = scmp.eq.s32.totalorder %s18, 2
    %p192 = por %p190, %p191
    %p194 = scmp.ne.s32.totalorder %s177, %s193
    %p195 = scmp.eq.s32.totalorder %s18, 0
    %p196 = por %p194, %p195
    %p197 = scmp.le.s32.totalorder 1, %s12
    %p198 = scmp.lt.s32.totalorder %s12, 4
    %p199 = pnand %p197, %p198
    %p200 = pneg %p199
    // Predicated region
    $region9: #{forward.1} parent=5 // pred_check
      _
    $region10: #{forward.1} parent=5 // pred_check_branch
      %202 = sbr.rel (%p199) target = $region12
    $region11: #{forward.1} parent=5 // pred_region
      %s203 = ssub.s32 %s12, 1
      // Predicated region
      $region13: #{forward.1} parent=11 // pred_check
        %p204 = pneg %p45
      $region14: #{forward.1} parent=11 // pred_check_branch
        %206 = sbr.rel (%p204) target = $region16
      $region15: #{forward.1} parent=11 // pred_region
        _
      $region16: #{forward.1} parent=11 // pred_fallthru
        _
      // Predicated region
      $region17: #{forward.1} parent=11 // pred_check
        %p207 = pneg %p66
      $region18: #{forward.1} parent=11 // pred_check_branch
        %209 = sbr.rel (%p207) target = $region20
      $region19: #{forward.1} parent=11 // pred_region
        _
      $region20: #{forward.1} parent=11 // pred_fallthru
        _
      // Predicated region
      $region21: #{forward.1} parent=11 // pred_check
        %p210 = pneg %p87
      $region22: #{forward.1} parent=11 // pred_check_branch
        %212 = sbr.rel (%p210) target = $region24
      $region23: #{forward.1} parent=11 // pred_region
        _
      $region24: #{forward.1} parent=11 // pred_fallthru
        _
      // Predicated region
      $region25: #{forward.1} parent=11 // pred_check
        %p213 = pneg %p108
      $region26: #{forward.1} parent=11 // pred_check_branch
        %215 = sbr.rel (%p213) target = $region28
      $region27: #{forward.1} parent=11 // pred_region
        _
      $region28: #{forward.1} parent=11 // pred_fallthru
        _
      // Predicated region
      $region29: #{forward.1} parent=11 // pred_check
        %p216 = pneg %p129
      $region30: #{forward.1} parent=11 // pred_check_branch
        %218 = sbr.rel (%p216) target = $region32
      $region31: #{forward.1} parent=11 // pred_region
        _
      $region32: #{forward.1} parent=11 // pred_fallthru
        _
    $region12: #{forward.1} parent=5 // pred_fallthru
      _
    %p219 = scmp.lt.s32.totalorder %s12, 3
    // Predicated region
    $region33: #{forward.1} parent=5 // pred_check
      %p220 = pneg %p219
    $region34: #{forward.1} parent=5 // pred_check_branch
      %222 = sbr.rel (%p220) target = $region36
    $region35: #{forward.1} parent=5 // pred_region
      // Predicated region
      $region37: #{forward.1} parent=35 // pred_check
        %p223 = pneg %p153
      $region38: #{forward.1} parent=35 // pred_check_branch
        %225 = sbr.rel (%p223) target = $region40
      $region39: #{forward.1} parent=35 // pred_region
        %s226 = smul.u32 %s19, 3
        %s227 = sadd.s32 %s226, %s20
        %s228 = smul.u32 86, %s227
        %p229 = scmp.lt.s32.totalorder %s228, 257
        %s230 = scalar_select %p229, %s228, 257
        %s231 = smul.addr %s230, 3
        %s232 = smul.addr %s231, 8
        %s233 = scalar_lea.vmem %s5, %s232
        %s234 = smul.u32 %s19, 3
        %s235 = sadd.s32 %s234, %s20
        %s236 = smul.u32 86, %s235
      $region40: #{forward.1} parent=35 // pred_fallthru
        _
    $region36: #{forward.1} parent=5 // pred_fallthru
      _
    %p237 = scmp.le.s32.totalorder 1, %s12
    %p238 = scmp.lt.s32.totalorder %s12, 4
    %p239 = pnand %p237, %p238
    %p240 = pneg %p239
    // Predicated region
    $region41: #{forward.1} parent=5 // pred_check
      _
    $region42: #{forward.1} parent=5 // pred_check_branch
      %242 = sbr.rel (%p239) target = $region44
    $region43: #{forward.1} parent=5 // pred_region
      %s243 = ssub.s32 %s12, 1
      %p244 = pneg %p45
      %p245 = pneg %p42
      %p246 = pneg %p66
      %p247 = pneg %p63
      %p248 = pneg %p87
      %p249 = pneg %p84
      %p250 = pneg %p108
      %p251 = pneg %p105
      %p252 = pneg %p129
      %p253 = pneg %p126
      %s254 = smul.u32 %s21, 3
      %s255 = sadd.s32 %s254, %s22
      %s256 = smul.u32 86, %s255
      %p257 = scmp.lt.s32.totalorder %s256, 257
      %s258 = scalar_select %p257, %s256, 257
      %s259 = smul.addr %s258, 3
      %s260 = smul.addr %s259, 8
      %s261 = scalar_lea.vmem %s5, %s260
      %p262 = pneg %p159
      %p263 = pneg %p156
      %p264 = pneg %p189
      %p265 = pneg %p186
      %s266 = smul.u32 %s21, 3
      %s267 = sadd.s32 %s266, %s22
      %s268 = smul.u32 86, %s267
      %p269 = scmp.lt.s32.totalorder %s268, 257
      %s270 = scalar_select %p269, %s268, 257
      %s271 = smul.addr %s270, 8
      %s272 = scalar_lea.vmem %s6, %s271
      %s273 = smul.u32 %s21, 3
      %s274 = sadd.s32 %s273, %s22
      %s275 = smul.u32 86, %s274
      %p276 = scmp.lt.s32.totalorder %s275, 257
      %s277 = scalar_select %p276, %s275, 257
      %s278 = smul.addr %s277, 3
      %s279 = smul.addr %s278, 8
      %s280 = scalar_lea.vmem %s5, %s279
      %s281 = smul.u32 %s21, 3
      %s282 = sadd.s32 %s281, %s22
      %s283 = smul.u32 86, %s282
      %s284 = smul.u32 %s21, 3
      %s285 = sadd.s32 %s284, %s22
      %s286 = smul.u32 86, %s285
      %p287 = scmp.lt.s32.totalorder %s286, 257
      %s288 = scalar_select %p287, %s286, 257
      %s289 = smul.addr %s288, 8
      %s290 = scalar_lea.vmem %s6, %s289
      %s291 = smul.u32 %s21, 3
      %s292 = sadd.s32 %s291, %s22
      %s293 = smul.u32 86, %s292
      %p295 = scmp.eq.s32.totalorder %s22, 0
      // Predicated region
      $region45: #{forward.1} parent=43 // pred_check
        %p296 = pneg %p295
      $region46: #{forward.1} parent=43 // pred_check_branch
        %298 = sbr.rel (%p296) target = $region48
      $region47: #{forward.1} parent=43 // pred_region
        %v299 = vld [vmem:[%s2] sm:$0xff]
        %v300 = vld [vmem:[%s2 + $0x8] sm:$0xff]
        %v301 = vld [vmem:[%s2 + $0x10] sm:$0xff]
        %v302 = vld [vmem:[%s2 + $0x18] sm:$0xff]
        %v303 = vld [vmem:[%s2 + $0x20] sm:$0xff]
        %v304 = vld [vmem:[%s2 + $0x28] sm:$0xff]
        %v305 = vld [vmem:[%s2 + $0x30] sm:$0xff]
        %v306 = vld [vmem:[%s2 + $0x38] sm:$0xff]
        %v307 = vld [vmem:[%s2 + $0x40] sm:$0xff]
        %v308 = vld [vmem:[%s2 + $0x48] sm:$0xff]
        %v309 = vld [vmem:[%s2 + $0x50] sm:$0xff]
        %v310 = vld [vmem:[%s2 + $0x58] sm:$0xff]
        %v311 = vld [vmem:[%s2 + $0x60] sm:$0xff]
        %v312 = vld [vmem:[%s2 + $0x68] sm:$0xff]
        %v313 = vld [vmem:[%s2 + $0x70] sm:$0xff]
        %v314 = vld [vmem:[%s2 + $0x78] sm:$0xff]
        %v315 = vld [vmem:[%s2 + $0x80] sm:$0xff]
        %v316 = vld [vmem:[%s2 + $0x88] sm:$0xff]
        %v317 = vld [vmem:[%s2 + $0x90] sm:$0xff]
        %v318 = vld [vmem:[%s2 + $0x98] sm:$0xff]
        %v319 = vld [vmem:[%s2 + $0xa0] sm:$0xff]
        %v320 = vld [vmem:[%s2 + $0xa8] sm:$0xff]
        %v321 = vld [vmem:[%s2 + $0xb0] sm:$0xff]
        %v322 = vld [vmem:[%s2 + $0xb8] sm:$0xff]
        %v323 = vld [vmem:[%s2 + $0xc0] sm:$0xff]
        %v324 = vld [vmem:[%s2 + $0xc8] sm:$0xff]
        %v325 = vld [vmem:[%s2 + $0xd0] sm:$0xff]
        %v326 = vld [vmem:[%s2 + $0xd8] sm:$0xff]
        %v327 = vld [vmem:[%s2 + $0xe0] sm:$0xff]
        %v328 = vld [vmem:[%s2 + $0xe8] sm:$0xff]
        %v329 = vld [vmem:[%s2 + $0xf0] sm:$0xff]
        %v330 = vld [vmem:[%s2 + $0xf8] sm:$0xff]
        %v331 = vld [vmem:[%s2 + $0x100] sm:$0xff]
        %v332 = vld [vmem:[%s2 + $0x108] sm:$0xff]
        %v333 = vld [vmem:[%s2 + $0x110] sm:$0xff]
        %v334 = vld [vmem:[%s2 + $0x118] sm:$0xff]
        %v335 = vld [vmem:[%s2 + $0x120] sm:$0xff]
        %v336 = vld [vmem:[%s2 + $0x128] sm:$0xff]
        %v337 = vld [vmem:[%s2 + $0x130] sm:$0xff]
        %v338 = vld [vmem:[%s2 + $0x138] sm:$0xff]
        %v339 = vld [vmem:[%s2 + $0x140] sm:$0xff]
        %v340 = vld [vmem:[%s2 + $0x148] sm:$0xff]
        %v341 = vld [vmem:[%s2 + $0x150] sm:$0xff]
        %v342 = vld [vmem:[%s2 + $0x158] sm:$0xff]
        %v343 = vld [vmem:[%s2 + $0x160] sm:$0xff]
        %v344 = vld [vmem:[%s2 + $0x168] sm:$0xff]
        %v345 = vld [vmem:[%s2 + $0x170] sm:$0xff]
        %v346 = vld [vmem:[%s2 + $0x178] sm:$0xff]
        %v347 = vld [vmem:[%s2 + $0x180] sm:$0xff]
        %v348 = vld [vmem:[%s2 + $0x188] sm:$0xff]
        %v349 = vld [vmem:[%s2 + $0x190] sm:$0xff]
        %v350 = vld [vmem:[%s2 + $0x198] sm:$0xff]
        %v351 = vld [vmem:[%s2 + $0x1a0] sm:$0xff]
        %v352 = vld [vmem:[%s2 + $0x1a8] sm:$0xff]
        %v353 = vld [vmem:[%s2 + $0x1b0] sm:$0xff]
        %v354 = vld [vmem:[%s2 + $0x1b8] sm:$0xff]
        %v355 = vld [vmem:[%s2 + $0x1c0] sm:$0xff]
        %v356 = vld [vmem:[%s2 + $0x1c8] sm:$0xff]
        %v357 = vld [vmem:[%s2 + $0x1d0] sm:$0xff]
        %v358 = vld [vmem:[%s2 + $0x1d8] sm:$0xff]
        %v359 = vld [vmem:[%s2 + $0x1e0] sm:$0xff]
        %v360 = vld [vmem:[%s2 + $0x1e8] sm:$0xff]
        %v361 = vld [vmem:[%s2 + $0x1f0] sm:$0xff]
        %v362 = vld [vmem:[%s2 + $0x1f8] sm:$0xff]
        %v363 = vld [vmem:[%s2 + $0x200] sm:$0xff]
        %v364 = vld [vmem:[%s2 + $0x208] sm:$0xff]
        %v365 = vld [vmem:[%s2 + $0x210] sm:$0xff]
        %v366 = vld [vmem:[%s2 + $0x218] sm:$0xff]
        %v367 = vld [vmem:[%s2 + $0x220] sm:$0xff]
        %v368 = vld [vmem:[%s2 + $0x228] sm:$0xff]
        %v369 = vld [vmem:[%s2 + $0x230] sm:$0xff]
        %v370 = vld [vmem:[%s2 + $0x238] sm:$0xff]
        %v371 = vld [vmem:[%s2 + $0x240] sm:$0xff]
        %v372 = vld [vmem:[%s2 + $0x248] sm:$0xff]
        %v373 = vld [vmem:[%s2 + $0x250] sm:$0xff]
        %v374 = vld [vmem:[%s2 + $0x258] sm:$0xff]
        %v375 = vld [vmem:[%s2 + $0x260] sm:$0xff]
        %v376 = vld [vmem:[%s2 + $0x268] sm:$0xff]
        %v377 = vld [vmem:[%s2 + $0x270] sm:$0xff]
        %v378 = vld [vmem:[%s2 + $0x278] sm:$0xff]
        %v379 = vld [vmem:[%s2 + $0x280] sm:$0xff]
        %v380 = vld [vmem:[%s2 + $0x288] sm:$0xff]
        %v381 = vld [vmem:[%s2 + $0x290] sm:$0xff]
        %v382 = vld [vmem:[%s2 + $0x298] sm:$0xff]
        %v383 = vld [vmem:[%s2 + $0x2a0] sm:$0xff]
        %v384 = vld [vmem:[%s2 + $0x2a8] sm:$0xff]
        %v385 = vld [vmem:[%s2 + $0x2b0] sm:$0xff]
        %v386 = vld [vmem:[%s2 + $0x2b8] sm:$0xff]
        %v387 = vld [vmem:[%s2 + $0x2c0] sm:$0xff]
        %v388 = vld [vmem:[%s2 + $0x2c8] sm:$0xff]
        %v389 = vld [vmem:[%s2 + $0x2d0] sm:$0xff]
        %v390 = vld [vmem:[%s2 + $0x2d8] sm:$0xff]
        %v391 = vld [vmem:[%s2 + $0x2e0] sm:$0xff]
        %v392 = vld [vmem:[%s2 + $0x2e8] sm:$0xff]
        %v393 = vld [vmem:[%s2 + $0x2f0] sm:$0xff]
        %v394 = vld [vmem:[%s2 + $0x2f8] sm:$0xff]
        %v395 = vld [vmem:[%s2 + $0x300] sm:$0xff]
        %v396 = vld [vmem:[%s2 + $0x308] sm:$0xff]
        %v397 = vld [vmem:[%s2 + $0x310] sm:$0xff]
        %v398 = vld [vmem:[%s2 + $0x318] sm:$0xff]
        %v399 = vld [vmem:[%s2 + $0x320] sm:$0xff]
        %v400 = vld [vmem:[%s2 + $0x328] sm:$0xff]
        %v401 = vld [vmem:[%s2 + $0x330] sm:$0xff]
        %v402 = vld [vmem:[%s2 + $0x338] sm:$0xff]
        %v403 = vld [vmem:[%s2 + $0x340] sm:$0xff]
        %v404 = vld [vmem:[%s2 + $0x348] sm:$0xff]
        %v405 = vld [vmem:[%s2 + $0x350] sm:$0xff]
        %v406 = vld [vmem:[%s2 + $0x358] sm:$0xff]
        %v407 = vld [vmem:[%s2 + $0x360] sm:$0xff]
        %v408 = vld [vmem:[%s2 + $0x368] sm:$0xff]
        %v409 = vld [vmem:[%s2 + $0x370] sm:$0xff]
        %v410 = vld [vmem:[%s2 + $0x378] sm:$0xff]
        %v411 = vld [vmem:[%s2 + $0x380] sm:$0xff]
        %v412 = vld [vmem:[%s2 + $0x388] sm:$0xff]
        %v413 = vld [vmem:[%s2 + $0x390] sm:$0xff]
        %v414 = vld [vmem:[%s2 + $0x398] sm:$0xff]
        %v415 = vld [vmem:[%s2 + $0x3a0] sm:$0xff]
        %v416 = vld [vmem:[%s2 + $0x3a8] sm:$0xff]
        %v417 = vld [vmem:[%s2 + $0x3b0] sm:$0xff]
        %v418 = vld [vmem:[%s2 + $0x3b8] sm:$0xff]
        %v419 = vld [vmem:[%s2 + $0x3c0] sm:$0xff]
        %v420 = vld [vmem:[%s2 + $0x3c8] sm:$0xff]
        %v421 = vld [vmem:[%s2 + $0x3d0] sm:$0xff]
        %v422 = vld [vmem:[%s2 + $0x3d8] sm:$0xff]
        %v423 = vld [vmem:[%s2 + $0x3e0] sm:$0xff]
        %v424 = vld [vmem:[%s2 + $0x3e8] sm:$0xff]
        %v425 = vld [vmem:[%s2 + $0x3f0] sm:$0xff]
        %v426 = vld [vmem:[%s2 + $0x3f8] sm:$0xff]
        %v427 = vld [vmem:[%s2 + $0x400] sm:$0xff]
        %v428 = vld [vmem:[%s2 + $0x408] sm:$0xff]
        %v429 = vld [vmem:[%s2 + $0x410] sm:$0xff]
        %v430 = vld [vmem:[%s2 + $0x418] sm:$0xff]
        %v431 = vld [vmem:[%s2 + $0x420] sm:$0xff]
        %v432 = vld [vmem:[%s2 + $0x428] sm:$0xff]
        %v433 = vld [vmem:[%s2 + $0x430] sm:$0xff]
        %v434 = vld [vmem:[%s2 + $0x438] sm:$0xff]
        %v435 = vld [vmem:[%s2 + $0x440] sm:$0xff]
        %v436 = vld [vmem:[%s2 + $0x448] sm:$0xff]
        %v437 = vld [vmem:[%s2 + $0x450] sm:$0xff]
        %v438 = vld [vmem:[%s2 + $0x458] sm:$0xff]
        %v439 = vld [vmem:[%s2 + $0x460] sm:$0xff]
        %v440 = vld [vmem:[%s2 + $0x468] sm:$0xff]
        %v441 = vld [vmem:[%s2 + $0x470] sm:$0xff]
        %v442 = vld [vmem:[%s2 + $0x478] sm:$0xff]
        %v443 = vld [vmem:[%s2 + $0x480] sm:$0xff]
        %v444 = vld [vmem:[%s2 + $0x488] sm:$0xff]
        %v445 = vld [vmem:[%s2 + $0x490] sm:$0xff]
        %v446 = vld [vmem:[%s2 + $0x498] sm:$0xff]
        %v447 = vld [vmem:[%s2 + $0x4a0] sm:$0xff]
        %v448 = vld [vmem:[%s2 + $0x4a8] sm:$0xff]
        %v449 = vld [vmem:[%s2 + $0x4b0] sm:$0xff]
        %v450 = vld [vmem:[%s2 + $0x4b8] sm:$0xff]
        %v451 = vld [vmem:[%s2 + $0x4c0] sm:$0xff]
        %v452 = vld [vmem:[%s2 + $0x4c8] sm:$0xff]
        %v453 = vld [vmem:[%s2 + $0x4d0] sm:$0xff]
        %v454 = vld [vmem:[%s2 + $0x4d8] sm:$0xff]
        %v455 = vld [vmem:[%s2 + $0x4e0] sm:$0xff]
        %v456 = vld [vmem:[%s2 + $0x4e8] sm:$0xff]
        %v457 = vld [vmem:[%s2 + $0x4f0] sm:$0xff]
        %v458 = vld [vmem:[%s2 + $0x4f8] sm:$0xff]
        %v459 = vld [vmem:[%s2 + $0x500] sm:$0xff]
        %v460 = vld [vmem:[%s2 + $0x508] sm:$0xff]
        %v461 = vld [vmem:[%s2 + $0x510] sm:$0xff]
        %v462 = vld [vmem:[%s2 + $0x518] sm:$0xff]
        %v463 = vld [vmem:[%s2 + $0x520] sm:$0xff]
        %v464 = vld [vmem:[%s2 + $0x528] sm:$0xff]
        %v465 = vld [vmem:[%s2 + $0x530] sm:$0xff]
        %v466 = vld [vmem:[%s2 + $0x538] sm:$0xff]
        %v467 = vld [vmem:[%s2 + $0x540] sm:$0xff]
        %v468 = vld [vmem:[%s2 + $0x548] sm:$0xff]
        %v469 = vld [vmem:[%s2 + $0x550] sm:$0xff]
        %v470 = vld [vmem:[%s2 + $0x558] sm:$0xff]
        %v471 = vld [vmem:[%s2 + $0x560] sm:$0xff]
        %v472 = vld [vmem:[%s2 + $0x568] sm:$0xff]
        %v473 = vld [vmem:[%s2 + $0x570] sm:$0xff]
        %v474 = vld [vmem:[%s2 + $0x578] sm:$0xff]
        %v475 = vld [vmem:[%s2 + $0x580] sm:$0xff]
        %v476 = vld [vmem:[%s2 + $0x588] sm:$0xff]
        %v477 = vld [vmem:[%s2 + $0x590] sm:$0xff]
        %v478 = vld [vmem:[%s2 + $0x598] sm:$0xff]
        %v479 = vld [vmem:[%s2 + $0x5a0] sm:$0xff]
        %v480 = vld [vmem:[%s2 + $0x5a8] sm:$0xff]
        %v481 = vld [vmem:[%s2 + $0x5b0] sm:$0xff]
        %v482 = vld [vmem:[%s2 + $0x5b8] sm:$0xff]
        %v483 = vld [vmem:[%s2 + $0x5c0] sm:$0xff]
        %v484 = vld [vmem:[%s2 + $0x5c8] sm:$0xff]
        %v485 = vld [vmem:[%s2 + $0x5d0] sm:$0xff]
        %v486 = vld [vmem:[%s2 + $0x5d8] sm:$0xff]
        %v487 = vld [vmem:[%s2 + $0x5e0] sm:$0xff]
        %v488 = vld [vmem:[%s2 + $0x5e8] sm:$0xff]
        %v489 = vld [vmem:[%s2 + $0x5f0] sm:$0xff]
        %v490 = vld [vmem:[%s2 + $0x5f8] sm:$0xff]
        %v491 = vld [vmem:[%s2 + $0x600] sm:$0xff]
        %v492 = vld [vmem:[%s2 + $0x608] sm:$0xff]
        %v493 = vld [vmem:[%s2 + $0x610] sm:$0xff]
        %v494 = vld [vmem:[%s2 + $0x618] sm:$0xff]
        %v495 = vld [vmem:[%s2 + $0x620] sm:$0xff]
        %v496 = vld [vmem:[%s2 + $0x628] sm:$0xff]
        %v497 = vld [vmem:[%s2 + $0x630] sm:$0xff]
        %v498 = vld [vmem:[%s2 + $0x638] sm:$0xff]
        %v499 = vld [vmem:[%s2 + $0x640] sm:$0xff]
        %v500 = vld [vmem:[%s2 + $0x648] sm:$0xff]
        %v501 = vld [vmem:[%s2 + $0x650] sm:$0xff]
        %v502 = vld [vmem:[%s2 + $0x658] sm:$0xff]
        %v503 = vld [vmem:[%s2 + $0x660] sm:$0xff]
        %v504 = vld [vmem:[%s2 + $0x668] sm:$0xff]
        %v505 = vld [vmem:[%s2 + $0x670] sm:$0xff]
        %v506 = vld [vmem:[%s2 + $0x678] sm:$0xff]
        %v507 = vld [vmem:[%s2 + $0x680] sm:$0xff]
        %v508 = vld [vmem:[%s2 + $0x688] sm:$0xff]
        %v509 = vld [vmem:[%s2 + $0x690] sm:$0xff]
        %v510 = vld [vmem:[%s2 + $0x698] sm:$0xff]
        %v511 = vld [vmem:[%s2 + $0x6a0] sm:$0xff]
        %v512 = vld [vmem:[%s2 + $0x6a8] sm:$0xff]
        %v513 = vld [vmem:[%s2 + $0x6b0] sm:$0xff]
        %v514 = vld [vmem:[%s2 + $0x6b8] sm:$0xff]
        %v515 = vld [vmem:[%s2 + $0x6c0] sm:$0xff]
        %v516 = vld [vmem:[%s2 + $0x6c8] sm:$0xff]
        %v517 = vld [vmem:[%s2 + $0x6d0] sm:$0xff]
        %v518 = vld [vmem:[%s2 + $0x6d8] sm:$0xff]
        %v519 = vld [vmem:[%s2 + $0x6e0] sm:$0xff]
        %v520 = vld [vmem:[%s2 + $0x6e8] sm:$0xff]
        %v521 = vld [vmem:[%s2 + $0x6f0] sm:$0xff]
        %v522 = vld [vmem:[%s2 + $0x6f8] sm:$0xff]
        %v523 = vld [vmem:[%s2 + $0x700] sm:$0xff]
        %v524 = vld [vmem:[%s2 + $0x708] sm:$0xff]
        %v525 = vld [vmem:[%s2 + $0x710] sm:$0xff]
        %v526 = vld [vmem:[%s2 + $0x718] sm:$0xff]
        %v527 = vld [vmem:[%s2 + $0x720] sm:$0xff]
        %v528 = vld [vmem:[%s2 + $0x728] sm:$0xff]
        %v529 = vld [vmem:[%s2 + $0x730] sm:$0xff]
        %v530 = vld [vmem:[%s2 + $0x738] sm:$0xff]
        %v531 = vld [vmem:[%s2 + $0x740] sm:$0xff]
        %v532 = vld [vmem:[%s2 + $0x748] sm:$0xff]
        %v533 = vld [vmem:[%s2 + $0x750] sm:$0xff]
        %v534 = vld [vmem:[%s2 + $0x758] sm:$0xff]
        %v535 = vld [vmem:[%s2 + $0x760] sm:$0xff]
        %v536 = vld [vmem:[%s2 + $0x768] sm:$0xff]
        %v537 = vld [vmem:[%s2 + $0x770] sm:$0xff]
        %v538 = vld [vmem:[%s2 + $0x778] sm:$0xff]
        %v539 = vld [vmem:[%s2 + $0x780] sm:$0xff]
        %v540 = vld [vmem:[%s2 + $0x788] sm:$0xff]
        %v541 = vld [vmem:[%s2 + $0x790] sm:$0xff]
        %v542 = vld [vmem:[%s2 + $0x798] sm:$0xff]
        %v543 = vld [vmem:[%s2 + $0x7a0] sm:$0xff]
        %v544 = vld [vmem:[%s2 + $0x7a8] sm:$0xff]
        %v545 = vld [vmem:[%s2 + $0x7b0] sm:$0xff]
        %v546 = vld [vmem:[%s2 + $0x7b8] sm:$0xff]
        %v547 = vld [vmem:[%s2 + $0x7c0] sm:$0xff]
        %v548 = vld [vmem:[%s2 + $0x7c8] sm:$0xff]
        %v549 = vld [vmem:[%s2 + $0x7d0] sm:$0xff]
        %v550 = vld [vmem:[%s2 + $0x7d8] sm:$0xff]
        %v551 = vld [vmem:[%s2 + $0x7e0] sm:$0xff]
        %v552 = vld [vmem:[%s2 + $0x7e8] sm:$0xff]
        %v553 = vld [vmem:[%s2 + $0x7f0] sm:$0xff]
        %v554 = vld [vmem:[%s2 + $0x7f8] sm:$0xff]
        %v555 = vld [vmem:[%s2 + $0x800] sm:$0xff]
        %v556 = vld [vmem:[%s2 + $0x808] sm:$0xff]
        %v557 = vld [vmem:[%s2 + $0x810] sm:$0xff]
        %v558 = vld [vmem:[%s2 + $0x818] sm:$0xff]
        %v559 = vld [vmem:[%s2 + $0x820] sm:$0xff]
        %v560 = vld [vmem:[%s2 + $0x828] sm:$0xff]
        %v561 = vld [vmem:[%s2 + $0x830] sm:$0xff]
        %v562 = vld [vmem:[%s2 + $0x838] sm:$0xff]
        %v563 = vld [vmem:[%s2 + $0x840] sm:$0xff]
        %v564 = vld [vmem:[%s2 + $0x848] sm:$0xff]
        %v565 = vld [vmem:[%s2 + $0x850] sm:$0xff]
        %v566 = vld [vmem:[%s2 + $0x858] sm:$0xff]
        %v567 = vld [vmem:[%s2 + $0x860] sm:$0xff]
        %v568 = vld [vmem:[%s2 + $0x868] sm:$0xff]
        %v569 = vld [vmem:[%s2 + $0x870] sm:$0xff]
        %v570 = vld [vmem:[%s2 + $0x878] sm:$0xff]
        %v571 = vld [vmem:[%s2 + $0x880] sm:$0xff]
        %v572 = vld [vmem:[%s2 + $0x888] sm:$0xff]
        %v573 = vld [vmem:[%s2 + $0x890] sm:$0xff]
        %v574 = vld [vmem:[%s2 + $0x898] sm:$0xff]
        %v575 = vld [vmem:[%s2 + $0x8a0] sm:$0xff]
        %v576 = vld [vmem:[%s2 + $0x8a8] sm:$0xff]
        %v577 = vld [vmem:[%s2 + $0x8b0] sm:$0xff]
        %v578 = vld [vmem:[%s2 + $0x8b8] sm:$0xff]
        %v579 = vld [vmem:[%s2 + $0x8c0] sm:$0xff]
        %v580 = vld [vmem:[%s2 + $0x8c8] sm:$0xff]
        %v581 = vld [vmem:[%s2 + $0x8d0] sm:$0xff]
        %v582 = vld [vmem:[%s2 + $0x8d8] sm:$0xff]
        %v583 = vld [vmem:[%s2 + $0x8e0] sm:$0xff]
        %v584 = vld [vmem:[%s2 + $0x8e8] sm:$0xff]
        %v585 = vld [vmem:[%s2 + $0x8f0] sm:$0xff]
        %v586 = vld [vmem:[%s2 + $0x8f8] sm:$0xff]
        %v587 = vld [vmem:[%s2 + $0x900] sm:$0xff]
        %v588 = vld [vmem:[%s2 + $0x908] sm:$0xff]
        %v589 = vld [vmem:[%s2 + $0x910] sm:$0xff]
        %v590 = vld [vmem:[%s2 + $0x918] sm:$0xff]
        %v591 = vld [vmem:[%s2 + $0x920] sm:$0xff]
        %v592 = vld [vmem:[%s2 + $0x928] sm:$0xff]
        %v593 = vld [vmem:[%s2 + $0x930] sm:$0xff]
        %v594 = vld [vmem:[%s2 + $0x938] sm:$0xff]
        %v595 = vld [vmem:[%s2 + $0x940] sm:$0xff]
        %v596 = vld [vmem:[%s2 + $0x948] sm:$0xff]
        %v597 = vld [vmem:[%s2 + $0x950] sm:$0xff]
        %v598 = vld [vmem:[%s2 + $0x958] sm:$0xff]
        %v599 = vld [vmem:[%s2 + $0x960] sm:$0xff]
        %v600 = vld [vmem:[%s2 + $0x968] sm:$0xff]
        %v601 = vld [vmem:[%s2 + $0x970] sm:$0xff]
        %v602 = vld [vmem:[%s2 + $0x978] sm:$0xff]
        %v603 = vld [vmem:[%s2 + $0x980] sm:$0xff]
        %v604 = vld [vmem:[%s2 + $0x988] sm:$0xff]
        %v605 = vld [vmem:[%s2 + $0x990] sm:$0xff]
        %v606 = vld [vmem:[%s2 + $0x998] sm:$0xff]
        %v607 = vld [vmem:[%s2 + $0x9a0] sm:$0xff]
        %v608 = vld [vmem:[%s2 + $0x9a8] sm:$0xff]
        %v609 = vld [vmem:[%s2 + $0x9b0] sm:$0xff]
        %v610 = vld [vmem:[%s2 + $0x9b8] sm:$0xff]
        %v611 = vld [vmem:[%s2 + $0x9c0] sm:$0xff]
        %v612 = vld [vmem:[%s2 + $0x9c8] sm:$0xff]
        %v613 = vld [vmem:[%s2 + $0x9d0] sm:$0xff]
        %v614 = vld [vmem:[%s2 + $0x9d8] sm:$0xff]
        %v615 = vld [vmem:[%s2 + $0x9e0] sm:$0xff]
        %v616 = vld [vmem:[%s2 + $0x9e8] sm:$0xff]
        %v617 = vld [vmem:[%s2 + $0x9f0] sm:$0xff]
        %v618 = vld [vmem:[%s2 + $0x9f8] sm:$0xff]
        %v619 = vld [vmem:[%s2 + $0xa00] sm:$0xff]
        %v620 = vld [vmem:[%s2 + $0xa08] sm:$0xff]
        %v621 = vld [vmem:[%s2 + $0xa10] sm:$0xff]
        %v622 = vld [vmem:[%s2 + $0xa18] sm:$0xff]
        %v623 = vld [vmem:[%s2 + $0xa20] sm:$0xff]
        %v624 = vld [vmem:[%s2 + $0xa28] sm:$0xff]
        %v625 = vld [vmem:[%s2 + $0xa30] sm:$0xff]
        %v626 = vld [vmem:[%s2 + $0xa38] sm:$0xff]
        %v627 = vld [vmem:[%s2 + $0xa40] sm:$0xff]
        %v628 = vld [vmem:[%s2 + $0xa48] sm:$0xff]
        %v629 = vld [vmem:[%s2 + $0xa50] sm:$0xff]
        %v630 = vld [vmem:[%s2 + $0xa58] sm:$0xff]
        %v631 = vld [vmem:[%s2 + $0xa60] sm:$0xff]
        %v632 = vld [vmem:[%s2 + $0xa68] sm:$0xff]
        %v633 = vld [vmem:[%s2 + $0xa70] sm:$0xff]
        %v634 = vld [vmem:[%s2 + $0xa78] sm:$0xff]
        %v635 = vld [vmem:[%s2 + $0xa80] sm:$0xff]
        %v636 = vld [vmem:[%s2 + $0xa88] sm:$0xff]
        %v637 = vld [vmem:[%s2 + $0xa90] sm:$0xff]
        %v638 = vld [vmem:[%s2 + $0xa98] sm:$0xff]
        %v639 = vld [vmem:[%s2 + $0xaa0] sm:$0xff]
        %v640 = vld [vmem:[%s2 + $0xaa8] sm:$0xff]
        %v641 = vld [vmem:[%s2 + $0xab0] sm:$0xff]
        %v642 = vld [vmem:[%s2 + $0xab8] sm:$0xff]
        %v643 = vld [vmem:[%s2 + $0xac0] sm:$0xff]
        %v644 = vld [vmem:[%s2 + $0xac8] sm:$0xff]
        %v645 = vld [vmem:[%s2 + $0xad0] sm:$0xff]
        %v646 = vld [vmem:[%s2 + $0xad8] sm:$0xff]
        %v647 = vld [vmem:[%s2 + $0xae0] sm:$0xff]
        %v648 = vld [vmem:[%s2 + $0xae8] sm:$0xff]
        %v649 = vld [vmem:[%s2 + $0xaf0] sm:$0xff]
        %v650 = vld [vmem:[%s2 + $0xaf8] sm:$0xff]
        %v651 = vld [vmem:[%s2 + $0xb00] sm:$0xff]
        %v652 = vld [vmem:[%s2 + $0xb08] sm:$0xff]
        %v653 = vld [vmem:[%s2 + $0xb10] sm:$0xff]
        %v654 = vld [vmem:[%s2 + $0xb18] sm:$0xff]
        %v655 = vld [vmem:[%s2 + $0xb20] sm:$0xff]
        %v656 = vld [vmem:[%s2 + $0xb28] sm:$0xff]
        %v657 = vld [vmem:[%s2 + $0xb30] sm:$0xff]
        %v658 = vld [vmem:[%s2 + $0xb38] sm:$0xff]
        %v659 = vld [vmem:[%s2 + $0xb40] sm:$0xff]
        %v660 = vld [vmem:[%s2 + $0xb48] sm:$0xff]
        %v661 = vld [vmem:[%s2 + $0xb50] sm:$0xff]
        %v662 = vld [vmem:[%s2 + $0xb58] sm:$0xff]
        %v663 = vld [vmem:[%s2 + $0xb60] sm:$0xff]
        %v664 = vld [vmem:[%s2 + $0xb68] sm:$0xff]
        %v665 = vld [vmem:[%s2 + $0xb70] sm:$0xff]
        %v666 = vld [vmem:[%s2 + $0xb78] sm:$0xff]
        %v667 = vld [vmem:[%s2 + $0xb80] sm:$0xff]
        %v668 = vld [vmem:[%s2 + $0xb88] sm:$0xff]
        %v669 = vld [vmem:[%s2 + $0xb90] sm:$0xff]
        %v670 = vld [vmem:[%s2 + $0xb98] sm:$0xff]
        %v671 = vld [vmem:[%s2 + $0xba0] sm:$0xff]
        %v672 = vld [vmem:[%s2 + $0xba8] sm:$0xff]
        %v673 = vld [vmem:[%s2 + $0xbb0] sm:$0xff]
        %v674 = vld [vmem:[%s2 + $0xbb8] sm:$0xff]
        %v675 = vld [vmem:[%s2 + $0xbc0] sm:$0xff]
        %v676 = vld [vmem:[%s2 + $0xbc8] sm:$0xff]
        %v677 = vld [vmem:[%s2 + $0xbd0] sm:$0xff]
        %v678 = vld [vmem:[%s2 + $0xbd8] sm:$0xff]
        %v679 = vld [vmem:[%s2 + $0xbe0] sm:$0xff]
        %v680 = vld [vmem:[%s2 + $0xbe8] sm:$0xff]
        %v681 = vld [vmem:[%s2 + $0xbf0] sm:$0xff]
        %v682 = vld [vmem:[%s2 + $0xbf8] sm:$0xff]
        %v683 = vld [vmem:[%s2 + $0xc00] sm:$0xff]
        %v684 = vld [vmem:[%s2 + $0xc08] sm:$0xff]
        %v685 = vld [vmem:[%s2 + $0xc10] sm:$0xff]
        %v686 = vld [vmem:[%s2 + $0xc18] sm:$0xff]
        %v687 = vld [vmem:[%s2 + $0xc20] sm:$0xff]
        %v688 = vld [vmem:[%s2 + $0xc28] sm:$0xff]
        %v689 = vld [vmem:[%s2 + $0xc30] sm:$0xff]
        %v690 = vld [vmem:[%s2 + $0xc38] sm:$0xff]
        %v691 = vld [vmem:[%s2 + $0xc40] sm:$0xff]
        %v692 = vld [vmem:[%s2 + $0xc48] sm:$0xff]
        %v693 = vld [vmem:[%s2 + $0xc50] sm:$0xff]
        %v694 = vld [vmem:[%s2 + $0xc58] sm:$0xff]
        %v695 = vld [vmem:[%s2 + $0xc60] sm:$0xff]
        %v696 = vld [vmem:[%s2 + $0xc68] sm:$0xff]
        %v697 = vld [vmem:[%s2 + $0xc70] sm:$0xff]
        %v698 = vld [vmem:[%s2 + $0xc78] sm:$0xff]
        %v699 = vld [vmem:[%s2 + $0xc80] sm:$0xff]
        %v700 = vld [vmem:[%s2 + $0xc88] sm:$0xff]
        %v701 = vld [vmem:[%s2 + $0xc90] sm:$0xff]
        %v702 = vld [vmem:[%s2 + $0xc98] sm:$0xff]
        %v703 = vld [vmem:[%s2 + $0xca0] sm:$0xff]
        %v704 = vld [vmem:[%s2 + $0xca8] sm:$0xff]
        %v705 = vld [vmem:[%s2 + $0xcb0] sm:$0xff]
        %v706 = vld [vmem:[%s2 + $0xcb8] sm:$0xff]
        %v707 = vld [vmem:[%s2 + $0xcc0] sm:$0xff]
        %v708 = vld [vmem:[%s2 + $0xcc8] sm:$0xff]
        %v709 = vld [vmem:[%s2 + $0xcd0] sm:$0xff]
        %v710 = vld [vmem:[%s2 + $0xcd8] sm:$0xff]
        %v711 = vld [vmem:[%s2 + $0xce0] sm:$0xff]
        %v712 = vld [vmem:[%s2 + $0xce8] sm:$0xff]
        %v713 = vld [vmem:[%s2 + $0xcf0] sm:$0xff]
        %v714 = vld [vmem:[%s2 + $0xcf8] sm:$0xff]
        %v715 = vld [vmem:[%s2 + $0xd00] sm:$0xff]
        %v716 = vld [vmem:[%s2 + $0xd08] sm:$0xff]
        %v717 = vld [vmem:[%s2 + $0xd10] sm:$0xff]
        %v718 = vld [vmem:[%s2 + $0xd18] sm:$0xff]
        %v719 = vld [vmem:[%s2 + $0xd20] sm:$0xff]
        %v720 = vld [vmem:[%s2 + $0xd28] sm:$0xff]
        %v721 = vld [vmem:[%s2 + $0xd30] sm:$0xff]
        %v722 = vld [vmem:[%s2 + $0xd38] sm:$0xff]
        %v723 = vld [vmem:[%s2 + $0xd40] sm:$0xff]
        %v724 = vld [vmem:[%s2 + $0xd48] sm:$0xff]
        %v725 = vld [vmem:[%s2 + $0xd50] sm:$0xff]
        %v726 = vld [vmem:[%s2 + $0xd58] sm:$0xff]
        %v727 = vld [vmem:[%s2 + $0xd60] sm:$0xff]
        %v728 = vld [vmem:[%s2 + $0xd68] sm:$0xff]
        %v729 = vld [vmem:[%s1] sm:$0xff]
        %v730 = vld [vmem:[%s1 + $0x8] sm:$0x3]
        %v731 = vxor.u32 %v729, 2147483648
        %v732 = vxor.u32 %v730, 2147483648
        %v733 = vmul.f32 %v731, 1.442695
        %v734 = vpow.pop %v733
        %v735 = vmul.f32 %v732, 1.442695
        %v736 = vpow.pop %v735
        %v737 = vadd.f32 %v734, 1.0
        %v738 = vadd.f32 %v736, 1.0
        %v739 = vrcp.pop %v737
        %v740 = vmul.f32 1.0, %v739
        %v741 = vrcp.pop %v738
        %v742 = vmul.f32 1.0, %v741
        %v745 = vlaneseq
        %v746 = vshrl.u32 %v745, 7
        %v747 = vsub.s32 0, %v746
        %v748 = vrot.slane %v740, %v747
        %v749 = vlaneseq
        %v750 = vshrl.u32 %v749, 7
        %v751 = vsub.s32 1, %v750
        %v752 = vrot.slane %v740, %v751
        %v753 = vlaneseq
        %v754 = vshrl.u32 %v753, 7
        %v755 = vsub.s32 2, %v754
        %v756 = vrot.slane %v740, %v755
        %v757 = vlaneseq
        %v758 = vshrl.u32 %v757, 7
        %v759 = vsub.s32 3, %v758
        %v760 = vrot.slane %v740, %v759
        %v761 = vlaneseq
        %v762 = vshrl.u32 %v761, 7
        %v763 = vsub.s32 4, %v762
        %v764 = vrot.slane %v740, %v763
        %v765 = vlaneseq
        %v766 = vshrl.u32 %v765, 7
        %v767 = vsub.s32 5, %v766
        %v768 = vrot.slane %v740, %v767
        %v769 = vlaneseq
        %v770 = vshrl.u32 %v769, 7
        %v771 = vsub.s32 6, %v770
        %v772 = vrot.slane %v740, %v771
        %v773 = vlaneseq
        %v774 = vshrl.u32 %v773, 7
        %v775 = vsub.s32 7, %v774
        %v776 = vrot.slane %v740, %v775
        %v777 = vlaneseq
        %v778 = vshrl.u32 %v777, 7
        %v779 = vsub.s32 0, %v778
        %v780 = vrot.slane %v742, %v779
        %v781 = vlaneseq
        %v782 = vshrl.u32 %v781, 7
        %v783 = vsub.s32 1, %v782
        %v784 = vrot.slane %v742, %v783
        %v795 = vmul.f32 %v299, %v748
        %v796 = vmul.f32 %v300, %v752
        %v797 = vmul.f32 %v301, %v756
        %v798 = vmul.f32 %v302, %v760
        %v799 = vmul.f32 %v303, %v764
        %v800 = vmul.f32 %v304, %v768
        %v801 = vmul.f32 %v305, %v772
        %v802 = vmul.f32 %v306, %v776
        %v803 = vmul.f32 %v307, %v780
        %v804 = vmul.f32 %v308, %v784
        %v805 = vmul.f32 %v309, %v748
        %v806 = vmul.f32 %v310, %v752
        %v807 = vmul.f32 %v311, %v756
        %v808 = vmul.f32 %v312, %v760
        %v809 = vmul.f32 %v313, %v764
        %v810 = vmul.f32 %v314, %v768
        %v811 = vmul.f32 %v315, %v772
        %v812 = vmul.f32 %v316, %v776
        %v813 = vmul.f32 %v317, %v780
        %v814 = vmul.f32 %v318, %v784
        %v815 = vmul.f32 %v319, %v748
        %v816 = vmul.f32 %v320, %v752
        %v817 = vmul.f32 %v321, %v756
        %v818 = vmul.f32 %v322, %v760
        %v819 = vmul.f32 %v323, %v764
        %v820 = vmul.f32 %v324, %v768
        %v821 = vmul.f32 %v325, %v772
        %v822 = vmul.f32 %v326, %v776
        %v823 = vmul.f32 %v327, %v780
        %v824 = vmul.f32 %v328, %v784
        %v825 = vmul.f32 %v329, %v748
        %v826 = vmul.f32 %v330, %v752
        %v827 = vmul.f32 %v331, %v756
        %v828 = vmul.f32 %v332, %v760
        %v829 = vmul.f32 %v333, %v764
        %v830 = vmul.f32 %v334, %v768
        %v831 = vmul.f32 %v335, %v772
        %v832 = vmul.f32 %v336, %v776
        %v833 = vmul.f32 %v337, %v780
        %v834 = vmul.f32 %v338, %v784
        %v835 = vmul.f32 %v339, %v748
        %v836 = vmul.f32 %v340, %v752
        %v837 = vmul.f32 %v341, %v756
        %v838 = vmul.f32 %v342, %v760
        %v839 = vmul.f32 %v343, %v764
        %v840 = vmul.f32 %v344, %v768
        %v841 = vmul.f32 %v345, %v772
        %v842 = vmul.f32 %v346, %v776
        %v843 = vmul.f32 %v347, %v780
        %v844 = vmul.f32 %v348, %v784
        %v845 = vmul.f32 %v349, %v748
        %v846 = vmul.f32 %v350, %v752
        %v847 = vmul.f32 %v351, %v756
        %v848 = vmul.f32 %v352, %v760
        %v849 = vmul.f32 %v353, %v764
        %v850 = vmul.f32 %v354, %v768
        %v851 = vmul.f32 %v355, %v772
        %v852 = vmul.f32 %v356, %v776
        %v853 = vmul.f32 %v357, %v780
        %v854 = vmul.f32 %v358, %v784
        %v855 = vmul.f32 %v359, %v748
        %v856 = vmul.f32 %v360, %v752
        %v857 = vmul.f32 %v361, %v756
        %v858 = vmul.f32 %v362, %v760
        %v859 = vmul.f32 %v363, %v764
        %v860 = vmul.f32 %v364, %v768
        %v861 = vmul.f32 %v365, %v772
        %v862 = vmul.f32 %v366, %v776
        %v863 = vmul.f32 %v367, %v780
        %v864 = vmul.f32 %v368, %v784
        %v865 = vmul.f32 %v369, %v748
        %v866 = vmul.f32 %v370, %v752
        %v867 = vmul.f32 %v371, %v756
        %v868 = vmul.f32 %v372, %v760
        %v869 = vmul.f32 %v373, %v764
        %v870 = vmul.f32 %v374, %v768
        %v871 = vmul.f32 %v375, %v772
        %v872 = vmul.f32 %v376, %v776
        %v873 = vmul.f32 %v377, %v780
        %v874 = vmul.f32 %v378, %v784
        %v875 = vmul.f32 %v379, %v748
        %v876 = vmul.f32 %v380, %v752
        %v877 = vmul.f32 %v381, %v756
        %v878 = vmul.f32 %v382, %v760
        %v879 = vmul.f32 %v383, %v764
        %v880 = vmul.f32 %v384, %v768
        %v881 = vmul.f32 %v385, %v772
        %v882 = vmul.f32 %v386, %v776
        %v883 = vmul.f32 %v387, %v780
        %v884 = vmul.f32 %v388, %v784
        %v885 = vmul.f32 %v389, %v748
        %v886 = vmul.f32 %v390, %v752
        %v887 = vmul.f32 %v391, %v756
        %v888 = vmul.f32 %v392, %v760
        %v889 = vmul.f32 %v393, %v764
        %v890 = vmul.f32 %v394, %v768
        %v891 = vmul.f32 %v395, %v772
        %v892 = vmul.f32 %v396, %v776
        %v893 = vmul.f32 %v397, %v780
        %v894 = vmul.f32 %v398, %v784
        %v895 = vmul.f32 %v399, %v748
        %v896 = vmul.f32 %v400, %v752
        %v897 = vmul.f32 %v401, %v756
        %v898 = vmul.f32 %v402, %v760
        %v899 = vmul.f32 %v403, %v764
        %v900 = vmul.f32 %v404, %v768
        %v901 = vmul.f32 %v405, %v772
        %v902 = vmul.f32 %v406, %v776
        %v903 = vmul.f32 %v407, %v780
        %v904 = vmul.f32 %v408, %v784
        %v905 = vmul.f32 %v409, %v748
        %v906 = vmul.f32 %v410, %v752
        %v907 = vmul.f32 %v411, %v756
        %v908 = vmul.f32 %v412, %v760
        %v909 = vmul.f32 %v413, %v764
        %v910 = vmul.f32 %v414, %v768
        %v911 = vmul.f32 %v415, %v772
        %v912 = vmul.f32 %v416, %v776
        %v913 = vmul.f32 %v417, %v780
        %v914 = vmul.f32 %v418, %v784
        %v915 = vmul.f32 %v419, %v748
        %v916 = vmul.f32 %v420, %v752
        %v917 = vmul.f32 %v421, %v756
        %v918 = vmul.f32 %v422, %v760
        %v919 = vmul.f32 %v423, %v764
        %v920 = vmul.f32 %v424, %v768
        %v921 = vmul.f32 %v425, %v772
        %v922 = vmul.f32 %v426, %v776
        %v923 = vmul.f32 %v427, %v780
        %v924 = vmul.f32 %v428, %v784
        %v925 = vmul.f32 %v429, %v748
        %v926 = vmul.f32 %v430, %v752
        %v927 = vmul.f32 %v431, %v756
        %v928 = vmul.f32 %v432, %v760
        %v929 = vmul.f32 %v433, %v764
        %v930 = vmul.f32 %v434, %v768
        %v931 = vmul.f32 %v435, %v772
        %v932 = vmul.f32 %v436, %v776
        %v933 = vmul.f32 %v437, %v780
        %v934 = vmul.f32 %v438, %v784
        %v935 = vmul.f32 %v439, %v748
        %v936 = vmul.f32 %v440, %v752
        %v937 = vmul.f32 %v441, %v756
        %v938 = vmul.f32 %v442, %v760
        %v939 = vmul.f32 %v443, %v764
        %v940 = vmul.f32 %v444, %v768
        %v941 = vmul.f32 %v445, %v772
        %v942 = vmul.f32 %v446, %v776
        %v943 = vmul.f32 %v447, %v780
        %v944 = vmul.f32 %v448, %v784
        %v945 = vmul.f32 %v449, %v748
        %v946 = vmul.f32 %v450, %v752
        %v947 = vmul.f32 %v451, %v756
        %v948 = vmul.f32 %v452, %v760
        %v949 = vmul.f32 %v453, %v764
        %v950 = vmul.f32 %v454, %v768
        %v951 = vmul.f32 %v455, %v772
        %v952 = vmul.f32 %v456, %v776
        %v953 = vmul.f32 %v457, %v780
        %v954 = vmul.f32 %v458, %v784
        %v955 = vmul.f32 %v459, %v748
        %v956 = vmul.f32 %v460, %v752
        %v957 = vmul.f32 %v461, %v756
        %v958 = vmul.f32 %v462, %v760
        %v959 = vmul.f32 %v463, %v764
        %v960 = vmul.f32 %v464, %v768
        %v961 = vmul.f32 %v465, %v772
        %v962 = vmul.f32 %v466, %v776
        %v963 = vmul.f32 %v467, %v780
        %v964 = vmul.f32 %v468, %v784
        %v965 = vmul.f32 %v469, %v748
        %v966 = vmul.f32 %v470, %v752
        %v967 = vmul.f32 %v471, %v756
        %v968 = vmul.f32 %v472, %v760
        %v969 = vmul.f32 %v473, %v764
        %v970 = vmul.f32 %v474, %v768
        %v971 = vmul.f32 %v475, %v772
        %v972 = vmul.f32 %v476, %v776
        %v973 = vmul.f32 %v477, %v780
        %v974 = vmul.f32 %v478, %v784
        %v975 = vmul.f32 %v479, %v748
        %v976 = vmul.f32 %v480, %v752
        %v977 = vmul.f32 %v481, %v756
        %v978 = vmul.f32 %v482, %v760
        %v979 = vmul.f32 %v483, %v764
        %v980 = vmul.f32 %v484, %v768
        %v981 = vmul.f32 %v485, %v772
        %v982 = vmul.f32 %v486, %v776
        %v983 = vmul.f32 %v487, %v780
        %v984 = vmul.f32 %v488, %v784
        %v985 = vmul.f32 %v489, %v748
        %v986 = vmul.f32 %v490, %v752
        %v987 = vmul.f32 %v491, %v756
        %v988 = vmul.f32 %v492, %v760
        %v989 = vmul.f32 %v493, %v764
        %v990 = vmul.f32 %v494, %v768
        %v991 = vmul.f32 %v495, %v772
        %v992 = vmul.f32 %v496, %v776
        %v993 = vmul.f32 %v497, %v780
        %v994 = vmul.f32 %v498, %v784
        %v995 = vmul.f32 %v499, %v748
        %v996 = vmul.f32 %v500, %v752
        %v997 = vmul.f32 %v501, %v756
        %v998 = vmul.f32 %v502, %v760
        %v999 = vmul.f32 %v503, %v764
        %v1000 = vmul.f32 %v504, %v768
        %v1001 = vmul.f32 %v505, %v772
        %v1002 = vmul.f32 %v506, %v776
        %v1003 = vmul.f32 %v507, %v780
        %v1004 = vmul.f32 %v508, %v784
        %v1005 = vmul.f32 %v509, %v748
        %v1006 = vmul.f32 %v510, %v752
        %v1007 = vmul.f32 %v511, %v756
        %v1008 = vmul.f32 %v512, %v760
        %v1009 = vmul.f32 %v513, %v764
        %v1010 = vmul.f32 %v514, %v768
        %v1011 = vmul.f32 %v515, %v772
        %v1012 = vmul.f32 %v516, %v776
        %v1013 = vmul.f32 %v517, %v780
        %v1014 = vmul.f32 %v518, %v784
        %v1015 = vmul.f32 %v519, %v748
        %v1016 = vmul.f32 %v520, %v752
        %v1017 = vmul.f32 %v521, %v756
        %v1018 = vmul.f32 %v522, %v760
        %v1019 = vmul.f32 %v523, %v764
        %v1020 = vmul.f32 %v524, %v768
        %v1021 = vmul.f32 %v525, %v772
        %v1022 = vmul.f32 %v526, %v776
        %v1023 = vmul.f32 %v527, %v780
        %v1024 = vmul.f32 %v528, %v784
        %v1025 = vmul.f32 %v529, %v748
        %v1026 = vmul.f32 %v530, %v752
        %v1027 = vmul.f32 %v531, %v756
        %v1028 = vmul.f32 %v532, %v760
        %v1029 = vmul.f32 %v533, %v764
        %v1030 = vmul.f32 %v534, %v768
        %v1031 = vmul.f32 %v535, %v772
        %v1032 = vmul.f32 %v536, %v776
        %v1033 = vmul.f32 %v537, %v780
        %v1034 = vmul.f32 %v538, %v784
        %v1035 = vmul.f32 %v539, %v748
        %v1036 = vmul.f32 %v540, %v752
        %v1037 = vmul.f32 %v541, %v756
        %v1038 = vmul.f32 %v542, %v760
        %v1039 = vmul.f32 %v543, %v764
        %v1040 = vmul.f32 %v544, %v768
        %v1041 = vmul.f32 %v545, %v772
        %v1042 = vmul.f32 %v546, %v776
        %v1043 = vmul.f32 %v547, %v780
        %v1044 = vmul.f32 %v548, %v784
        %v1045 = vmul.f32 %v549, %v748
        %v1046 = vmul.f32 %v550, %v752
        %v1047 = vmul.f32 %v551, %v756
        %v1048 = vmul.f32 %v552, %v760
        %v1049 = vmul.f32 %v553, %v764
        %v1050 = vmul.f32 %v554, %v768
        %v1051 = vmul.f32 %v555, %v772
        %v1052 = vmul.f32 %v556, %v776
        %v1053 = vmul.f32 %v557, %v780
        %v1054 = vmul.f32 %v558, %v784
        %v1055 = vmul.f32 %v559, %v748
        %v1056 = vmul.f32 %v560, %v752
        %v1057 = vmul.f32 %v561, %v756
        %v1058 = vmul.f32 %v562, %v760
        %v1059 = vmul.f32 %v563, %v764
        %v1060 = vmul.f32 %v564, %v768
        %v1061 = vmul.f32 %v565, %v772
        %v1062 = vmul.f32 %v566, %v776
        %v1063 = vmul.f32 %v567, %v780
        %v1064 = vmul.f32 %v568, %v784
        %v1065 = vmul.f32 %v569, %v748
        %v1066 = vmul.f32 %v570, %v752
        %v1067 = vmul.f32 %v571, %v756
        %v1068 = vmul.f32 %v572, %v760
        %v1069 = vmul.f32 %v573, %v764
        %v1070 = vmul.f32 %v574, %v768
        %v1071 = vmul.f32 %v575, %v772
        %v1072 = vmul.f32 %v576, %v776
        %v1073 = vmul.f32 %v577, %v780
        %v1074 = vmul.f32 %v578, %v784
        %v1075 = vmul.f32 %v579, %v748
        %v1076 = vmul.f32 %v580, %v752
        %v1077 = vmul.f32 %v581, %v756
        %v1078 = vmul.f32 %v582, %v760
        %v1079 = vmul.f32 %v583, %v764
        %v1080 = vmul.f32 %v584, %v768
        %v1081 = vmul.f32 %v585, %v772
        %v1082 = vmul.f32 %v586, %v776
        %v1083 = vmul.f32 %v587, %v780
        %v1084 = vmul.f32 %v588, %v784
        %v1085 = vmul.f32 %v589, %v748
        %v1086 = vmul.f32 %v590, %v752
        %v1087 = vmul.f32 %v591, %v756
        %v1088 = vmul.f32 %v592, %v760
        %v1089 = vmul.f32 %v593, %v764
        %v1090 = vmul.f32 %v594, %v768
        %v1091 = vmul.f32 %v595, %v772
        %v1092 = vmul.f32 %v596, %v776
        %v1093 = vmul.f32 %v597, %v780
        %v1094 = vmul.f32 %v598, %v784
        %v1095 = vmul.f32 %v599, %v748
        %v1096 = vmul.f32 %v600, %v752
        %v1097 = vmul.f32 %v601, %v756
        %v1098 = vmul.f32 %v602, %v760
        %v1099 = vmul.f32 %v603, %v764
        %v1100 = vmul.f32 %v604, %v768
        %v1101 = vmul.f32 %v605, %v772
        %v1102 = vmul.f32 %v606, %v776
        %v1103 = vmul.f32 %v607, %v780
        %v1104 = vmul.f32 %v608, %v784
        %v1105 = vmul.f32 %v609, %v748
        %v1106 = vmul.f32 %v610, %v752
        %v1107 = vmul.f32 %v611, %v756
        %v1108 = vmul.f32 %v612, %v760
        %v1109 = vmul.f32 %v613, %v764
        %v1110 = vmul.f32 %v614, %v768
        %v1111 = vmul.f32 %v615, %v772
        %v1112 = vmul.f32 %v616, %v776
        %v1113 = vmul.f32 %v617, %v780
        %v1114 = vmul.f32 %v618, %v784
        %v1115 = vmul.f32 %v619, %v748
        %v1116 = vmul.f32 %v620, %v752
        %v1117 = vmul.f32 %v621, %v756
        %v1118 = vmul.f32 %v622, %v760
        %v1119 = vmul.f32 %v623, %v764
        %v1120 = vmul.f32 %v624, %v768
        %v1121 = vmul.f32 %v625, %v772
        %v1122 = vmul.f32 %v626, %v776
        %v1123 = vmul.f32 %v627, %v780
        %v1124 = vmul.f32 %v628, %v784
        %v1125 = vmul.f32 %v629, %v748
        %v1126 = vmul.f32 %v630, %v752
        %v1127 = vmul.f32 %v631, %v756
        %v1128 = vmul.f32 %v632, %v760
        %v1129 = vmul.f32 %v633, %v764
        %v1130 = vmul.f32 %v634, %v768
        %v1131 = vmul.f32 %v635, %v772
        %v1132 = vmul.f32 %v636, %v776
        %v1133 = vmul.f32 %v637, %v780
        %v1134 = vmul.f32 %v638, %v784
        %v1135 = vmul.f32 %v639, %v748
        %v1136 = vmul.f32 %v640, %v752
        %v1137 = vmul.f32 %v641, %v756
        %v1138 = vmul.f32 %v642, %v760
        %v1139 = vmul.f32 %v643, %v764
        %v1140 = vmul.f32 %v644, %v768
        %v1141 = vmul.f32 %v645, %v772
        %v1142 = vmul.f32 %v646, %v776
        %v1143 = vmul.f32 %v647, %v780
        %v1144 = vmul.f32 %v648, %v784
        %v1145 = vmul.f32 %v649, %v748
        %v1146 = vmul.f32 %v650, %v752
        %v1147 = vmul.f32 %v651, %v756
        %v1148 = vmul.f32 %v652, %v760
        %v1149 = vmul.f32 %v653, %v764
        %v1150 = vmul.f32 %v654, %v768
        %v1151 = vmul.f32 %v655, %v772
        %v1152 = vmul.f32 %v656, %v776
        %v1153 = vmul.f32 %v657, %v780
        %v1154 = vmul.f32 %v658, %v784
        %v1155 = vmul.f32 %v659, %v748
        %v1156 = vmul.f32 %v660, %v752
        %v1157 = vmul.f32 %v661, %v756
        %v1158 = vmul.f32 %v662, %v760
        %v1159 = vmul.f32 %v663, %v764
        %v1160 = vmul.f32 %v664, %v768
        %v1161 = vmul.f32 %v665, %v772
        %v1162 = vmul.f32 %v666, %v776
        %v1163 = vmul.f32 %v667, %v780
        %v1164 = vmul.f32 %v668, %v784
        %v1165 = vmul.f32 %v669, %v748
        %v1166 = vmul.f32 %v670, %v752
        %v1167 = vmul.f32 %v671, %v756
        %v1168 = vmul.f32 %v672, %v760
        %v1169 = vmul.f32 %v673, %v764
        %v1170 = vmul.f32 %v674, %v768
        %v1171 = vmul.f32 %v675, %v772
        %v1172 = vmul.f32 %v676, %v776
        %v1173 = vmul.f32 %v677, %v780
        %v1174 = vmul.f32 %v678, %v784
        %v1175 = vmul.f32 %v679, %v748
        %v1176 = vmul.f32 %v680, %v752
        %v1177 = vmul.f32 %v681, %v756
        %v1178 = vmul.f32 %v682, %v760
        %v1179 = vmul.f32 %v683, %v764
        %v1180 = vmul.f32 %v684, %v768
        %v1181 = vmul.f32 %v685, %v772
        %v1182 = vmul.f32 %v686, %v776
        %v1183 = vmul.f32 %v687, %v780
        %v1184 = vmul.f32 %v688, %v784
        %v1185 = vmul.f32 %v689, %v748
        %v1186 = vmul.f32 %v690, %v752
        %v1187 = vmul.f32 %v691, %v756
        %v1188 = vmul.f32 %v692, %v760
        %v1189 = vmul.f32 %v693, %v764
        %v1190 = vmul.f32 %v694, %v768
        %v1191 = vmul.f32 %v695, %v772
        %v1192 = vmul.f32 %v696, %v776
        %v1193 = vmul.f32 %v697, %v780
        %v1194 = vmul.f32 %v698, %v784
        %v1195 = vmul.f32 %v699, %v748
        %v1196 = vmul.f32 %v700, %v752
        %v1197 = vmul.f32 %v701, %v756
        %v1198 = vmul.f32 %v702, %v760
        %v1199 = vmul.f32 %v703, %v764
        %v1200 = vmul.f32 %v704, %v768
        %v1201 = vmul.f32 %v705, %v772
        %v1202 = vmul.f32 %v706, %v776
        %v1203 = vmul.f32 %v707, %v780
        %v1204 = vmul.f32 %v708, %v784
        %v1205 = vmul.f32 %v709, %v748
        %v1206 = vmul.f32 %v710, %v752
        %v1207 = vmul.f32 %v711, %v756
        %v1208 = vmul.f32 %v712, %v760
        %v1209 = vmul.f32 %v713, %v764
        %v1210 = vmul.f32 %v714, %v768
        %v1211 = vmul.f32 %v715, %v772
        %v1212 = vmul.f32 %v716, %v776
        %v1213 = vmul.f32 %v717, %v780
        %v1214 = vmul.f32 %v718, %v784
        %v1215 = vmul.f32 %v719, %v748
        %v1216 = vmul.f32 %v720, %v752
        %v1217 = vmul.f32 %v721, %v756
        %v1218 = vmul.f32 %v722, %v760
        %v1219 = vmul.f32 %v723, %v764
        %v1220 = vmul.f32 %v724, %v768
        %v1221 = vmul.f32 %v725, %v772
        %v1222 = vmul.f32 %v726, %v776
        %v1223 = vmul.f32 %v727, %v780
        %v1224 = vmul.f32 %v728, %v784
        %v1225 = vpack.c.bf16 %v805, %v795
        %v1226 = vpack.c.bf16 %v806, %v796
        %v1227 = vpack.c.bf16 %v807, %v797
        %v1228 = vpack.c.bf16 %v808, %v798
        %v1229 = vpack.c.bf16 %v809, %v799
        %v1230 = vpack.c.bf16 %v810, %v800
        %v1231 = vpack.c.bf16 %v811, %v801
        %v1232 = vpack.c.bf16 %v812, %v802
        %v1233 = vpack.c.bf16 %v813, %v803
        %v1234 = vpack.c.bf16 %v814, %v804
        %v1235 = vpack.c.bf16 %v825, %v815
        %v1236 = vpack.c.bf16 %v826, %v816
        %v1237 = vpack.c.bf16 %v827, %v817
        %v1238 = vpack.c.bf16 %v828, %v818
        %v1239 = vpack.c.bf16 %v829, %v819
        %v1240 = vpack.c.bf16 %v830, %v820
        %v1241 = vpack.c.bf16 %v831, %v821
        %v1242 = vpack.c.bf16 %v832, %v822
        %v1243 = vpack.c.bf16 %v833, %v823
        %v1244 = vpack.c.bf16 %v834, %v824
        %v1245 = vpack.c.bf16 %v845, %v835
        %v1246 = vpack.c.bf16 %v846, %v836
        %v1247 = vpack.c.bf16 %v847, %v837
        %v1248 = vpack.c.bf16 %v848, %v838
        %v1249 = vpack.c.bf16 %v849, %v839
        %v1250 = vpack.c.bf16 %v850, %v840
        %v1251 = vpack.c.bf16 %v851, %v841
        %v1252 = vpack.c.bf16 %v852, %v842
        %v1253 = vpack.c.bf16 %v853, %v843
        %v1254 = vpack.c.bf16 %v854, %v844
        %v1255 = vpack.c.bf16 %v865, %v855
        %v1256 = vpack.c.bf16 %v866, %v856
        %v1257 = vpack.c.bf16 %v867, %v857
        %v1258 = vpack.c.bf16 %v868, %v858
        %v1259 = vpack.c.bf16 %v869, %v859
        %v1260 = vpack.c.bf16 %v870, %v860
        %v1261 = vpack.c.bf16 %v871, %v861
        %v1262 = vpack.c.bf16 %v872, %v862
        %v1263 = vpack.c.bf16 %v873, %v863
        %v1264 = vpack.c.bf16 %v874, %v864
        %v1265 = vpack.c.bf16 %v885, %v875
        %v1266 = vpack.c.bf16 %v886, %v876
        %v1267 = vpack.c.bf16 %v887, %v877
        %v1268 = vpack.c.bf16 %v888, %v878
        %v1269 = vpack.c.bf16 %v889, %v879
        %v1270 = vpack.c.bf16 %v890, %v880
        %v1271 = vpack.c.bf16 %v891, %v881
        %v1272 = vpack.c.bf16 %v892, %v882
        %v1273 = vpack.c.bf16 %v893, %v883
        %v1274 = vpack.c.bf16 %v894, %v884
        %v1275 = vpack.c.bf16 %v905, %v895
        %v1276 = vpack.c.bf16 %v906, %v896
        %v1277 = vpack.c.bf16 %v907, %v897
        %v1278 = vpack.c.bf16 %v908, %v898
        %v1279 = vpack.c.bf16 %v909, %v899
        %v1280 = vpack.c.bf16 %v910, %v900
        %v1281 = vpack.c.bf16 %v911, %v901
        %v1282 = vpack.c.bf16 %v912, %v902
        %v1283 = vpack.c.bf16 %v913, %v903
        %v1284 = vpack.c.bf16 %v914, %v904
        %v1285 = vpack.c.bf16 %v925, %v915
        %v1286 = vpack.c.bf16 %v926, %v916
        %v1287 = vpack.c.bf16 %v927, %v917
        %v1288 = vpack.c.bf16 %v928, %v918
        %v1289 = vpack.c.bf16 %v929, %v919
        %v1290 = vpack.c.bf16 %v930, %v920
        %v1291 = vpack.c.bf16 %v931, %v921
        %v1292 = vpack.c.bf16 %v932, %v922
        %v1293 = vpack.c.bf16 %v933, %v923
        %v1294 = vpack.c.bf16 %v934, %v924
        %v1295 = vpack.c.bf16 %v945, %v935
        %v1296 = vpack.c.bf16 %v946, %v936
        %v1297 = vpack.c.bf16 %v947, %v937
        %v1298 = vpack.c.bf16 %v948, %v938
        %v1299 = vpack.c.bf16 %v949, %v939
        %v1300 = vpack.c.bf16 %v950, %v940
        %v1301 = vpack.c.bf16 %v951, %v941
        %v1302 = vpack.c.bf16 %v952, %v942
        %v1303 = vpack.c.bf16 %v953, %v943
        %v1304 = vpack.c.bf16 %v954, %v944
        %v1305 = vpack.c.bf16 %v965, %v955
        %v1306 = vpack.c.bf16 %v966, %v956
        %v1307 = vpack.c.bf16 %v967, %v957
        %v1308 = vpack.c.bf16 %v968, %v958
        %v1309 = vpack.c.bf16 %v969, %v959
        %v1310 = vpack.c.bf16 %v970, %v960
        %v1311 = vpack.c.bf16 %v971, %v961
        %v1312 = vpack.c.bf16 %v972, %v962
        %v1313 = vpack.c.bf16 %v973, %v963
        %v1314 = vpack.c.bf16 %v974, %v964
        %v1315 = vpack.c.bf16 %v985, %v975
        %v1316 = vpack.c.bf16 %v986, %v976
        %v1317 = vpack.c.bf16 %v987, %v977
        %v1318 = vpack.c.bf16 %v988, %v978
        %v1319 = vpack.c.bf16 %v989, %v979
        %v1320 = vpack.c.bf16 %v990, %v980
        %v1321 = vpack.c.bf16 %v991, %v981
        %v1322 = vpack.c.bf16 %v992, %v982
        %v1323 = vpack.c.bf16 %v993, %v983
        %v1324 = vpack.c.bf16 %v994, %v984
        %v1325 = vpack.c.bf16 %v1005, %v995
        %v1326 = vpack.c.bf16 %v1006, %v996
        %v1327 = vpack.c.bf16 %v1007, %v997
        %v1328 = vpack.c.bf16 %v1008, %v998
        %v1329 = vpack.c.bf16 %v1009, %v999
        %v1330 = vpack.c.bf16 %v1010, %v1000
        %v1331 = vpack.c.bf16 %v1011, %v1001
        %v1332 = vpack.c.bf16 %v1012, %v1002
        %v1333 = vpack.c.bf16 %v1013, %v1003
        %v1334 = vpack.c.bf16 %v1014, %v1004
        %v1335 = vpack.c.bf16 %v1025, %v1015
        %v1336 = vpack.c.bf16 %v1026, %v1016
        %v1337 = vpack.c.bf16 %v1027, %v1017
        %v1338 = vpack.c.bf16 %v1028, %v1018
        %v1339 = vpack.c.bf16 %v1029, %v1019
        %v1340 = vpack.c.bf16 %v1030, %v1020
        %v1341 = vpack.c.bf16 %v1031, %v1021
        %v1342 = vpack.c.bf16 %v1032, %v1022
        %v1343 = vpack.c.bf16 %v1033, %v1023
        %v1344 = vpack.c.bf16 %v1034, %v1024
        %v1345 = vpack.c.bf16 %v1045, %v1035
        %v1346 = vpack.c.bf16 %v1046, %v1036
        %v1347 = vpack.c.bf16 %v1047, %v1037
        %v1348 = vpack.c.bf16 %v1048, %v1038
        %v1349 = vpack.c.bf16 %v1049, %v1039
        %v1350 = vpack.c.bf16 %v1050, %v1040
        %v1351 = vpack.c.bf16 %v1051, %v1041
        %v1352 = vpack.c.bf16 %v1052, %v1042
        %v1353 = vpack.c.bf16 %v1053, %v1043
        %v1354 = vpack.c.bf16 %v1054, %v1044
        %v1355 = vpack.c.bf16 %v1065, %v1055
        %v1356 = vpack.c.bf16 %v1066, %v1056
        %v1357 = vpack.c.bf16 %v1067, %v1057
        %v1358 = vpack.c.bf16 %v1068, %v1058
        %v1359 = vpack.c.bf16 %v1069, %v1059
        %v1360 = vpack.c.bf16 %v1070, %v1060
        %v1361 = vpack.c.bf16 %v1071, %v1061
        %v1362 = vpack.c.bf16 %v1072, %v1062
        %v1363 = vpack.c.bf16 %v1073, %v1063
        %v1364 = vpack.c.bf16 %v1074, %v1064
        %v1365 = vpack.c.bf16 %v1085, %v1075
        %v1366 = vpack.c.bf16 %v1086, %v1076
        %v1367 = vpack.c.bf16 %v1087, %v1077
        %v1368 = vpack.c.bf16 %v1088, %v1078
        %v1369 = vpack.c.bf16 %v1089, %v1079
        %v1370 = vpack.c.bf16 %v1090, %v1080
        %v1371 = vpack.c.bf16 %v1091, %v1081
        %v1372 = vpack.c.bf16 %v1092, %v1082
        %v1373 = vpack.c.bf16 %v1093, %v1083
        %v1374 = vpack.c.bf16 %v1094, %v1084
        %v1375 = vpack.c.bf16 %v1105, %v1095
        %v1376 = vpack.c.bf16 %v1106, %v1096
        %v1377 = vpack.c.bf16 %v1107, %v1097
        %v1378 = vpack.c.bf16 %v1108, %v1098
        %v1379 = vpack.c.bf16 %v1109, %v1099
        %v1380 = vpack.c.bf16 %v1110, %v1100
        %v1381 = vpack.c.bf16 %v1111, %v1101
        %v1382 = vpack.c.bf16 %v1112, %v1102
        %v1383 = vpack.c.bf16 %v1113, %v1103
        %v1384 = vpack.c.bf16 %v1114, %v1104
        %v1385 = vpack.c.bf16 %v1125, %v1115
        %v1386 = vpack.c.bf16 %v1126, %v1116
        %v1387 = vpack.c.bf16 %v1127, %v1117
        %v1388 = vpack.c.bf16 %v1128, %v1118
        %v1389 = vpack.c.bf16 %v1129, %v1119
        %v1390 = vpack.c.bf16 %v1130, %v1120
        %v1391 = vpack.c.bf16 %v1131, %v1121
        %v1392 = vpack.c.bf16 %v1132, %v1122
        %v1393 = vpack.c.bf16 %v1133, %v1123
        %v1394 = vpack.c.bf16 %v1134, %v1124
        %v1395 = vpack.c.bf16 %v1145, %v1135
        %v1396 = vpack.c.bf16 %v1146, %v1136
        %v1397 = vpack.c.bf16 %v1147, %v1137
        %v1398 = vpack.c.bf16 %v1148, %v1138
        %v1399 = vpack.c.bf16 %v1149, %v1139
        %v1400 = vpack.c.bf16 %v1150, %v1140
        %v1401 = vpack.c.bf16 %v1151, %v1141
        %v1402 = vpack.c.bf16 %v1152, %v1142
        %v1403 = vpack.c.bf16 %v1153, %v1143
        %v1404 = vpack.c.bf16 %v1154, %v1144
        %v1405 = vpack.c.bf16 %v1165, %v1155
        %v1406 = vpack.c.bf16 %v1166, %v1156
        %v1407 = vpack.c.bf16 %v1167, %v1157
        %v1408 = vpack.c.bf16 %v1168, %v1158
        %v1409 = vpack.c.bf16 %v1169, %v1159
        %v1410 = vpack.c.bf16 %v1170, %v1160
        %v1411 = vpack.c.bf16 %v1171, %v1161
        %v1412 = vpack.c.bf16 %v1172, %v1162
        %v1413 = vpack.c.bf16 %v1173, %v1163
        %v1414 = vpack.c.bf16 %v1174, %v1164
        %v1415 = vpack.c.bf16 %v1185, %v1175
        %v1416 = vpack.c.bf16 %v1186, %v1176
        %v1417 = vpack.c.bf16 %v1187, %v1177
        %v1418 = vpack.c.bf16 %v1188, %v1178
        %v1419 = vpack.c.bf16 %v1189, %v1179
        %v1420 = vpack.c.bf16 %v1190, %v1180
        %v1421 = vpack.c.bf16 %v1191, %v1181
        %v1422 = vpack.c.bf16 %v1192, %v1182
        %v1423 = vpack.c.bf16 %v1193, %v1183
        %v1424 = vpack.c.bf16 %v1194, %v1184
        %v1425 = vpack.c.bf16 %v1205, %v1195
        %v1426 = vpack.c.bf16 %v1206, %v1196
        %v1427 = vpack.c.bf16 %v1207, %v1197
        %v1428 = vpack.c.bf16 %v1208, %v1198
        %v1429 = vpack.c.bf16 %v1209, %v1199
        %v1430 = vpack.c.bf16 %v1210, %v1200
        %v1431 = vpack.c.bf16 %v1211, %v1201
        %v1432 = vpack.c.bf16 %v1212, %v1202
        %v1433 = vpack.c.bf16 %v1213, %v1203
        %v1434 = vpack.c.bf16 %v1214, %v1204
        %v1435 = vpack.c.bf16 %v1215, %v1215
        %v1436 = vpack.c.bf16 %v1216, %v1216
        %v1437 = vpack.c.bf16 %v1217, %v1217
        %v1438 = vpack.c.bf16 %v1218, %v1218
        %v1439 = vpack.c.bf16 %v1219, %v1219
        %v1440 = vpack.c.bf16 %v1220, %v1220
        %v1441 = vpack.c.bf16 %v1221, %v1221
        %v1442 = vpack.c.bf16 %v1222, %v1222
        %v1443 = vpack.c.bf16 %v1223, %v1223
        %v1444 = vpack.c.bf16 %v1224, %v1224
        %v1445 = vld [vmem:[%s0] sm:$0xff]
        %v1446 = vld [vmem:[%s0 + $0x8] sm:$0xff]
        %v1447 = vld [vmem:[%s0 + $0x10] sm:$0xff]
        %v1448 = vld [vmem:[%s0 + $0x18] sm:$0xff]
        %v1449 = vld [vmem:[%s0 + $0x20] sm:$0xff]
        %v1450 = vld [vmem:[%s0 + $0x28] sm:$0xff]
        %v1451 = vld [vmem:[%s0 + $0x30] sm:$0xff]
        %v1452 = vld [vmem:[%s0 + $0x38] sm:$0xff]
        %v1453 = vld [vmem:[%s0 + $0x40] sm:$0xff]
        %v1454 = vld [vmem:[%s0 + $0x48] sm:$0xff]
        %v1455 = vld [vmem:[%s0 + $0x50] sm:$0xff]
        %v1456 = vld [vmem:[%s0 + $0x58] sm:$0xff]
        %v1457 = vld [vmem:[%s0 + $0x60] sm:$0xff]
        %v1458 = vld [vmem:[%s0 + $0x68] sm:$0xff]
        %v1459 = vld [vmem:[%s0 + $0x70] sm:$0xff]
        %v1460 = vld [vmem:[%s0 + $0x78] sm:$0xff]
        %v1461 = vld [vmem:[%s0 + $0x80] sm:$0xff]
        %v1462 = vld [vmem:[%s0 + $0x88] sm:$0xff]
        %v1463 = vld [vmem:[%s0 + $0x90] sm:$0xff]
        %v1464 = vld [vmem:[%s0 + $0x98] sm:$0xff]
        %v1465 = vld [vmem:[%s0 + $0xa0] sm:$0xff]
        %v1466 = vld [vmem:[%s0 + $0xa8] sm:$0xff]
        %v1467 = vld [vmem:[%s0 + $0xb0] sm:$0xff]
        %v1468 = vld [vmem:[%s0 + $0xb8] sm:$0xff]
        %v1469 = vld [vmem:[%s0 + $0xc0] sm:$0xff]
        %v1470 = vld [vmem:[%s0 + $0xc8] sm:$0xff]
        %v1471 = vld [vmem:[%s0 + $0xd0] sm:$0xff]
        %v1472 = vld [vmem:[%s0 + $0xd8] sm:$0xff]
        %v1473 = vld [vmem:[%s0 + $0xe0] sm:$0xff]
        %v1474 = vld [vmem:[%s0 + $0xe8] sm:$0xff]
        %v1475 = vld [vmem:[%s0 + $0xf0] sm:$0xff]
        %v1476 = vld [vmem:[%s0 + $0xf8] sm:$0xff]
        %v1477 = vld [vmem:[%s0 + $0x100] sm:$0xff]
        %v1478 = vld [vmem:[%s0 + $0x108] sm:$0xff]
        %v1479 = vld [vmem:[%s0 + $0x110] sm:$0xff]
        %v1480 = vld [vmem:[%s0 + $0x118] sm:$0xff]
        %v1481 = vld [vmem:[%s0 + $0x120] sm:$0xff]
        %v1482 = vld [vmem:[%s0 + $0x128] sm:$0xff]
        %v1483 = vld [vmem:[%s0 + $0x130] sm:$0xff]
        %v1484 = vld [vmem:[%s0 + $0x138] sm:$0xff]
        %v1485 = vld [vmem:[%s0 + $0x140] sm:$0xff]
        %v1486 = vld [vmem:[%s0 + $0x148] sm:$0xff]
        %v1487 = vld [vmem:[%s0 + $0x150] sm:$0xff]
        %v1488 = vld [vmem:[%s0 + $0x158] sm:$0xff]
        %v1489 = vld [vmem:[%s0 + $0x160] sm:$0xff]
        %v1490 = vld [vmem:[%s0 + $0x168] sm:$0xff]
        %v1491 = vld [vmem:[%s0 + $0x170] sm:$0xff]
        %v1492 = vld [vmem:[%s0 + $0x178] sm:$0xff]
        %v1493 = vld [vmem:[%s0 + $0x180] sm:$0xff]
        %v1494 = vld [vmem:[%s0 + $0x188] sm:$0xff]
        %v1495 = vld [vmem:[%s0 + $0x190] sm:$0xff]
        %v1496 = vld [vmem:[%s0 + $0x198] sm:$0xff]
        %v1497 = vld [vmem:[%s0 + $0x1a0] sm:$0xff]
        %v1498 = vld [vmem:[%s0 + $0x1a8] sm:$0xff]
        %v1499 = vld [vmem:[%s0 + $0x1b0] sm:$0xff]
        %v1500 = vld [vmem:[%s0 + $0x1b8] sm:$0xff]
        %v1501 = vld [vmem:[%s0 + $0x1c0] sm:$0xff]
        %v1502 = vld [vmem:[%s0 + $0x1c8] sm:$0xff]
        %v1503 = vld [vmem:[%s0 + $0x1d0] sm:$0xff]
        %v1504 = vld [vmem:[%s0 + $0x1d8] sm:$0xff]
        %v1505 = vld [vmem:[%s0 + $0x1e0] sm:$0xff]
        %v1506 = vld [vmem:[%s0 + $0x1e8] sm:$0xff]
        %v1507 = vld [vmem:[%s0 + $0x1f0] sm:$0xff]
        %v1508 = vld [vmem:[%s0 + $0x1f8] sm:$0xff]
        %v1509 = vld [vmem:[%s0 + $0x200] sm:$0xff]
        %v1510 = vld [vmem:[%s0 + $0x208] sm:$0xff]
        %v1511 = vld [vmem:[%s0 + $0x210] sm:$0xff]
        %v1512 = vld [vmem:[%s0 + $0x218] sm:$0xff]
        %v1513 = vld [vmem:[%s0 + $0x220] sm:$0xff]
        %v1514 = vld [vmem:[%s0 + $0x228] sm:$0xff]
        %v1515 = vld [vmem:[%s0 + $0x230] sm:$0xff]
        %v1516 = vld [vmem:[%s0 + $0x238] sm:$0xff]
        %v1517 = vld [vmem:[%s0 + $0x240] sm:$0xff]
        %v1518 = vld [vmem:[%s0 + $0x248] sm:$0xff]
        %v1519 = vld [vmem:[%s0 + $0x250] sm:$0xff]
        %v1520 = vld [vmem:[%s0 + $0x258] sm:$0xff]
        %v1521 = vld [vmem:[%s0 + $0x260] sm:$0xff]
        %v1522 = vld [vmem:[%s0 + $0x268] sm:$0xff]
        %v1523 = vld [vmem:[%s0 + $0x270] sm:$0xff]
        %v1524 = vld [vmem:[%s0 + $0x278] sm:$0xff]
        %v1525 = vld [vmem:[%s0 + $0x280] sm:$0xff]
        %v1526 = vld [vmem:[%s0 + $0x288] sm:$0xff]
        %v1527 = vld [vmem:[%s0 + $0x290] sm:$0xff]
        %v1528 = vld [vmem:[%s0 + $0x298] sm:$0xff]
        %v1529 = vld [vmem:[%s0 + $0x2a0] sm:$0xff]
        %v1530 = vld [vmem:[%s0 + $0x2a8] sm:$0xff]
        %v1531 = vld [vmem:[%s0 + $0x2b0] sm:$0xff]
        %v1532 = vld [vmem:[%s0 + $0x2b8] sm:$0xff]
        %v1533 = vld [vmem:[%s0 + $0x2c0] sm:$0xff]
        %v1534 = vld [vmem:[%s0 + $0x2c8] sm:$0xff]
        %v1535 = vld [vmem:[%s0 + $0x2d0] sm:$0xff]
        %v1536 = vld [vmem:[%s0 + $0x2d8] sm:$0xff]
        %v1537 = vld [vmem:[%s0 + $0x2e0] sm:$0xff]
        %v1538 = vld [vmem:[%s0 + $0x2e8] sm:$0xff]
        %v1539 = vld [vmem:[%s0 + $0x2f0] sm:$0xff]
        %v1540 = vld [vmem:[%s0 + $0x2f8] sm:$0xff]
        %v1541 = vld [vmem:[%s0 + $0x300] sm:$0xff]
        %v1542 = vld [vmem:[%s0 + $0x308] sm:$0xff]
        %v1543 = vld [vmem:[%s0 + $0x310] sm:$0xff]
        %v1544 = vld [vmem:[%s0 + $0x318] sm:$0xff]
        %v1545 = vld [vmem:[%s0 + $0x320] sm:$0xff]
        %v1546 = vld [vmem:[%s0 + $0x328] sm:$0xff]
        %v1547 = vld [vmem:[%s0 + $0x330] sm:$0xff]
        %v1548 = vld [vmem:[%s0 + $0x338] sm:$0xff]
        %v1549 = vld [vmem:[%s0 + $0x340] sm:$0xff]
        %v1550 = vld [vmem:[%s0 + $0x348] sm:$0xff]
        %v1551 = vld [vmem:[%s0 + $0x350] sm:$0xff]
        %v1552 = vld [vmem:[%s0 + $0x358] sm:$0xff]
        %v1553 = vld [vmem:[%s0 + $0x360] sm:$0xff]
        %v1554 = vld [vmem:[%s0 + $0x368] sm:$0xff]
        %v1555 = vld [vmem:[%s0 + $0x370] sm:$0xff]
        %v1556 = vld [vmem:[%s0 + $0x378] sm:$0xff]
        %v1557 = vld [vmem:[%s0 + $0x380] sm:$0xff]
        %v1558 = vld [vmem:[%s0 + $0x388] sm:$0xff]
        %v1559 = vld [vmem:[%s0 + $0x390] sm:$0xff]
        %v1560 = vld [vmem:[%s0 + $0x398] sm:$0xff]
        %v1561 = vld [vmem:[%s0 + $0x3a0] sm:$0xff]
        %v1562 = vld [vmem:[%s0 + $0x3a8] sm:$0xff]
        %v1563 = vld [vmem:[%s0 + $0x3b0] sm:$0xff]
        %v1564 = vld [vmem:[%s0 + $0x3b8] sm:$0xff]
        %v1565 = vld [vmem:[%s0 + $0x3c0] sm:$0xff]
        %v1566 = vld [vmem:[%s0 + $0x3c8] sm:$0xff]
        %v1567 = vld [vmem:[%s0 + $0x3d0] sm:$0xff]
        %v1568 = vld [vmem:[%s0 + $0x3d8] sm:$0xff]
        %v1569 = vld [vmem:[%s0 + $0x3e0] sm:$0xff]
        %v1570 = vld [vmem:[%s0 + $0x3e8] sm:$0xff]
        %v1571 = vld [vmem:[%s0 + $0x3f0] sm:$0xff]
        %v1572 = vld [vmem:[%s0 + $0x3f8] sm:$0xff]
        %v1573 = vld [vmem:[%s0 + $0x400] sm:$0xff]
        %v1574 = vld [vmem:[%s0 + $0x408] sm:$0xff]
        %v1575 = vld [vmem:[%s0 + $0x410] sm:$0xff]
        %v1576 = vld [vmem:[%s0 + $0x418] sm:$0xff]
        %v1577 = vld [vmem:[%s0 + $0x420] sm:$0xff]
        %v1578 = vld [vmem:[%s0 + $0x428] sm:$0xff]
        %v1579 = vld [vmem:[%s0 + $0x430] sm:$0xff]
        %v1580 = vld [vmem:[%s0 + $0x438] sm:$0xff]
        %v1581 = vld [vmem:[%s0 + $0x440] sm:$0xff]
        %v1582 = vld [vmem:[%s0 + $0x448] sm:$0xff]
        %v1583 = vld [vmem:[%s0 + $0x450] sm:$0xff]
        %v1584 = vld [vmem:[%s0 + $0x458] sm:$0xff]
        %v1585 = vld [vmem:[%s0 + $0x460] sm:$0xff]
        %v1586 = vld [vmem:[%s0 + $0x468] sm:$0xff]
        %v1587 = vld [vmem:[%s0 + $0x470] sm:$0xff]
        %v1588 = vld [vmem:[%s0 + $0x478] sm:$0xff]
        %v1589 = vld [vmem:[%s0 + $0x480] sm:$0xff]
        %v1590 = vld [vmem:[%s0 + $0x488] sm:$0xff]
        %v1591 = vld [vmem:[%s0 + $0x490] sm:$0xff]
        %v1592 = vld [vmem:[%s0 + $0x498] sm:$0xff]
        %v1593 = vld [vmem:[%s0 + $0x4a0] sm:$0xff]
        %v1594 = vld [vmem:[%s0 + $0x4a8] sm:$0xff]
        %v1595 = vpack.c.bf16 %v1446, %v1445
        %v1596 = vpack.c.bf16 %v1448, %v1447
        %v1597 = vpack.c.bf16 %v1450, %v1449
        %v1598 = vpack.c.bf16 %v1452, %v1451
        %v1599 = vpack.c.bf16 %v1454, %v1453
        %v1600 = vpack.c.bf16 %v1456, %v1455
        %v1601 = vpack.c.bf16 %v1458, %v1457
        %v1602 = vpack.c.bf16 %v1460, %v1459
        %v1603 = vpack.c.bf16 %v1462, %v1461
        %v1604 = vpack.c.bf16 %v1464, %v1463
        %v1605 = vpack.c.bf16 %v1466, %v1465
        %v1606 = vpack.c.bf16 %v1468, %v1467
        %v1607 = vpack.c.bf16 %v1470, %v1469
        %v1608 = vpack.c.bf16 %v1472, %v1471
        %v1609 = vpack.c.bf16 %v1474, %v1473
        %v1610 = vpack.c.bf16 %v1476, %v1475
        %v1611 = vpack.c.bf16 %v1478, %v1477
        %v1612 = vpack.c.bf16 %v1480, %v1479
        %v1613 = vpack.c.bf16 %v1482, %v1481
        %v1614 = vpack.c.bf16 %v1484, %v1483
        %v1615 = vpack.c.bf16 %v1486, %v1485
        %v1616 = vpack.c.bf16 %v1488, %v1487
        %v1617 = vpack.c.bf16 %v1490, %v1489
        %v1618 = vpack.c.bf16 %v1492, %v1491
        %v1619 = vpack.c.bf16 %v1494, %v1493
        %v1620 = vpack.c.bf16 %v1496, %v1495
        %v1621 = vpack.c.bf16 %v1498, %v1497
        %v1622 = vpack.c.bf16 %v1500, %v1499
        %v1623 = vpack.c.bf16 %v1502, %v1501
        %v1624 = vpack.c.bf16 %v1504, %v1503
        %v1625 = vpack.c.bf16 %v1506, %v1505
        %v1626 = vpack.c.bf16 %v1508, %v1507
        %v1627 = vpack.c.bf16 %v1510, %v1509
        %v1628 = vpack.c.bf16 %v1512, %v1511
        %v1629 = vpack.c.bf16 %v1514, %v1513
        %v1630 = vpack.c.bf16 %v1516, %v1515
        %v1631 = vpack.c.bf16 %v1518, %v1517
        %v1632 = vpack.c.bf16 %v1520, %v1519
        %v1633 = vpack.c.bf16 %v1522, %v1521
        %v1634 = vpack.c.bf16 %v1524, %v1523
        %v1635 = vpack.c.bf16 %v1526, %v1525
        %v1636 = vpack.c.bf16 %v1528, %v1527
        %v1637 = vpack.c.bf16 %v1530, %v1529
        %v1638 = vpack.c.bf16 %v1532, %v1531
        %v1639 = vpack.c.bf16 %v1534, %v1533
        %v1640 = vpack.c.bf16 %v1536, %v1535
        %v1641 = vpack.c.bf16 %v1538, %v1537
        %v1642 = vpack.c.bf16 %v1540, %v1539
        %v1643 = vpack.c.bf16 %v1542, %v1541
        %v1644 = vpack.c.bf16 %v1544, %v1543
        %v1645 = vpack.c.bf16 %v1546, %v1545
        %v1646 = vpack.c.bf16 %v1548, %v1547
        %v1647 = vpack.c.bf16 %v1550, %v1549
        %v1648 = vpack.c.bf16 %v1552, %v1551
        %v1649 = vpack.c.bf16 %v1554, %v1553
        %v1650 = vpack.c.bf16 %v1556, %v1555
        %v1651 = vpack.c.bf16 %v1558, %v1557
        %v1652 = vpack.c.bf16 %v1560, %v1559
        %v1653 = vpack.c.bf16 %v1562, %v1561
        %v1654 = vpack.c.bf16 %v1564, %v1563
        %v1655 = vpack.c.bf16 %v1566, %v1565
        %v1656 = vpack.c.bf16 %v1568, %v1567
        %v1657 = vpack.c.bf16 %v1570, %v1569
        %v1658 = vpack.c.bf16 %v1572, %v1571
        %v1659 = vpack.c.bf16 %v1574, %v1573
        %v1660 = vpack.c.bf16 %v1576, %v1575
        %v1661 = vpack.c.bf16 %v1578, %v1577
        %v1662 = vpack.c.bf16 %v1580, %v1579
        %v1663 = vpack.c.bf16 %v1582, %v1581
        %v1664 = vpack.c.bf16 %v1584, %v1583
        %v1665 = vpack.c.bf16 %v1586, %v1585
        %v1666 = vpack.c.bf16 %v1588, %v1587
        %v1667 = vpack.c.bf16 %v1590, %v1589
        %v1668 = vpack.c.bf16 %v1592, %v1591
        %v1669 = vpack.c.bf16 %v1594, %v1593
        %vm1670 = vcmask 392192
        %v1672 = vsel %vm1670, %v1234, 0
        %v1675 = vsel %vm1670, %v1244, 0
        %v1678 = vsel %vm1670, %v1254, 0
        %v1681 = vsel %vm1670, %v1264, 0
        %v1684 = vsel %vm1670, %v1274, 0
        %v1687 = vsel %vm1670, %v1284, 0
        %v1690 = vsel %vm1670, %v1294, 0
        %v1693 = vsel %vm1670, %v1304, 0
        %v1696 = vsel %vm1670, %v1314, 0
        %v1699 = vsel %vm1670, %v1324, 0
        %v1702 = vsel %vm1670, %v1334, 0
        %v1705 = vsel %vm1670, %v1344, 0
        %v1708 = vsel %vm1670, %v1354, 0
        %v1711 = vsel %vm1670, %v1364, 0
        %v1714 = vsel %vm1670, %v1374, 0
        %v1717 = vsel %vm1670, %v1384, 0
        %v1720 = vsel %vm1670, %v1394, 0
        %v1723 = vsel %vm1670, %v1404, 0
        %v1726 = vsel %vm1670, %v1414, 0
        %v1729 = vsel %vm1670, %v1424, 0
        %v1732 = vsel %vm1670, %v1434, 0
        %v1735 = vsel %vm1670, %v1444, 0
        %1737 = vmatprep.subr.bf16.mxu0 0
        %1738 = vmatpush1.bf16.msra.mxu0 %v1595
        %1739 = vmatprep.subr.bf16.mxu0 0
        %1740 = vmatpush1.bf16.msra.mxu0 %v1596
        %1741 = vmatprep.subr.bf16.mxu0 0
        %1742 = vmatpush1.bf16.msra.mxu0 %v1597
        %1743 = vmatprep.subr.bf16.mxu0 0
        %1744 = vmatpush1.bf16.msra.mxu0 %v1598
        %1745 = vmatprep.subr.bf16.mxu0 0
        %1746 = vmatpush1.bf16.msra.mxu0 %v1599
        %1747 = vmatprep.subr.bf16.mxu0 0
        %1748 = vmatpush1.bf16.msra.mxu0 %v1600
        %1749 = vmatprep.subr.bf16.mxu0 0
        %1750 = vmatpush1.bf16.msra.mxu0 %v1601
        %1751 = vmatprep.subr.bf16.mxu0 0
        %1752 = vmatpush1.bf16.msra.mxu0 %v1602
        %1753 = vmatprep.subr.bf16.mxu0 0
        %1754 = vmatpush1.bf16.msra.mxu0 %v1603
        %1755 = vmatprep.subr.bf16.mxu0 0
        %1756 = vmatpush1.bf16.msra.mxu0 %v1604
        %1757 = vmatprep.subr.bf16.mxu0 0
        %1758 = vmatpush1.bf16.msra.mxu0 %v1605
        %1759 = vmatprep.subr.bf16.mxu0 0
        %1760 = vmatpush1.bf16.msra.mxu0 %v1606
        %1761 = vmatprep.subr.bf16.mxu0 0
        %1762 = vmatpush1.bf16.msra.mxu0 %v1607
        %1763 = vmatprep.subr.bf16.mxu0 0
        %1764 = vmatpush1.bf16.msra.mxu0 %v1608
        %1765 = vmatprep.subr.bf16.mxu0 0
        %1766 = vmatpush1.bf16.msra.mxu0 %v1609
        %1767 = vmatprep.subr.bf16.mxu0 0
        %1768 = vmatpush1.bf16.msra.mxu0 %v1610
        %1769 = vmatprep.mubr.bf16.mxu0 %v1226
        %1770 = vmatmul.mubr.bf16.gmra.mrb[0].mxu0 %v1225
        %v1771 = vpop.f32.mrb[0].mxu0
        %v1772 = vadd.f32 0.0, %v1771
        %v1773 = vpop.f32.mrb[0].mxu0
        %v1774 = vpop.f32.mrb[0].mxu0
        %v1775 = vadd.f32 0.0, %v1774
        %v1776 = vpop.f32.mrb[0].mxu0
        %1777 = vmatprep.mubr.bf16.mxu0 %v1236
        %1778 = vmatmul.mubr.bf16.gmra.mrb[0].mxu0 %v1235
        %v1779 = vpop.f32.mrb[0].mxu0
        %v1780 = vadd.f32 0.0, %v1779
        %v1781 = vpop.f32.mrb[0].mxu0
        %v1782 = vpop.f32.mrb[0].mxu0
        %v1783 = vadd.f32 0.0, %v1782
        %v1784 = vpop.f32.mrb[0].mxu0
        %1785 = vmatprep.mubr.bf16.mxu0 %v1246
        %1786 = vmatmul.mubr.bf16.gmra.mrb[0].mxu0 %v1245
        %v1787 = vpop.f32.mrb[0].mxu0
        %v1788 = vadd.f32 0.0, %v1787
        %v1789 = vpop.f32.mrb[0].mxu0
        %v1790 = vpop.f32.mrb[0].mxu0
        %v1791 = vadd.f32 0.0, %v1790
        %v1792 = vpop.f32.mrb[0].mxu0
        %1793 = vmatprep.mubr.bf16.mxu0 %v1256
        %1794 = vmatmul.mubr.bf16.gmra.mrb[0].mxu0 %v1255
        %v1795 = vpop.f32.mrb[0].mxu0
        %v1796 = vadd.f32 0.0, %v1795
        %v1797 = vpop.f32.mrb[0].mxu0
        %v1798 = vpop.f32.mrb[0].mxu0
        %v1799 = vadd.f32 0.0, %v1798
        %v1800 = vpop.f32.mrb[0].mxu0
        %1801 = vmatprep.mubr.bf16.mxu0 %v1266
        %1802 = vmatmul.mubr.bf16.gmra.mrb[0].mxu0 %v1265
        %v1803 = vpop.f32.mrb[0].mxu0
        %v1804 = vadd.f32 0.0, %v1803
        %v1805 = vpop.f32.mrb[0].mxu0
        %v1806 = vpop.f32.mrb[0].mxu0
        %v1807 = vadd.f32 0.0, %v1806
        %v1808 = vpop.f32.mrb[0].mxu0
        %1809 = vmatprep.mubr.bf16.mxu0 %v1276
        %1810 = vmatmul.mubr.bf16.gmra.mrb[0].mxu0 %v1275
        %v1811 = vpop.f32.mrb[0].mxu0
        %v1812 = vadd.f32 0.0, %v1811
        %v1813 = vpop.f32.mrb[0].mxu0
        %v1814 = vpop.f32.mrb[0].mxu0
        %v1815 = vadd.f32 0.0, %v1814
        %v1816 = vpop.f32.mrb[0].mxu0
        %1817 = vmatprep.mubr.bf16.mxu0 %v1286
        %1818 = vmatmul.mubr.bf16.gmra.mrb[0].mxu0 %v1285
        %v1819 = vpop.f32.mrb[0].mxu0
        %v1820 = vadd.f32 0.0, %v1819
        %v1821 = vpop.f32.mrb[0].mxu0
        %v1822 = vpop.f32.mrb[0].mxu0
        %v1823 = vadd.f32 0.0, %v1822
        %v1824 = vpop.f32.mrb[0].mxu0
        %1825 = vmatprep.mubr.bf16.mxu0 %v1296
        %1826 = vmatmul.mubr.bf16.gmra.mrb[0].mxu0 %v1295
        %v1827 = vpop.f32.mrb[0].mxu0
        %v1828 = vadd.f32 0.0, %v1827
        %v1829 = vpop.f32.mrb[0].mxu0
        %v1830 = vpop.f32.mrb[0].mxu0
        %v1831 = vadd.f32 0.0, %v1830
        %v1832 = vpop.f32.mrb[0].mxu0
        %1833 = vmatprep.mubr.bf16.mxu0 %v1306
        %1834 = vmatmul.mubr.bf16.gmra.mrb[0].mxu0 %v1305
        %v1835 = vpop.f32.mrb[0].mxu0
        %v1836 = vadd.f32 0.0, %v1835
        %v1837 = vpop.f32.mrb[0].mxu0
        %v1838 = vpop.f32.mrb[0].mxu0
        %v1839 = vadd.f32 0.0, %v1838
        %v1840 = vpop.f32.mrb[0].mxu0
        %1841 = vmatprep.mubr.bf16.mxu0 %v1316
        %1842 = vmatmul.mubr.bf16.gmra.mrb[0].mxu0 %v1315
        %v1843 = vpop.f32.mrb[0].mxu0
        %v1844 = vadd.f32 0.0, %v1843
        %v1845 = vpop.f32.mrb[0].mxu0
        %v1846 = vpop.f32.mrb[0].mxu0
        %v1847 = vadd.f32 0.0, %v1846
        %v1848 = vpop.f32.mrb[0].mxu0
        %1849 = vmatprep.mubr.bf16.mxu0 %v1326
        %1850 = vmatmul.mubr.bf16.gmra.mrb[0].mxu0 %v1325
        %v1851 = vpop.f32.mrb[0].mxu0
        %v1852 = vadd.f32 0.0, %v1851
        %v1853 = vpop.f32.mrb[0].mxu0
        %v1854 = vpop.f32.mrb[0].mxu0
        %v1855 = vadd.f32 0.0, %v1854
        %v1856 = vpop.f32.mrb[0].mxu0
        %1857 = vmatprep.mubr.bf16.mxu0 %v1336
        %1858 = vmatmul.mubr.bf16.gmra.mrb[0].mxu0 %v1335
        %v1859 = vpop.f32.mrb[0].mxu0
        %v1860 = vadd.f32 0.0, %v1859
        %v1861 = vpop.f32.mrb[0].mxu0
        %v1862 = vpop.f32.mrb[0].mxu0
        %v1863 = vadd.f32 0.0, %v1862
        %v1864 = vpop.f32.mrb[0].mxu0
        %1865 = vmatprep.mubr.bf16.mxu0 %v1346
        %1866 = vmatmul.mubr.bf16.gmra.mrb[0].mxu0 %v1345
        %v1867 = vpop.f32.mrb[0].mxu0
        %v1868 = vadd.f32 0.0, %v1867
        %v1869 = vpop.f32.mrb[0].mxu0
        %v1870 = vpop.f32.mrb[0].mxu0
        %v1871 = vadd.f32 0.0, %v1870
        %v1872 = vpop.f32.mrb[0].mxu0
        %1873 = vmatprep.mubr.bf16.mxu0 %v1356
        %1874 = vmatmul.mubr.bf16.gmra.mrb[0].mxu0 %v1355
        %v1875 = vpop.f32.mrb[0].mxu0
        %v1876 = vadd.f32 0.0, %v1875
        %v1877 = vpop.f32.mrb[0].mxu0
        %v1878 = vpop.f32.mrb[0].mxu0
        %v1879 = vadd.f32 0.0, %v1878
        %v1880 = vpop.f32.mrb[0].mxu0
        %1881 = vmatprep.mubr.bf16.mxu0 %v1366
        %1882 = vmatmul.mubr.bf16.gmra.mrb[0].mxu0 %v1365
        %v1883 = vpop.f32.mrb[0].mxu0
        %v1884 = vadd.f32 0.0, %v1883
        %v1885 = vpop.f32.mrb[0].mxu0
        %v1886 = vpop.f32.mrb[0].mxu0
        %v1887 = vadd.f32 0.0, %v1886
        %v1888 = vpop.f32.mrb[0].mxu0
        %1889 = vmatprep.mubr.bf16.mxu0 %v1376
        %1890 = vmatmul.mubr.bf16.gmra.mrb[0].mxu0 %v1375
        %v1891 = vpop.f32.mrb[0].mxu0
        %v1892 = vadd.f32 0.0, %v1891
        %v1893 = vpop.f32.mrb[0].mxu0
        %v1894 = vpop.f32.mrb[0].mxu0
        %v1895 = vadd.f32 0.0, %v1894
        %v1896 = vpop.f32.mrb[0].mxu0
        %1897 = vmatprep.mubr.bf16.mxu0 %v1386
        %1898 = vmatmul.mubr.bf16.gmra.mrb[0].mxu0 %v1385
        %v1899 = vpop.f32.mrb[0].mxu0
        %v1900 = vadd.f32 0.0, %v1899
        %v1901 = vpop.f32.mrb[0].mxu0
        %v1902 = vpop.f32.mrb[0].mxu0
        %v1903 = vadd.f32 0.0, %v1902
        %v1904 = vpop.f32.mrb[0].mxu0
        %1905 = vmatprep.mubr.bf16.mxu0 %v1396
        %1906 = vmatmul.mubr.bf16.gmra.mrb[0].mxu0 %v1395
        %v1907 = vpop.f32.mrb[0].mxu0
        %v1908 = vadd.f32 0.0, %v1907
        %v1909 = vpop.f32.mrb[0].mxu0
        %v1910 = vpop.f32.mrb[0].mxu0
        %v1911 = vadd.f32 0.0, %v1910
        %v1912 = vpop.f32.mrb[0].mxu0
        %1913 = vmatprep.mubr.bf16.mxu0 %v1406
        %1914 = vmatmul.mubr.bf16.gmra.mrb[0].mxu0 %v1405
        %v1915 = vpop.f32.mrb[0].mxu0
        %v1916 = vadd.f32 0.0, %v1915
        %v1917 = vpop.f32.mrb[0].mxu0
        %v1918 = vpop.f32.mrb[0].mxu0
        %v1919 = vadd.f32 0.0, %v1918
        %v1920 = vpop.f32.mrb[0].mxu0
        %1921 = vmatprep.mubr.bf16.mxu0 %v1416
        %1922 = vmatmul.mubr.bf16.gmra.mrb[0].mxu0 %v1415
        %v1923 = vpop.f32.mrb[0].mxu0
        %v1924 = vadd.f32 0.0, %v1923
        %v1925 = vpop.f32.mrb[0].mxu0
        %v1926 = vpop.f32.mrb[0].mxu0
        %v1927 = vadd.f32 0.0, %v1926
        %v1928 = vpop.f32.mrb[0].mxu0
        %1929 = vmatprep.mubr.bf16.mxu0 %v1426
        %1930 = vmatmul.mubr.bf16.gmra.mrb[0].mxu0 %v1425
        %v1931 = vpop.f32.mrb[0].mxu0
        %v1932 = vadd.f32 0.0, %v1931
        %v1933 = vpop.f32.mrb[0].mxu0
        %v1934 = vpop.f32.mrb[0].mxu0
        %v1935 = vadd.f32 0.0, %v1934
        %v1936 = vpop.f32.mrb[0].mxu0
        %1937 = vmatprep.mubr.bf16.mxu0 %v1436
        %1938 = vmatmul.mubr.bf16.gmra.mrb[0].mxu0 %v1435
        %v1939 = vpop.f32.mrb[0].mxu0
        %v1940 = vadd.f32 0.0, %v1939
        %v1941 = vpop.f32.mrb[0].mxu0
        %v1942 = vpop.f32.mrb[0].mxu0
        %v1943 = vpop.f32.mrb[0].mxu0
        %1944 = vdwg.mxu0
        %1945 = vmatprep.subr.bf16.mxu0 0
        %1946 = vmatpush1.bf16.msra.mxu0 %v1611
        %1947 = vmatprep.subr.bf16.mxu0 0
        %1948 = vmatpush1.bf16.msra.mxu0 %v1612
        %1949 = vmatprep.subr.bf16.mxu0 0
        %1950 = vmatpush1.bf16.msra.mxu0 %v1613
        %1951 = vmatprep.subr.bf16.mxu0 0
        %1952 = vmatpush1.bf16.msra.mxu0 %v1614
        %1953 = vmatprep.subr.bf16.mxu0 0
        %1954 = vmatpush1.bf16.msra.mxu0 %v1615
        %1955 = vmatprep.subr.bf16.mxu0 0
        %1956 = vmatpush1.bf16.msra.mxu0 %v1616
        %1957 = vmatprep.subr.bf16.mxu0 0
        %1958 = vmatpush1.bf16.msra.mxu0 %v1617
        %1959 = vmatprep.subr.bf16.mxu0 0
        %1960 = vmatpush1.bf16.msra.mxu0 %v1618
        %1961 = vmatprep.subr.bf16.mxu0 0
        %1962 = vmatpush1.bf16.msra.mxu0 %v1619
        %1963 = vmatprep.subr.bf16.mxu0 0
        %1964 = vmatpush1.bf16.msra.mxu0 %v1620
        %1965 = vmatprep.subr.bf16.mxu0 0
        %1966 = vmatpush1.bf16.msra.mxu0 %v1621
        %1967 = vmatprep.subr.bf16.mxu0 0
        %1968 = vmatpush1.bf16.msra.mxu0 %v1622
        %1969 = vmatprep.subr.bf16.mxu0 0
        %1970 = vmatpush1.bf16.msra.mxu0 %v1623
        %1971 = vmatprep.subr.bf16.mxu0 0
        %1972 = vmatpush1.bf16.msra.mxu0 %v1624
        %1973 = vmatprep.subr.bf16.mxu0 0
        %1974 = vmatpush1.bf16.msra.mxu0 %v1625
        %1975 = vmatprep.subr.bf16.mxu0 0
        %1976 = vmatpush1.bf16.msra.mxu0 %v1626
        %1977 = vmatprep.mubr.bf16.mxu0 %v1228
        %1978 = vmatmul.mubr.bf16.gmra.mrb[0].mxu0 %v1227
        %v1979 = vpop.f32.mrb[0].mxu0
        %v1980 = vadd.f32 %v1772, %v1979
        %v1981 = vpop.f32.mrb[0].mxu0
        %v1982 = vpop.f32.mrb[0].mxu0
        %v1983 = vadd.f32 %v1775, %v1982
        %v1984 = vpop.f32.mrb[0].mxu0
        %1985 = vmatprep.mubr.bf16.mxu0 %v1238
        %1986 = vmatmul.mubr.bf16.gmra.mrb[0].mxu0 %v1237
        %v1987 = vpop.f32.mrb[0].mxu0
        %v1988 = vadd.f32 %v1780, %v1987
        %v1989 = vpop.f32.mrb[0].mxu0
        %v1990 = vpop.f32.mrb[0].mxu0
        %v1991 = vadd.f32 %v1783, %v1990
        %v1992 = vpop.f32.mrb[0].mxu0
        %1993 = vmatprep.mubr.bf16.mxu0 %v1248
        %1994 = vmatmul.mubr.bf16.gmra.mrb[0].mxu0 %v1247
        %v1995 = vpop.f32.mrb[0].mxu0
        %v1996 = vadd.f32 %v1788, %v1995
        %v1997 = vpop.f32.mrb[0].mxu0
        %v1998 = vpop.f32.mrb[0].mxu0
        %v1999 = vadd.f32 %v1791, %v1998
        %v2000 = vpop.f32.mrb[0].mxu0
        %2001 = vmatprep.mubr.bf16.mxu0 %v1258
        %2002 = vmatmul.mubr.bf16.gmra.mrb[0].mxu0 %v1257
        %v2003 = vpop.f32.mrb[0].mxu0
        %v2004 = vadd.f32 %v1796, %v2003
        %v2005 = vpop.f32.mrb[0].mxu0
        %v2006 = vpop.f32.mrb[0].mxu0
        %v2007 = vadd.f32 %v1799, %v2006
        %v2008 = vpop.f32.mrb[0].mxu0
        %2009 = vmatprep.mubr.bf16.mxu0 %v1268
        %2010 = vmatmul.mubr.bf16.gmra.mrb[0].mxu0 %v1267
        %v2011 = vpop.f32.mrb[0].mxu0
        %v2012 = vadd.f32 %v1804, %v2011
        %v2013 = vpop.f32.mrb[0].mxu0
        %v2014 = vpop.f32.mrb[0].mxu0
        %v2015 = vadd.f32 %v1807, %v2014
        %v2016 = vpop.f32.mrb[0].mxu0
        %2017 = vmatprep.mubr.bf16.mxu0 %v1278
        %2018 = vmatmul.mubr.bf16.gmra.mrb[0].mxu0 %v1277
        %v2019 = vpop.f32.mrb[0].mxu0
        %v2020 = vadd.f32 %v1812, %v2019
        %v2021 = vpop.f32.mrb[0].mxu0
        %v2022 = vpop.f32.mrb[0].mxu0
        %v2023 = vadd.f32 %v1815, %v2022
        %v2024 = vpop.f32.mrb[0].mxu0
        %2025 = vmatprep.mubr.bf16.mxu0 %v1288
        %2026 = vmatmul.mubr.bf16.gmra.mrb[0].mxu0 %v1287
        %v2027 = vpop.f32.mrb[0].mxu0
        %v2028 = vadd.f32 %v1820, %v2027
        %v2029 = vpop.f32.mrb[0].mxu0
        %v2030 = vpop.f32.mrb[0].mxu0
        %v2031 = vadd.f32 %v1823, %v2030
        %v2032 = vpop.f32.mrb[0].mxu0
        %2033 = vmatprep.mubr.bf16.mxu0 %v1298
        %2034 = vmatmul.mubr.bf16.gmra.mrb[0].mxu0 %v1297
        %v2035 = vpop.f32.mrb[0].mxu0
        %v2036 = vadd.f32 %v1828, %v2035
        %v2037 = vpop.f32.mrb[0].mxu0
        %v2038 = vpop.f32.mrb[0].mxu0
        %v2039 = vadd.f32 %v1831, %v2038
        %v2040 = vpop.f32.mrb[0].mxu0
        %2041 = vmatprep.mubr.bf16.mxu0 %v1308
        %2042 = vmatmul.mubr.bf16.gmra.mrb[0].mxu0 %v1307
        %v2043 = vpop.f32.mrb[0].mxu0
        %v2044 = vadd.f32 %v1836, %v2043
        %v2045 = vpop.f32.mrb[0].mxu0
        %v2046 = vpop.f32.mrb[0].mxu0
        %v2047 = vadd.f32 %v1839, %v2046
        %v2048 = vpop.f32.mrb[0].mxu0
        %2049 = vmatprep.mubr.bf16.mxu0 %v1318
        %2050 = vmatmul.mubr.bf16.gmra.mrb[0].mxu0 %v1317
        %v2051 = vpop.f32.mrb[0].mxu0
        %v2052 = vadd.f32 %v1844, %v2051
        %v2053 = vpop.f32.mrb[0].mxu0
        %v2054 = vpop.f32.mrb[0].mxu0
        %v2055 = vadd.f32 %v1847, %v2054
        %v2056 = vpop.f32.mrb[0].mxu0
        %2057 = vmatprep.mubr.bf16.mxu0 %v1328
        %2058 = vmatmul.mubr.bf16.gmra.mrb[0].mxu0 %v1327
        %v2059 = vpop.f32.mrb[0].mxu0
        %v2060 = vadd.f32 %v1852, %v2059
        %v2061 = vpop.f32.mrb[0].mxu0
        %v2062 = vpop.f32.mrb[0].mxu0
        %v2063 = vadd.f32 %v1855, %v2062
        %v2064 = vpop.f32.mrb[0].mxu0
        %2065 = vmatprep.mubr.bf16.mxu0 %v1338
        %2066 = vmatmul.mubr.bf16.gmra.mrb[0].mxu0 %v1337
        %v2067 = vpop.f32.mrb[0].mxu0
        %v2068 = vadd.f32 %v1860, %v2067
        %v2069 = vpop.f32.mrb[0].mxu0
        %v2070 = vpop.f32.mrb[0].mxu0
        %v2071 = vadd.f32 %v1863, %v2070
        %v2072 = vpop.f32.mrb[0].mxu0
        %2073 = vmatprep.mubr.bf16.mxu0 %v1348
        %2074 = vmatmul.mubr.bf16.gmra.mrb[0].mxu0 %v1347
        %v2075 = vpop.f32.mrb[0].mxu0
        %v2076 = vadd.f32 %v1868, %v2075
        %v2077 = vpop.f32.mrb[0].mxu0
        %v2078 = vpop.f32.mrb[0].mxu0
        %v2079 = vadd.f32 %v1871, %v2078
        %v2080 = vpop.f32.mrb[0].mxu0
        %2081 = vmatprep.mubr.bf16.mxu0 %v1358
        %2082 = vmatmul.mubr.bf16.gmra.mrb[0].mxu0 %v1357
        %v2083 = vpop.f32.mrb[0].mxu0
        %v2084 = vadd.f32 %v1876, %v2083
        %v2085 = vpop.f32.mrb[0].mxu0
        %v2086 = vpop.f32.mrb[0].mxu0
        %v2087 = vadd.f32 %v1879, %v2086
        %v2088 = vpop.f32.mrb[0].mxu0
        %2089 = vmatprep.mubr.bf16.mxu0 %v1368
        %2090 = vmatmul.mubr.bf16.gmra.mrb[0].mxu0 %v1367
        %v2091 = vpop.f32.mrb[0].mxu0
        %v2092 = vadd.f32 %v1884, %v2091
        %v2093 = vpop.f32.mrb[0].mxu0
        %v2094 = vpop.f32.mrb[0].mxu0
        %v2095 = vadd.f32 %v1887, %v2094
        %v2096 = vpop.f32.mrb[0].mxu0
        %2097 = vmatprep.mubr.bf16.mxu0 %v1378
        %2098 = vmatmul.mubr.bf16.gmra.mrb[0].mxu0 %v1377
        %v2099 = vpop.f32.mrb[0].mxu0
        %v2100 = vadd.f32 %v1892, %v2099
        %v2101 = vpop.f32.mrb[0].mxu0
        %v2102 = vpop.f32.mrb[0].mxu0
        %v2103 = vadd.f32 %v1895, %v2102
        %v2104 = vpop.f32.mrb[0].mxu0
        %2105 = vmatprep.mubr.bf16.mxu0 %v1388
        %2106 = vmatmul.mubr.bf16.gmra.mrb[0].mxu0 %v1387
        %v2107 = vpop.f32.mrb[0].mxu0
        %v2108 = vadd.f32 %v1900, %v2107
        %v2109 = vpop.f32.mrb[0].mxu0
        %v2110 = vpop.f32.mrb[0].mxu0
        %v2111 = vadd.f32 %v1903, %v2110
        %v2112 = vpop.f32.mrb[0].mxu0
        %2113 = vmatprep.mubr.bf16.mxu0 %v1398
        %2114 = vmatmul.mubr.bf16.gmra.mrb[0].mxu0 %v1397
        %v2115 = vpop.f32.mrb[0].mxu0
        %v2116 = vadd.f32 %v1908, %v2115
        %v2117 = vpop.f32.mrb[0].mxu0
        %v2118 = vpop.f32.mrb[0].mxu0
        %v2119 = vadd.f32 %v1911, %v2118
        %v2120 = vpop.f32.mrb[0].mxu0
        %2121 = vmatprep.mubr.bf16.mxu0 %v1408
        %2122 = vmatmul.mubr.bf16.gmra.mrb[0].mxu0 %v1407
        %v2123 = vpop.f32.mrb[0].mxu0
        %v2124 = vadd.f32 %v1916, %v2123
        %v2125 = vpop.f32.mrb[0].mxu0
        %v2126 = vpop.f32.mrb[0].mxu0
        %v2127 = vadd.f32 %v1919, %v2126
        %v2128 = vpop.f32.mrb[0].mxu0
        %2129 = vmatprep.mubr.bf16.mxu0 %v1418
        %2130 = vmatmul.mubr.bf16.gmra.mrb[0].mxu0 %v1417
        %v2131 = vpop.f32.mrb[0].mxu0
        %v2132 = vadd.f32 %v1924, %v2131
        %v2133 = vpop.f32.mrb[0].mxu0
        %v2134 = vpop.f32.mrb[0].mxu0
        %v2135 = vadd.f32 %v1927, %v2134
        %v2136 = vpop.f32.mrb[0].mxu0
        %2137 = vmatprep.mubr.bf16.mxu0 %v1428
        %2138 = vmatmul.mubr.bf16.gmra.mrb[0].mxu0 %v1427
        %v2139 = vpop.f32.mrb[0].mxu0
        %v2140 = vadd.f32 %v1932, %v2139
        %v2141 = vpop.f32.mrb[0].mxu0
        %v2142 = vpop.f32.mrb[0].mxu0
        %v2143 = vadd.f32 %v1935, %v2142
        %v2144 = vpop.f32.mrb[0].mxu0
        %2145 = vmatprep.mubr.bf16.mxu0 %v1438
        %2146 = vmatmul.mubr.bf16.gmra.mrb[0].mxu0 %v1437
        %v2147 = vpop.f32.mrb[0].mxu0
        %v2148 = vadd.f32 %v1940, %v2147
        %v2149 = vpop.f32.mrb[0].mxu0
        %v2150 = vpop.f32.mrb[0].mxu0
        %v2151 = vpop.f32.mrb[0].mxu0
        %2152 = vdwg.mxu0
        %2153 = vmatprep.subr.bf16.mxu0 0
        %2154 = vmatpush1.bf16.msra.mxu0 %v1627
        %2155 = vmatprep.subr.bf16.mxu0 0
        %2156 = vmatpush1.bf16.msra.mxu0 %v1628
        %2157 = vmatprep.subr.bf16.mxu0 0
        %2158 = vmatpush1.bf16.msra.mxu0 %v1629
        %2159 = vmatprep.subr.bf16.mxu0 0
        %2160 = vmatpush1.bf16.msra.mxu0 %v1630
        %2161 = vmatprep.subr.bf16.mxu0 0
        %2162 = vmatpush1.bf16.msra.mxu0 %v1631
        %2163 = vmatprep.subr.bf16.mxu0 0
        %2164 = vmatpush1.bf16.msra.mxu0 %v1632
        %2165 = vmatprep.subr.bf16.mxu0 0
        %2166 = vmatpush1.bf16.msra.mxu0 %v1633
        %2167 = vmatprep.subr.bf16.mxu0 0
        %2168 = vmatpush1.bf16.msra.mxu0 %v1634
        %2169 = vmatprep.subr.bf16.mxu0 0
        %2170 = vmatpush1.bf16.msra.mxu0 %v1635
        %2171 = vmatprep.subr.bf16.mxu0 0
        %2172 = vmatpush1.bf16.msra.mxu0 %v1636
        %2173 = vmatprep.subr.bf16.mxu0 0
        %2174 = vmatpush1.bf16.msra.mxu0 %v1637
        %2175 = vmatprep.subr.bf16.mxu0 0
        %2176 = vmatpush1.bf16.msra.mxu0 %v1638
        %2177 = vmatprep.subr.bf16.mxu0 0
        %2178 = vmatpush1.bf16.msra.mxu0 %v1639
        %2179 = vmatprep.subr.bf16.mxu0 0
        %2180 = vmatpush1.bf16.msra.mxu0 %v1640
        %2181 = vmatprep.subr.bf16.mxu0 0
        %2182 = vmatpush1.bf16.msra.mxu0 %v1641
        %2183 = vmatprep.subr.bf16.mxu0 0
        %2184 = vmatpush1.bf16.msra.mxu0 %v1642
        %2185 = vmatprep.mubr.bf16.mxu0 %v1230
        %2186 = vmatmul.mubr.bf16.gmra.mrb[0].mxu0 %v1229
        %v2187 = vpop.f32.mrb[0].mxu0
        %v2188 = vadd.f32 %v1980, %v2187
        %v2189 = vpop.f32.mrb[0].mxu0
        %v2190 = vpop.f32.mrb[0].mxu0
        %v2191 = vadd.f32 %v1983, %v2190
        %v2192 = vpop.f32.mrb[0].mxu0
        %2193 = vmatprep.mubr.bf16.mxu0 %v1240
        %2194 = vmatmul.mubr.bf16.gmra.mrb[0].mxu0 %v1239
        %v2195 = vpop.f32.mrb[0].mxu0
        %v2196 = vadd.f32 %v1988, %v2195
        %v2197 = vpop.f32.mrb[0].mxu0
        %v2198 = vpop.f32.mrb[0].mxu0
        %v2199 = vadd.f32 %v1991, %v2198
        %v2200 = vpop.f32.mrb[0].mxu0
        %2201 = vmatprep.mubr.bf16.mxu0 %v1250
        %2202 = vmatmul.mubr.bf16.gmra.mrb[0].mxu0 %v1249
        %v2203 = vpop.f32.mrb[0].mxu0
        %v2204 = vadd.f32 %v1996, %v2203
        %v2205 = vpop.f32.mrb[0].mxu0
        %v2206 = vpop.f32.mrb[0].mxu0
        %v2207 = vadd.f32 %v1999, %v2206
        %v2208 = vpop.f32.mrb[0].mxu0
        %2209 = vmatprep.mubr.bf16.mxu0 %v1260
        %2210 = vmatmul.mubr.bf16.gmra.mrb[0].mxu0 %v1259
        %v2211 = vpop.f32.mrb[0].mxu0
        %v2212 = vadd.f32 %v2004, %v2211
        %v2213 = vpop.f32.mrb[0].mxu0
        %v2214 = vpop.f32.mrb[0].mxu0
        %v2215 = vadd.f32 %v2007, %v2214
        %v2216 = vpop.f32.mrb[0].mxu0
        %2217 = vmatprep.mubr.bf16.mxu0 %v1270
        %2218 = vmatmul.mubr.bf16.gmra.mrb[0].mxu0 %v1269
        %v2219 = vpop.f32.mrb[0].mxu0
        %v2220 = vadd.f32 %v2012, %v2219
        %v2221 = vpop.f32.mrb[0].mxu0
        %v2222 = vpop.f32.mrb[0].mxu0
        %v2223 = vadd.f32 %v2015, %v2222
        %v2224 = vpop.f32.mrb[0].mxu0
        %2225 = vmatprep.mubr.bf16.mxu0 %v1280
        %2226 = vmatmul.mubr.bf16.gmra.mrb[0].mxu0 %v1279
        %v2227 = vpop.f32.mrb[0].mxu0
        %v2228 = vadd.f32 %v2020, %v2227
        %v2229 = vpop.f32.mrb[0].mxu0
        %v2230 = vpop.f32.mrb[0].mxu0
        %v2231 = vadd.f32 %v2023, %v2230
        %v2232 = vpop.f32.mrb[0].mxu0
        %2233 = vmatprep.mubr.bf16.mxu0 %v1290
        %2234 = vmatmul.mubr.bf16.gmra.mrb[0].mxu0 %v1289
        %v2235 = vpop.f32.mrb[0].mxu0
        %v2236 = vadd.f32 %v2028, %v2235
        %v2237 = vpop.f32.mrb[0].mxu0
        %v2238 = vpop.f32.mrb[0].mxu0
        %v2239 = vadd.f32 %v2031, %v2238
        %v2240 = vpop.f32.mrb[0].mxu0
        %2241 = vmatprep.mubr.bf16.mxu0 %v1300
        %2242 = vmatmul.mubr.bf16.gmra.mrb[0].mxu0 %v1299
        %v2243 = vpop.f32.mrb[0].mxu0
        %v2244 = vadd.f32 %v2036, %v2243
        %v2245 = vpop.f32.mrb[0].mxu0
        %v2246 = vpop.f32.mrb[0].mxu0
        %v2247 = vadd.f32 %v2039, %v2246
        %v2248 = vpop.f32.mrb[0].mxu0
        %2249 = vmatprep.mubr.bf16.mxu0 %v1310
        %2250 = vmatmul.mubr.bf16.gmra.mrb[0].mxu0 %v1309
        %v2251 = vpop.f32.mrb[0].mxu0
        %v2252 = vadd.f32 %v2044, %v2251
        %v2253 = vpop.f32.mrb[0].mxu0
        %v2254 = vpop.f32.mrb[0].mxu0
        %v2255 = vadd.f32 %v2047, %v2254
        %v2256 = vpop.f32.mrb[0].mxu0
        %2257 = vmatprep.mubr.bf16.mxu0 %v1320
        %2258 = vmatmul.mubr.bf16.gmra.mrb[0].mxu0 %v1319
        %v2259 = vpop.f32.mrb[0].mxu0
        %v2260 = vadd.f32 %v2052, %v2259
        %v2261 = vpop.f32.mrb[0].mxu0
        %v2262 = vpop.f32.mrb[0].mxu0
        %v2263 = vadd.f32 %v2055, %v2262
        %v2264 = vpop.f32.mrb[0].mxu0
        %2265 = vmatprep.mubr.bf16.mxu0 %v1330
        %2266 = vmatmul.mubr.bf16.gmra.mrb[0].mxu0 %v1329
        %v2267 = vpop.f32.mrb[0].mxu0
        %v2268 = vadd.f32 %v2060, %v2267
        %v2269 = vpop.f32.mrb[0].mxu0
        %v2270 = vpop.f32.mrb[0].mxu0
        %v2271 = vadd.f32 %v2063, %v2270
        %v2272 = vpop.f32.mrb[0].mxu0
        %2273 = vmatprep.mubr.bf16.mxu0 %v1340
        %2274 = vmatmul.mubr.bf16.gmra.mrb[0].mxu0 %v1339
        %v2275 = vpop.f32.mrb[0].mxu0
        %v2276 = vadd.f32 %v2068, %v2275
        %v2277 = vpop.f32.mrb[0].mxu0
        %v2278 = vpop.f32.mrb[0].mxu0
        %v2279 = vadd.f32 %v2071, %v2278
        %v2280 = vpop.f32.mrb[0].mxu0
        %2281 = vmatprep.mubr.bf16.mxu0 %v1350
        %2282 = vmatmul.mubr.bf16.gmra.mrb[0].mxu0 %v1349
        %v2283 = vpop.f32.mrb[0].mxu0
        %v2284 = vadd.f32 %v2076, %v2283
        %v2285 = vpop.f32.mrb[0].mxu0
        %v2286 = vpop.f32.mrb[0].mxu0
        %v2287 = vadd.f32 %v2079, %v2286
        %v2288 = vpop.f32.mrb[0].mxu0
        %2289 = vmatprep.mubr.bf16.mxu0 %v1360
        %2290 = vmatmul.mubr.bf16.gmra.mrb[0].mxu0 %v1359
        %v2291 = vpop.f32.mrb[0].mxu0
        %v2292 = vadd.f32 %v2084, %v2291
        %v2293 = vpop.f32.mrb[0].mxu0
        %v2294 = vpop.f32.mrb[0].mxu0
        %v2295 = vadd.f32 %v2087, %v2294
        %v2296 = vpop.f32.mrb[0].mxu0
        %2297 = vmatprep.mubr.bf16.mxu0 %v1370
        %2298 = vmatmul.mubr.bf16.gmra.mrb[0].mxu0 %v1369
        %v2299 = vpop.f32.mrb[0].mxu0
        %v2300 = vadd.f32 %v2092, %v2299
        %v2301 = vpop.f32.mrb[0].mxu0
        %v2302 = vpop.f32.mrb[0].mxu0
        %v2303 = vadd.f32 %v2095, %v2302
        %v2304 = vpop.f32.mrb[0].mxu0
        %2305 = vmatprep.mubr.bf16.mxu0 %v1380
        %2306 = vmatmul.mubr.bf16.gmra.mrb[0].mxu0 %v1379
        %v2307 = vpop.f32.mrb[0].mxu0
        %v2308 = vadd.f32 %v2100, %v2307
        %v2309 = vpop.f32.mrb[0].mxu0
        %v2310 = vpop.f32.mrb[0].mxu0
        %v2311 = vadd.f32 %v2103, %v2310
        %v2312 = vpop.f32.mrb[0].mxu0
        %2313 = vmatprep.mubr.bf16.mxu0 %v1390
        %2314 = vmatmul.mubr.bf16.gmra.mrb[0].mxu0 %v1389
        %v2315 = vpop.f32.mrb[0].mxu0
        %v2316 = vadd.f32 %v2108, %v2315
        %v2317 = vpop.f32.mrb[0].mxu0
        %v2318 = vpop.f32.mrb[0].mxu0
        %v2319 = vadd.f32 %v2111, %v2318
        %v2320 = vpop.f32.mrb[0].mxu0
        %2321 = vmatprep.mubr.bf16.mxu0 %v1400
        %2322 = vmatmul.mubr.bf16.gmra.mrb[0].mxu0 %v1399
        %v2323 = vpop.f32.mrb[0].mxu0
        %v2324 = vadd.f32 %v2116, %v2323
        %v2325 = vpop.f32.mrb[0].mxu0
        %v2326 = vpop.f32.mrb[0].mxu0
        %v2327 = vadd.f32 %v2119, %v2326
        %v2328 = vpop.f32.mrb[0].mxu0
        %2329 = vmatprep.mubr.bf16.mxu0 %v1410
        %2330 = vmatmul.mubr.bf16.gmra.mrb[0].mxu0 %v1409
        %v2331 = vpop.f32.mrb[0].mxu0
        %v2332 = vadd.f32 %v2124, %v2331
        %v2333 = vpop.f32.mrb[0].mxu0
        %v2334 = vpop.f32.mrb[0].mxu0
        %v2335 = vadd.f32 %v2127, %v2334
        %v2336 = vpop.f32.mrb[0].mxu0
        %2337 = vmatprep.mubr.bf16.mxu0 %v1420
        %2338 = vmatmul.mubr.bf16.gmra.mrb[0].mxu0 %v1419
        %v2339 = vpop.f32.mrb[0].mxu0
        %v2340 = vadd.f32 %v2132, %v2339
        %v2341 = vpop.f32.mrb[0].mxu0
        %v2342 = vpop.f32.mrb[0].mxu0
        %v2343 = vadd.f32 %v2135, %v2342
        %v2344 = vpop.f32.mrb[0].mxu0
        %2345 = vmatprep.mubr.bf16.mxu0 %v1430
        %2346 = vmatmul.mubr.bf16.gmra.mrb[0].mxu0 %v1429
        %v2347 = vpop.f32.mrb[0].mxu0
        %v2348 = vadd.f32 %v2140, %v2347
        %v2349 = vpop.f32.mrb[0].mxu0
        %v2350 = vpop.f32.mrb[0].mxu0
        %v2351 = vadd.f32 %v2143, %v2350
        %v2352 = vpop.f32.mrb[0].mxu0
        %2353 = vmatprep.mubr.bf16.mxu0 %v1440
        %2354 = vmatmul.mubr.bf16.gmra.mrb[0].mxu0 %v1439
        %v2355 = vpop.f32.mrb[0].mxu0
        %v2356 = vadd.f32 %v2148, %v2355
        %v2357 = vpop.f32.mrb[0].mxu0
        %v2358 = vpop.f32.mrb[0].mxu0
        %v2359 = vpop.f32.mrb[0].mxu0
        %2360 = vdwg.mxu0
        %2361 = vmatprep.subr.bf16.mxu0 0
        %2362 = vmatpush1.bf16.msra.mxu0 %v1643
        %2363 = vmatprep.subr.bf16.mxu0 0
        %2364 = vmatpush1.bf16.msra.mxu0 %v1644
        %2365 = vmatprep.subr.bf16.mxu0 0
        %2366 = vmatpush1.bf16.msra.mxu0 %v1645
        %2367 = vmatprep.subr.bf16.mxu0 0
        %2368 = vmatpush1.bf16.msra.mxu0 %v1646
        %2369 = vmatprep.subr.bf16.mxu0 0
        %2370 = vmatpush1.bf16.msra.mxu0 %v1647
        %2371 = vmatprep.subr.bf16.mxu0 0
        %2372 = vmatpush1.bf16.msra.mxu0 %v1648
        %2373 = vmatprep.subr.bf16.mxu0 0
        %2374 = vmatpush1.bf16.msra.mxu0 %v1649
        %2375 = vmatprep.subr.bf16.mxu0 0
        %2376 = vmatpush1.bf16.msra.mxu0 %v1650
        %2377 = vmatprep.subr.bf16.mxu0 0
        %2378 = vmatpush1.bf16.msra.mxu0 %v1651
        %2379 = vmatprep.subr.bf16.mxu0 0
        %2380 = vmatpush1.bf16.msra.mxu0 %v1652
        %2381 = vmatprep.subr.bf16.mxu0 0
        %2382 = vmatpush1.bf16.msra.mxu0 %v1653
        %2383 = vmatprep.subr.bf16.mxu0 0
        %2384 = vmatpush1.bf16.msra.mxu0 %v1654
        %2385 = vmatprep.subr.bf16.mxu0 0
        %2386 = vmatpush1.bf16.msra.mxu0 %v1655
        %2387 = vmatprep.subr.bf16.mxu0 0
        %2388 = vmatpush1.bf16.msra.mxu0 %v1656
        %2389 = vmatprep.subr.bf16.mxu0 0
        %2390 = vmatpush1.bf16.msra.mxu0 %v1657
        %2391 = vmatprep.subr.bf16.mxu0 0
        %2392 = vmatpush1.bf16.msra.mxu0 %v1658
        %2393 = vmatprep.mubr.bf16.mxu0 %v1232
        %2394 = vmatmul.mubr.bf16.gmra.mrb[0].mxu0 %v1231
        %v2395 = vpop.f32.mrb[0].mxu0
        %v2396 = vadd.f32 %v2188, %v2395
        %v2397 = vpop.f32.mrb[0].mxu0
        %v2398 = vpop.f32.mrb[0].mxu0
        %v2399 = vadd.f32 %v2191, %v2398
        %v2400 = vpop.f32.mrb[0].mxu0
        %2401 = vmatprep.mubr.bf16.mxu0 %v1242
        %2402 = vmatmul.mubr.bf16.gmra.mrb[0].mxu0 %v1241
        %v2403 = vpop.f32.mrb[0].mxu0
        %v2404 = vadd.f32 %v2196, %v2403
        %v2405 = vpop.f32.mrb[0].mxu0
        %v2406 = vpop.f32.mrb[0].mxu0
        %v2407 = vadd.f32 %v2199, %v2406
        %v2408 = vpop.f32.mrb[0].mxu0
        %2409 = vmatprep.mubr.bf16.mxu0 %v1252
        %2410 = vmatmul.mubr.bf16.gmra.mrb[0].mxu0 %v1251
        %v2411 = vpop.f32.mrb[0].mxu0
        %v2412 = vadd.f32 %v2204, %v2411
        %v2413 = vpop.f32.mrb[0].mxu0
        %v2414 = vpop.f32.mrb[0].mxu0
        %v2415 = vadd.f32 %v2207, %v2414
        %v2416 = vpop.f32.mrb[0].mxu0
        %2417 = vmatprep.mubr.bf16.mxu0 %v1262
        %2418 = vmatmul.mubr.bf16.gmra.mrb[0].mxu0 %v1261
        %v2419 = vpop.f32.mrb[0].mxu0
        %v2420 = vadd.f32 %v2212, %v2419
        %v2421 = vpop.f32.mrb[0].mxu0
        %v2422 = vpop.f32.mrb[0].mxu0
        %v2423 = vadd.f32 %v2215, %v2422
        %v2424 = vpop.f32.mrb[0].mxu0
        %2425 = vmatprep.mubr.bf16.mxu0 %v1272
        %2426 = vmatmul.mubr.bf16.gmra.mrb[0].mxu0 %v1271
        %v2427 = vpop.f32.mrb[0].mxu0
        %v2428 = vadd.f32 %v2220, %v2427
        %v2429 = vpop.f32.mrb[0].mxu0
        %v2430 = vpop.f32.mrb[0].mxu0
        %v2431 = vadd.f32 %v2223, %v2430
        %v2432 = vpop.f32.mrb[0].mxu0
        %2433 = vmatprep.mubr.bf16.mxu0 %v1282
        %2434 = vmatmul.mubr.bf16.gmra.mrb[0].mxu0 %v1281
        %v2435 = vpop.f32.mrb[0].mxu0
        %v2436 = vadd.f32 %v2228, %v2435
        %v2437 = vpop.f32.mrb[0].mxu0
        %v2438 = vpop.f32.mrb[0].mxu0
        %v2439 = vadd.f32 %v2231, %v2438
        %v2440 = vpop.f32.mrb[0].mxu0
        %2441 = vmatprep.mubr.bf16.mxu0 %v1292
        %2442 = vmatmul.mubr.bf16.gmra.mrb[0].mxu0 %v1291
        %v2443 = vpop.f32.mrb[0].mxu0
        %v2444 = vadd.f32 %v2236, %v2443
        %v2445 = vpop.f32.mrb[0].mxu0
        %v2446 = vpop.f32.mrb[0].mxu0
        %v2447 = vadd.f32 %v2239, %v2446
        %v2448 = vpop.f32.mrb[0].mxu0
        %2449 = vmatprep.mubr.bf16.mxu0 %v1302
        %2450 = vmatmul.mubr.bf16.gmra.mrb[0].mxu0 %v1301
        %v2451 = vpop.f32.mrb[0].mxu0
        %v2452 = vadd.f32 %v2244, %v2451
        %v2453 = vpop.f32.mrb[0].mxu0
        %v2454 = vpop.f32.mrb[0].mxu0
        %v2455 = vadd.f32 %v2247, %v2454
        %v2456 = vpop.f32.mrb[0].mxu0
        %2457 = vmatprep.mubr.bf16.mxu0 %v1312
        %2458 = vmatmul.mubr.bf16.gmra.mrb[0].mxu0 %v1311
        %v2459 = vpop.f32.mrb[0].mxu0
        %v2460 = vadd.f32 %v2252, %v2459
        %v2461 = vpop.f32.mrb[0].mxu0
        %v2462 = vpop.f32.mrb[0].mxu0
        %v2463 = vadd.f32 %v2255, %v2462
        %v2464 = vpop.f32.mrb[0].mxu0
        %2465 = vmatprep.mubr.bf16.mxu0 %v1322
        %2466 = vmatmul.mubr.bf16.gmra.mrb[0].mxu0 %v1321
        %v2467 = vpop.f32.mrb[0].mxu0
        %v2468 = vadd.f32 %v2260, %v2467
        %v2469 = vpop.f32.mrb[0].mxu0
        %v2470 = vpop.f32.mrb[0].mxu0
        %v2471 = vadd.f32 %v2263, %v2470
        %v2472 = vpop.f32.mrb[0].mxu0
        %2473 = vmatprep.mubr.bf16.mxu0 %v1332
        %2474 = vmatmul.mubr.bf16.gmra.mrb[0].mxu0 %v1331
        %v2475 = vpop.f32.mrb[0].mxu0
        %v2476 = vadd.f32 %v2268, %v2475
        %v2477 = vpop.f32.mrb[0].mxu0
        %v2478 = vpop.f32.mrb[0].mxu0
        %v2479 = vadd.f32 %v2271, %v2478
        %v2480 = vpop.f32.mrb[0].mxu0
        %2481 = vmatprep.mubr.bf16.mxu0 %v1342
        %2482 = vmatmul.mubr.bf16.gmra.mrb[0].mxu0 %v1341
        %v2483 = vpop.f32.mrb[0].mxu0
        %v2484 = vadd.f32 %v2276, %v2483
        %v2485 = vpop.f32.mrb[0].mxu0
        %v2486 = vpop.f32.mrb[0].mxu0
        %v2487 = vadd.f32 %v2279, %v2486
        %v2488 = vpop.f32.mrb[0].mxu0
        %2489 = vmatprep.mubr.bf16.mxu0 %v1352
        %2490 = vmatmul.mubr.bf16.gmra.mrb[0].mxu0 %v1351
        %v2491 = vpop.f32.mrb[0].mxu0
        %v2492 = vadd.f32 %v2284, %v2491
        %v2493 = vpop.f32.mrb[0].mxu0
        %v2494 = vpop.f32.mrb[0].mxu0
        %v2495 = vadd.f32 %v2287, %v2494
        %v2496 = vpop.f32.mrb[0].mxu0
        %2497 = vmatprep.mubr.bf16.mxu0 %v1362
        %2498 = vmatmul.mubr.bf16.gmra.mrb[0].mxu0 %v1361
        %v2499 = vpop.f32.mrb[0].mxu0
        %v2500 = vadd.f32 %v2292, %v2499
        %v2501 = vpop.f32.mrb[0].mxu0
        %v2502 = vpop.f32.mrb[0].mxu0
        %v2503 = vadd.f32 %v2295, %v2502
        %v2504 = vpop.f32.mrb[0].mxu0
        %2505 = vmatprep.mubr.bf16.mxu0 %v1372
        %2506 = vmatmul.mubr.bf16.gmra.mrb[0].mxu0 %v1371
        %v2507 = vpop.f32.mrb[0].mxu0
        %v2508 = vadd.f32 %v2300, %v2507
        %v2509 = vpop.f32.mrb[0].mxu0
        %v2510 = vpop.f32.mrb[0].mxu0
        %v2511 = vadd.f32 %v2303, %v2510
        %v2512 = vpop.f32.mrb[0].mxu0
        %2513 = vmatprep.mubr.bf16.mxu0 %v1382
        %2514 = vmatmul.mubr.bf16.gmra.mrb[0].mxu0 %v1381
        %v2515 = vpop.f32.mrb[0].mxu0
        %v2516 = vadd.f32 %v2308, %v2515
        %v2517 = vpop.f32.mrb[0].mxu0
        %v2518 = vpop.f32.mrb[0].mxu0
        %v2519 = vadd.f32 %v2311, %v2518
        %v2520 = vpop.f32.mrb[0].mxu0
        %2521 = vmatprep.mubr.bf16.mxu0 %v1392
        %2522 = vmatmul.mubr.bf16.gmra.mrb[0].mxu0 %v1391
        %v2523 = vpop.f32.mrb[0].mxu0
        %v2524 = vadd.f32 %v2316, %v2523
        %v2525 = vpop.f32.mrb[0].mxu0
        %v2526 = vpop.f32.mrb[0].mxu0
        %v2527 = vadd.f32 %v2319, %v2526
        %v2528 = vpop.f32.mrb[0].mxu0
        %2529 = vmatprep.mubr.bf16.mxu0 %v1402
        %2530 = vmatmul.mubr.bf16.gmra.mrb[0].mxu0 %v1401
        %v2531 = vpop.f32.mrb[0].mxu0
        %v2532 = vadd.f32 %v2324, %v2531
        %v2533 = vpop.f32.mrb[0].mxu0
        %v2534 = vpop.f32.mrb[0].mxu0
        %v2535 = vadd.f32 %v2327, %v2534
        %v2536 = vpop.f32.mrb[0].mxu0
        %2537 = vmatprep.mubr.bf16.mxu0 %v1412
        %2538 = vmatmul.mubr.bf16.gmra.mrb[0].mxu0 %v1411
        %v2539 = vpop.f32.mrb[0].mxu0
        %v2540 = vadd.f32 %v2332, %v2539
        %v2541 = vpop.f32.mrb[0].mxu0
        %v2542 = vpop.f32.mrb[0].mxu0
        %v2543 = vadd.f32 %v2335, %v2542
        %v2544 = vpop.f32.mrb[0].mxu0
        %2545 = vmatprep.mubr.bf16.mxu0 %v1422
        %2546 = vmatmul.mubr.bf16.gmra.mrb[0].mxu0 %v1421
        %v2547 = vpop.f32.mrb[0].mxu0
        %v2548 = vadd.f32 %v2340, %v2547
        %v2549 = vpop.f32.mrb[0].mxu0
        %v2550 = vpop.f32.mrb[0].mxu0
        %v2551 = vadd.f32 %v2343, %v2550
        %v2552 = vpop.f32.mrb[0].mxu0
        %2553 = vmatprep.mubr.bf16.mxu0 %v1432
        %2554 = vmatmul.mubr.bf16.gmra.mrb[0].mxu0 %v1431
        %v2555 = vpop.f32.mrb[0].mxu0
        %v2556 = vadd.f32 %v2348, %v2555
        %v2557 = vpop.f32.mrb[0].mxu0
        %v2558 = vpop.f32.mrb[0].mxu0
        %v2559 = vadd.f32 %v2351, %v2558
        %v2560 = vpop.f32.mrb[0].mxu0
        %2561 = vmatprep.mubr.bf16.mxu0 %v1442
        %2562 = vmatmul.mubr.bf16.gmra.mrb[0].mxu0 %v1441
        %v2563 = vpop.f32.mrb[0].mxu0
        %v2564 = vadd.f32 %v2356, %v2563
        %v2565 = vpop.f32.mrb[0].mxu0
        %v2566 = vpop.f32.mrb[0].mxu0
        %v2567 = vpop.f32.mrb[0].mxu0
        %2568 = vdwg.mxu0
        %2569 = vmatprep.subr.bf16.mxu0 0
        %2570 = vmatpush1.bf16.msra.mxu0 %v1659
        %2571 = vmatprep.subr.bf16.mxu0 0
        %2572 = vmatpush1.bf16.msra.mxu0 %v1660
        %2573 = vmatprep.subr.bf16.mxu0 0
        %2574 = vmatpush1.bf16.msra.mxu0 %v1661
        %2575 = vmatprep.subr.bf16.mxu0 0
        %2576 = vmatpush1.bf16.msra.mxu0 %v1662
        %2577 = vmatprep.subr.bf16.mxu0 0
        %2578 = vmatpush1.bf16.msra.mxu0 %v1663
        %2579 = vmatprep.subr.bf16.mxu0 0
        %2580 = vmatpush1.bf16.msra.mxu0 %v1664
        %2581 = vmatprep.subr.bf16.mxu0 0
        %2582 = vmatpush1.bf16.msra.mxu0 %v1665
        %2583 = vmatprep.subr.bf16.mxu0 0
        %2584 = vmatpush1.bf16.msra.mxu0 %v1666
        %2585 = vmatprep.subr.bf16.mxu0 0
        %2586 = vmatpush1.bf16.msra.mxu0 %v1667
        %2587 = vmatprep.subr.bf16.mxu0 0
        %2588 = vmatpush1.bf16.msra.mxu0 %v1668
        %2589 = vmatprep.subr.bf16.mxu0 0
        %2590 = vmatpush1.bf16.msra.mxu0 %v1669
        %2591 = vmatprep.subr.bf16.mxu0 0
        %2592 = vmatpush1.bf16.msra.mxu0 0
        %2593 = vmatprep.subr.bf16.mxu0 0
        %2594 = vmatpush1.bf16.msra.mxu0 0
        %2595 = vmatprep.subr.bf16.mxu0 0
        %2596 = vmatpush1.bf16.msra.mxu0 0
        %2597 = vmatprep.subr.bf16.mxu0 0
        %2598 = vmatpush1.bf16.msra.mxu0 0
        %2599 = vmatprep.subr.bf16.mxu0 0
        %2600 = vmatpush1.bf16.msra.mxu0 0
        %2601 = vmatprep.mubr.bf16.mxu0 %v1672
        %2602 = vmatmul.mubr.bf16.gmra.mrb[0].mxu0 %v1233
        %v2603 = vpop.f32.mrb[0].mxu0
        %v2604 = vadd.f32 %v2396, %v2603
        %v2605 = vpop.f32.mrb[0].mxu0
        %v2606 = vpop.f32.mrb[0].mxu0
        %v2607 = vadd.f32 %v2399, %v2606
        %v2608 = vpop.f32.mrb[0].mxu0
        %2609 = vmatprep.mubr.bf16.mxu0 %v1675
        %2610 = vmatmul.mubr.bf16.gmra.mrb[0].mxu0 %v1243
        %v2611 = vpop.f32.mrb[0].mxu0
        %v2612 = vadd.f32 %v2404, %v2611
        %v2613 = vpop.f32.mrb[0].mxu0
        %v2614 = vpop.f32.mrb[0].mxu0
        %v2615 = vadd.f32 %v2407, %v2614
        %v2616 = vpop.f32.mrb[0].mxu0
        %2617 = vmatprep.mubr.bf16.mxu0 %v1678
        %2618 = vmatmul.mubr.bf16.gmra.mrb[0].mxu0 %v1253
        %v2619 = vpop.f32.mrb[0].mxu0
        %v2620 = vadd.f32 %v2412, %v2619
        %v2621 = vpop.f32.mrb[0].mxu0
        %v2622 = vpop.f32.mrb[0].mxu0
        %v2623 = vadd.f32 %v2415, %v2622
        %v2624 = vpop.f32.mrb[0].mxu0
        %2625 = vmatprep.mubr.bf16.mxu0 %v1681
        %2626 = vmatmul.mubr.bf16.gmra.mrb[0].mxu0 %v1263
        %v2627 = vpop.f32.mrb[0].mxu0
        %v2628 = vadd.f32 %v2420, %v2627
        %v2629 = vpop.f32.mrb[0].mxu0
        %v2630 = vpop.f32.mrb[0].mxu0
        %v2631 = vadd.f32 %v2423, %v2630
        %v2632 = vpop.f32.mrb[0].mxu0
        %2633 = vmatprep.mubr.bf16.mxu0 %v1684
        %2634 = vmatmul.mubr.bf16.gmra.mrb[0].mxu0 %v1273
        %v2635 = vpop.f32.mrb[0].mxu0
        %v2636 = vadd.f32 %v2428, %v2635
        %v2637 = vpop.f32.mrb[0].mxu0
        %v2638 = vpop.f32.mrb[0].mxu0
        %v2639 = vadd.f32 %v2431, %v2638
        %v2640 = vpop.f32.mrb[0].mxu0
        %2641 = vmatprep.mubr.bf16.mxu0 %v1687
        %2642 = vmatmul.mubr.bf16.gmra.mrb[0].mxu0 %v1283
        %v2643 = vpop.f32.mrb[0].mxu0
        %v2644 = vadd.f32 %v2436, %v2643
        %v2645 = vpop.f32.mrb[0].mxu0
        %v2646 = vpop.f32.mrb[0].mxu0
        %v2647 = vadd.f32 %v2439, %v2646
        %v2648 = vpop.f32.mrb[0].mxu0
        %2649 = vmatprep.mubr.bf16.mxu0 %v1690
        %2650 = vmatmul.mubr.bf16.gmra.mrb[0].mxu0 %v1293
        %v2651 = vpop.f32.mrb[0].mxu0
        %v2652 = vadd.f32 %v2444, %v2651
        %v2653 = vpop.f32.mrb[0].mxu0
        %v2654 = vpop.f32.mrb[0].mxu0
        %v2655 = vadd.f32 %v2447, %v2654
        %v2656 = vpop.f32.mrb[0].mxu0
        %2657 = vmatprep.mubr.bf16.mxu0 %v1693
        %2658 = vmatmul.mubr.bf16.gmra.mrb[0].mxu0 %v1303
        %v2659 = vpop.f32.mrb[0].mxu0
        %v2660 = vadd.f32 %v2452, %v2659
        %v2661 = vpop.f32.mrb[0].mxu0
        %v2662 = vpop.f32.mrb[0].mxu0
        %v2663 = vadd.f32 %v2455, %v2662
        %v2664 = vpop.f32.mrb[0].mxu0
        %2665 = vmatprep.mubr.bf16.mxu0 %v1696
        %2666 = vmatmul.mubr.bf16.gmra.mrb[0].mxu0 %v1313
        %v2667 = vpop.f32.mrb[0].mxu0
        %v2668 = vadd.f32 %v2460, %v2667
        %v2669 = vpop.f32.mrb[0].mxu0
        %v2670 = vpop.f32.mrb[0].mxu0
        %v2671 = vadd.f32 %v2463, %v2670
        %v2672 = vpop.f32.mrb[0].mxu0
        %2673 = vmatprep.mubr.bf16.mxu0 %v1699
        %2674 = vmatmul.mubr.bf16.gmra.mrb[0].mxu0 %v1323
        %v2675 = vpop.f32.mrb[0].mxu0
        %v2676 = vadd.f32 %v2468, %v2675
        %v2677 = vpop.f32.mrb[0].mxu0
        %v2678 = vpop.f32.mrb[0].mxu0
        %v2679 = vadd.f32 %v2471, %v2678
        %v2680 = vpop.f32.mrb[0].mxu0
        %2681 = vmatprep.mubr.bf16.mxu0 %v1702
        %2682 = vmatmul.mubr.bf16.gmra.mrb[0].mxu0 %v1333
        %v2683 = vpop.f32.mrb[0].mxu0
        %v2684 = vadd.f32 %v2476, %v2683
        %v2685 = vpop.f32.mrb[0].mxu0
        %v2686 = vpop.f32.mrb[0].mxu0
        %v2687 = vadd.f32 %v2479, %v2686
        %v2688 = vpop.f32.mrb[0].mxu0
        %2689 = vmatprep.mubr.bf16.mxu0 %v1705
        %2690 = vmatmul.mubr.bf16.gmra.mrb[0].mxu0 %v1343
        %v2691 = vpop.f32.mrb[0].mxu0
        %v2692 = vadd.f32 %v2484, %v2691
        %v2693 = vpop.f32.mrb[0].mxu0
        %v2694 = vpop.f32.mrb[0].mxu0
        %v2695 = vadd.f32 %v2487, %v2694
        %v2696 = vpop.f32.mrb[0].mxu0
        %2697 = vmatprep.mubr.bf16.mxu0 %v1708
        %2698 = vmatmul.mubr.bf16.gmra.mrb[0].mxu0 %v1353
        %v2699 = vpop.f32.mrb[0].mxu0
        %v2700 = vadd.f32 %v2492, %v2699
        %v2701 = vpop.f32.mrb[0].mxu0
        %v2702 = vpop.f32.mrb[0].mxu0
        %v2703 = vadd.f32 %v2495, %v2702
        %v2704 = vpop.f32.mrb[0].mxu0
        %2705 = vmatprep.mubr.bf16.mxu0 %v1711
        %2706 = vmatmul.mubr.bf16.gmra.mrb[0].mxu0 %v1363
        %v2707 = vpop.f32.mrb[0].mxu0
        %v2708 = vadd.f32 %v2500, %v2707
        %v2709 = vpop.f32.mrb[0].mxu0
        %v2710 = vpop.f32.mrb[0].mxu0
        %v2711 = vadd.f32 %v2503, %v2710
        %v2712 = vpop.f32.mrb[0].mxu0
        %2713 = vmatprep.mubr.bf16.mxu0 %v1714
        %2714 = vmatmul.mubr.bf16.gmra.mrb[0].mxu0 %v1373
        %v2715 = vpop.f32.mrb[0].mxu0
        %v2716 = vadd.f32 %v2508, %v2715
        %v2717 = vpop.f32.mrb[0].mxu0
        %v2718 = vpop.f32.mrb[0].mxu0
        %v2719 = vadd.f32 %v2511, %v2718
        %v2720 = vpop.f32.mrb[0].mxu0
        %2721 = vmatprep.mubr.bf16.mxu0 %v1717
        %2722 = vmatmul.mubr.bf16.gmra.mrb[0].mxu0 %v1383
        %v2723 = vpop.f32.mrb[0].mxu0
        %v2724 = vadd.f32 %v2516, %v2723
        %v2725 = vpop.f32.mrb[0].mxu0
        %v2726 = vpop.f32.mrb[0].mxu0
        %v2727 = vadd.f32 %v2519, %v2726
        %v2728 = vpop.f32.mrb[0].mxu0
        %2729 = vmatprep.mubr.bf16.mxu0 %v1720
        %2730 = vmatmul.mubr.bf16.gmra.mrb[0].mxu0 %v1393
        %v2731 = vpop.f32.mrb[0].mxu0
        %v2732 = vadd.f32 %v2524, %v2731
        %v2733 = vpop.f32.mrb[0].mxu0
        %v2734 = vpop.f32.mrb[0].mxu0
        %v2735 = vadd.f32 %v2527, %v2734
        %v2736 = vpop.f32.mrb[0].mxu0
        %2737 = vmatprep.mubr.bf16.mxu0 %v1723
        %2738 = vmatmul.mubr.bf16.gmra.mrb[0].mxu0 %v1403
        %v2739 = vpop.f32.mrb[0].mxu0
        %v2740 = vadd.f32 %v2532, %v2739
        %v2741 = vpop.f32.mrb[0].mxu0
        %v2742 = vpop.f32.mrb[0].mxu0
        %v2743 = vadd.f32 %v2535, %v2742
        %v2744 = vpop.f32.mrb[0].mxu0
        %2745 = vmatprep.mubr.bf16.mxu0 %v1726
        %2746 = vmatmul.mubr.bf16.gmra.mrb[0].mxu0 %v1413
        %v2747 = vpop.f32.mrb[0].mxu0
        %v2748 = vadd.f32 %v2540, %v2747
        %v2749 = vpop.f32.mrb[0].mxu0
        %v2750 = vpop.f32.mrb[0].mxu0
        %v2751 = vadd.f32 %v2543, %v2750
        %v2752 = vpop.f32.mrb[0].mxu0
        %2753 = vmatprep.mubr.bf16.mxu0 %v1729
        %2754 = vmatmul.mubr.bf16.gmra.mrb[0].mxu0 %v1423
        %v2755 = vpop.f32.mrb[0].mxu0
        %v2756 = vadd.f32 %v2548, %v2755
        %v2757 = vpop.f32.mrb[0].mxu0
        %v2758 = vpop.f32.mrb[0].mxu0
        %v2759 = vadd.f32 %v2551, %v2758
        %v2760 = vpop.f32.mrb[0].mxu0
        %2761 = vmatprep.mubr.bf16.mxu0 %v1732
        %2762 = vmatmul.mubr.bf16.gmra.mrb[0].mxu0 %v1433
        %v2763 = vpop.f32.mrb[0].mxu0
        %v2764 = vadd.f32 %v2556, %v2763
        %v2765 = vpop.f32.mrb[0].mxu0
        %v2766 = vpop.f32.mrb[0].mxu0
        %v2767 = vadd.f32 %v2559, %v2766
        %v2768 = vpop.f32.mrb[0].mxu0
        %2769 = vmatprep.mubr.bf16.mxu0 %v1735
        %2770 = vmatmul.mubr.bf16.gmra.mrb[0].mxu0 %v1443
        %v2771 = vpop.f32.mrb[0].mxu0
        %v2772 = vadd.f32 %v2564, %v2771
        %v2773 = vpop.f32.mrb[0].mxu0
        %v2774 = vpop.f32.mrb[0].mxu0
        %v2775 = vpop.f32.mrb[0].mxu0
        %2776 = vdwg.mxu0
        %vm2777 = vcmask 400384
        %v2778 = vsel %vm2777, %v2604, 0.0
        %2779 = vadd.xlane.f32.xlu0 %v2778
        %v2780 = vpop.xlane.xlu0 %2779
        %v2781 = vsel %vm2777, %v2607, 0.0
        %2782 = vadd.xlane.f32.xlu0 %v2781
        %v2783 = vpop.xlane.xlu0 %2782
        %v2784 = vsel %vm2777, %v2612, 0.0
        %2785 = vadd.xlane.f32.xlu0 %v2784
        %v2786 = vpop.xlane.xlu0 %2785
        %v2787 = vsel %vm2777, %v2615, 0.0
        %2788 = vadd.xlane.f32.xlu0 %v2787
        %v2789 = vpop.xlane.xlu0 %2788
        %v2790 = vsel %vm2777, %v2620, 0.0
        %2791 = vadd.xlane.f32.xlu0 %v2790
        %v2792 = vpop.xlane.xlu0 %2791
        %v2793 = vsel %vm2777, %v2623, 0.0
        %2794 = vadd.xlane.f32.xlu0 %v2793
        %v2795 = vpop.xlane.xlu0 %2794
        %v2796 = vsel %vm2777, %v2628, 0.0
        %2797 = vadd.xlane.f32.xlu0 %v2796
        %v2798 = vpop.xlane.xlu0 %2797
        %v2799 = vsel %vm2777, %v2631, 0.0
        %2800 = vadd.xlane.f32.xlu0 %v2799
        %v2801 = vpop.xlane.xlu0 %2800
        %v2802 = vsel %vm2777, %v2636, 0.0
        %2803 = vadd.xlane.f32.xlu0 %v2802
        %v2804 = vpop.xlane.xlu0 %2803
        %v2805 = vsel %vm2777, %v2639, 0.0
        %2806 = vadd.xlane.f32.xlu0 %v2805
        %v2807 = vpop.xlane.xlu0 %2806
        %v2808 = vsel %vm2777, %v2644, 0.0
        %2809 = vadd.xlane.f32.xlu0 %v2808
        %v2810 = vpop.xlane.xlu0 %2809
        %v2811 = vsel %vm2777, %v2647, 0.0
        %2812 = vadd.xlane.f32.xlu0 %v2811
        %v2813 = vpop.xlane.xlu0 %2812
        %v2814 = vsel %vm2777, %v2652, 0.0
        %2815 = vadd.xlane.f32.xlu0 %v2814
        %v2816 = vpop.xlane.xlu0 %2815
        %v2817 = vsel %vm2777, %v2655, 0.0
        %2818 = vadd.xlane.f32.xlu0 %v2817
        %v2819 = vpop.xlane.xlu0 %2818
        %v2820 = vsel %vm2777, %v2660, 0.0
        %2821 = vadd.xlane.f32.xlu0 %v2820
        %v2822 = vpop.xlane.xlu0 %2821
        %v2823 = vsel %vm2777, %v2663, 0.0
        %2824 = vadd.xlane.f32.xlu0 %v2823
        %v2825 = vpop.xlane.xlu0 %2824
        %v2826 = vsel %vm2777, %v2668, 0.0
        %2827 = vadd.xlane.f32.xlu0 %v2826
        %v2828 = vpop.xlane.xlu0 %2827
        %v2829 = vsel %vm2777, %v2671, 0.0
        %2830 = vadd.xlane.f32.xlu0 %v2829
        %v2831 = vpop.xlane.xlu0 %2830
        %v2832 = vsel %vm2777, %v2676, 0.0
        %2833 = vadd.xlane.f32.xlu0 %v2832
        %v2834 = vpop.xlane.xlu0 %2833
        %v2835 = vsel %vm2777, %v2679, 0.0
        %2836 = vadd.xlane.f32.xlu0 %v2835
        %v2837 = vpop.xlane.xlu0 %2836
        %v2838 = vsel %vm2777, %v2684, 0.0
        %2839 = vadd.xlane.f32.xlu0 %v2838
        %v2840 = vpop.xlane.xlu0 %2839
        %v2841 = vsel %vm2777, %v2687, 0.0
        %2842 = vadd.xlane.f32.xlu0 %v2841
        %v2843 = vpop.xlane.xlu0 %2842
        %v2844 = vsel %vm2777, %v2692, 0.0
        %2845 = vadd.xlane.f32.xlu0 %v2844
        %v2846 = vpop.xlane.xlu0 %2845
        %v2847 = vsel %vm2777, %v2695, 0.0
        %2848 = vadd.xlane.f32.xlu0 %v2847
        %v2849 = vpop.xlane.xlu0 %2848
        %v2850 = vsel %vm2777, %v2700, 0.0
        %2851 = vadd.xlane.f32.xlu0 %v2850
        %v2852 = vpop.xlane.xlu0 %2851
        %v2853 = vsel %vm2777, %v2703, 0.0
        %2854 = vadd.xlane.f32.xlu0 %v2853
        %v2855 = vpop.xlane.xlu0 %2854
        %v2856 = vsel %vm2777, %v2708, 0.0
        %2857 = vadd.xlane.f32.xlu0 %v2856
        %v2858 = vpop.xlane.xlu0 %2857
        %v2859 = vsel %vm2777, %v2711, 0.0
        %2860 = vadd.xlane.f32.xlu0 %v2859
        %v2861 = vpop.xlane.xlu0 %2860
        %v2862 = vsel %vm2777, %v2716, 0.0
        %2863 = vadd.xlane.f32.xlu0 %v2862
        %v2864 = vpop.xlane.xlu0 %2863
        %v2865 = vsel %vm2777, %v2719, 0.0
        %2866 = vadd.xlane.f32.xlu0 %v2865
        %v2867 = vpop.xlane.xlu0 %2866
        %v2868 = vsel %vm2777, %v2724, 0.0
        %2869 = vadd.xlane.f32.xlu0 %v2868
        %v2870 = vpop.xlane.xlu0 %2869
        %v2871 = vsel %vm2777, %v2727, 0.0
        %2872 = vadd.xlane.f32.xlu0 %v2871
        %v2873 = vpop.xlane.xlu0 %2872
        %v2874 = vsel %vm2777, %v2732, 0.0
        %2875 = vadd.xlane.f32.xlu0 %v2874
        %v2876 = vpop.xlane.xlu0 %2875
        %v2877 = vsel %vm2777, %v2735, 0.0
        %2878 = vadd.xlane.f32.xlu0 %v2877
        %v2879 = vpop.xlane.xlu0 %2878
        %v2880 = vsel %vm2777, %v2740, 0.0
        %2881 = vadd.xlane.f32.xlu0 %v2880
        %v2882 = vpop.xlane.xlu0 %2881
        %v2883 = vsel %vm2777, %v2743, 0.0
        %2884 = vadd.xlane.f32.xlu0 %v2883
        %v2885 = vpop.xlane.xlu0 %2884
        %v2886 = vsel %vm2777, %v2748, 0.0
        %2887 = vadd.xlane.f32.xlu0 %v2886
        %v2888 = vpop.xlane.xlu0 %2887
        %v2889 = vsel %vm2777, %v2751, 0.0
        %2890 = vadd.xlane.f32.xlu0 %v2889
        %v2891 = vpop.xlane.xlu0 %2890
        %v2892 = vsel %vm2777, %v2756, 0.0
        %2893 = vadd.xlane.f32.xlu0 %v2892
        %v2894 = vpop.xlane.xlu0 %2893
        %v2895 = vsel %vm2777, %v2759, 0.0
        %2896 = vadd.xlane.f32.xlu0 %v2895
        %v2897 = vpop.xlane.xlu0 %2896
        %v2898 = vsel %vm2777, %v2764, 0.0
        %2899 = vadd.xlane.f32.xlu0 %v2898
        %v2900 = vpop.xlane.xlu0 %2899
        %v2901 = vsel %vm2777, %v2767, 0.0
        %2902 = vadd.xlane.f32.xlu0 %v2901
        %v2903 = vpop.xlane.xlu0 %2902
        %v2904 = vsel %vm2777, %v2772, 0.0
        %2905 = vadd.xlane.f32.xlu0 %v2904
        %v2906 = vpop.xlane.xlu0 %2905
        %v2907 = vrcp.pop 49.0
        %v2908 = vmul.f32 %v2780, %v2907
        %v2909 = vmul.f32 %v2783, %v2907
        %v2910 = vmul.f32 %v2786, %v2907
        %v2911 = vmul.f32 %v2789, %v2907
        %v2912 = vmul.f32 %v2792, %v2907
        %v2913 = vmul.f32 %v2795, %v2907
        %v2914 = vmul.f32 %v2798, %v2907
        %v2915 = vmul.f32 %v2801, %v2907
        %v2916 = vmul.f32 %v2804, %v2907
        %v2917 = vmul.f32 %v2807, %v2907
        %v2918 = vmul.f32 %v2810, %v2907
        %v2919 = vmul.f32 %v2813, %v2907
        %v2920 = vmul.f32 %v2816, %v2907
        %v2921 = vmul.f32 %v2819, %v2907
        %v2922 = vmul.f32 %v2822, %v2907
        %v2923 = vmul.f32 %v2825, %v2907
        %v2924 = vmul.f32 %v2828, %v2907
        %v2925 = vmul.f32 %v2831, %v2907
        %v2926 = vmul.f32 %v2834, %v2907
        %v2927 = vmul.f32 %v2837, %v2907
        %v2928 = vmul.f32 %v2840, %v2907
        %v2929 = vmul.f32 %v2843, %v2907
        %v2930 = vmul.f32 %v2846, %v2907
        %v2931 = vmul.f32 %v2849, %v2907
        %v2932 = vmul.f32 %v2852, %v2907
        %v2933 = vmul.f32 %v2855, %v2907
        %v2934 = vmul.f32 %v2858, %v2907
        %v2935 = vmul.f32 %v2861, %v2907
        %v2936 = vmul.f32 %v2864, %v2907
        %v2937 = vmul.f32 %v2867, %v2907
        %v2938 = vmul.f32 %v2870, %v2907
        %v2939 = vmul.f32 %v2873, %v2907
        %v2940 = vmul.f32 %v2876, %v2907
        %v2941 = vmul.f32 %v2879, %v2907
        %v2942 = vmul.f32 %v2882, %v2907
        %v2943 = vmul.f32 %v2885, %v2907
        %v2944 = vmul.f32 %v2888, %v2907
        %v2945 = vmul.f32 %v2891, %v2907
        %v2946 = vmul.f32 %v2894, %v2907
        %v2947 = vmul.f32 %v2897, %v2907
        %v2948 = vmul.f32 %v2900, %v2907
        %v2949 = vmul.f32 %v2903, %v2907
        %v2950 = vmul.f32 %v2906, %v2907
        %v2951 = vsub.f32 %v2604, %v2908
        %v2952 = vsub.f32 %v2607, %v2909
        %v2953 = vsub.f32 %v2612, %v2910
        %v2954 = vsub.f32 %v2615, %v2911
        %v2955 = vsub.f32 %v2620, %v2912
        %v2956 = vsub.f32 %v2623, %v2913
        %v2957 = vsub.f32 %v2628, %v2914
        %v2958 = vsub.f32 %v2631, %v2915
        %v2959 = vsub.f32 %v2636, %v2916
        %v2960 = vsub.f32 %v2639, %v2917
        %v2961 = vsub.f32 %v2644, %v2918
        %v2962 = vsub.f32 %v2647, %v2919
        %v2963 = vsub.f32 %v2652, %v2920
        %v2964 = vsub.f32 %v2655, %v2921
        %v2965 = vsub.f32 %v2660, %v2922
        %v2966 = vsub.f32 %v2663, %v2923
        %v2967 = vsub.f32 %v2668, %v2924
        %v2968 = vsub.f32 %v2671, %v2925
        %v2969 = vsub.f32 %v2676, %v2926
        %v2970 = vsub.f32 %v2679, %v2927
        %v2971 = vsub.f32 %v2684, %v2928
        %v2972 = vsub.f32 %v2687, %v2929
        %v2973 = vsub.f32 %v2692, %v2930
        %v2974 = vsub.f32 %v2695, %v2931
        %v2975 = vsub.f32 %v2700, %v2932
        %v2976 = vsub.f32 %v2703, %v2933
        %v2977 = vsub.f32 %v2708, %v2934
        %v2978 = vsub.f32 %v2711, %v2935
        %v2979 = vsub.f32 %v2716, %v2936
        %v2980 = vsub.f32 %v2719, %v2937
        %v2981 = vsub.f32 %v2724, %v2938
        %v2982 = vsub.f32 %v2727, %v2939
        %v2983 = vsub.f32 %v2732, %v2940
        %v2984 = vsub.f32 %v2735, %v2941
        %v2985 = vsub.f32 %v2740, %v2942
        %v2986 = vsub.f32 %v2743, %v2943
        %v2987 = vsub.f32 %v2748, %v2944
        %v2988 = vsub.f32 %v2751, %v2945
        %v2989 = vsub.f32 %v2756, %v2946
        %v2990 = vsub.f32 %v2759, %v2947
        %v2991 = vsub.f32 %v2764, %v2948
        %v2992 = vsub.f32 %v2767, %v2949
        %v2993 = vsub.f32 %v2772, %v2950
        %v2994 = vmul.f32 %v2951, %v2951
        %v2995 = vmul.f32 %v2952, %v2952
        %v2996 = vmul.f32 %v2953, %v2953
        %v2997 = vmul.f32 %v2954, %v2954
        %v2998 = vmul.f32 %v2955, %v2955
        %v2999 = vmul.f32 %v2956, %v2956
        %v3000 = vmul.f32 %v2957, %v2957
        %v3001 = vmul.f32 %v2958, %v2958
        %v3002 = vmul.f32 %v2959, %v2959
        %v3003 = vmul.f32 %v2960, %v2960
        %v3004 = vmul.f32 %v2961, %v2961
        %v3005 = vmul.f32 %v2962, %v2962
        %v3006 = vmul.f32 %v2963, %v2963
        %v3007 = vmul.f32 %v2964, %v2964
        %v3008 = vmul.f32 %v2965, %v2965
        %v3009 = vmul.f32 %v2966, %v2966
        %v3010 = vmul.f32 %v2967, %v2967
        %v3011 = vmul.f32 %v2968, %v2968
        %v3012 = vmul.f32 %v2969, %v2969
        %v3013 = vmul.f32 %v2970, %v2970
        %v3014 = vmul.f32 %v2971, %v2971
        %v3015 = vmul.f32 %v2972, %v2972
        %v3016 = vmul.f32 %v2973, %v2973
        %v3017 = vmul.f32 %v2974, %v2974
        %v3018 = vmul.f32 %v2975, %v2975
        %v3019 = vmul.f32 %v2976, %v2976
        %v3020 = vmul.f32 %v2977, %v2977
        %v3021 = vmul.f32 %v2978, %v2978
        %v3022 = vmul.f32 %v2979, %v2979
        %v3023 = vmul.f32 %v2980, %v2980
        %v3024 = vmul.f32 %v2981, %v2981
        %v3025 = vmul.f32 %v2982, %v2982
        %v3026 = vmul.f32 %v2983, %v2983
        %v3027 = vmul.f32 %v2984, %v2984
        %v3028 = vmul.f32 %v2985, %v2985
        %v3029 = vmul.f32 %v2986, %v2986
        %v3030 = vmul.f32 %v2987, %v2987
        %v3031 = vmul.f32 %v2988, %v2988
        %v3032 = vmul.f32 %v2989, %v2989
        %v3033 = vmul.f32 %v2990, %v2990
        %v3034 = vmul.f32 %v2991, %v2991
        %v3035 = vmul.f32 %v2992, %v2992
        %v3036 = vmul.f32 %v2993, %v2993
        %v3037 = vsel %vm2777, %v2994, 0.0
        %3038 = vadd.xlane.f32.xlu0 %v3037
        %v3039 = vpop.xlane.xlu0 %3038
        %v3040 = vsel %vm2777, %v2995, 0.0
        %3041 = vadd.xlane.f32.xlu0 %v3040
        %v3042 = vpop.xlane.xlu0 %3041
        %v3043 = vsel %vm2777, %v2996, 0.0
        %3044 = vadd.xlane.f32.xlu0 %v3043
        %v3045 = vpop.xlane.xlu0 %3044
        %v3046 = vsel %vm2777, %v2997, 0.0
        %3047 = vadd.xlane.f32.xlu0 %v3046
        %v3048 = vpop.xlane.xlu0 %3047
        %v3049 = vsel %vm2777, %v2998, 0.0
        %3050 = vadd.xlane.f32.xlu0 %v3049
        %v3051 = vpop.xlane.xlu0 %3050
        %v3052 = vsel %vm2777, %v2999, 0.0
        %3053 = vadd.xlane.f32.xlu0 %v3052
        %v3054 = vpop.xlane.xlu0 %3053
        %v3055 = vsel %vm2777, %v3000, 0.0
        %3056 = vadd.xlane.f32.xlu0 %v3055
        %v3057 = vpop.xlane.xlu0 %3056
        %v3058 = vsel %vm2777, %v3001, 0.0
        %3059 = vadd.xlane.f32.xlu0 %v3058
        %v3060 = vpop.xlane.xlu0 %3059
        %v3061 = vsel %vm2777, %v3002, 0.0
        %3062 = vadd.xlane.f32.xlu0 %v3061
        %v3063 = vpop.xlane.xlu0 %3062
        %v3064 = vsel %vm2777, %v3003, 0.0
        %3065 = vadd.xlane.f32.xlu0 %v3064
        %v3066 = vpop.xlane.xlu0 %3065
        %v3067 = vsel %vm2777, %v3004, 0.0
        %3068 = vadd.xlane.f32.xlu0 %v3067
        %v3069 = vpop.xlane.xlu0 %3068
        %v3070 = vsel %vm2777, %v3005, 0.0
        %3071 = vadd.xlane.f32.xlu0 %v3070
        %v3072 = vpop.xlane.xlu0 %3071
        %v3073 = vsel %vm2777, %v3006, 0.0
        %3074 = vadd.xlane.f32.xlu0 %v3073
        %v3075 = vpop.xlane.xlu0 %3074
        %v3076 = vsel %vm2777, %v3007, 0.0
        %3077 = vadd.xlane.f32.xlu0 %v3076
        %v3078 = vpop.xlane.xlu0 %3077
        %v3079 = vsel %vm2777, %v3008, 0.0
        %3080 = vadd.xlane.f32.xlu0 %v3079
        %v3081 = vpop.xlane.xlu0 %3080
        %v3082 = vsel %vm2777, %v3009, 0.0
        %3083 = vadd.xlane.f32.xlu0 %v3082
        %v3084 = vpop.xlane.xlu0 %3083
        %v3085 = vsel %vm2777, %v3010, 0.0
        %3086 = vadd.xlane.f32.xlu0 %v3085
        %v3087 = vpop.xlane.xlu0 %3086
        %v3088 = vsel %vm2777, %v3011, 0.0
        %3089 = vadd.xlane.f32.xlu0 %v3088
        %v3090 = vpop.xlane.xlu0 %3089
        %v3091 = vsel %vm2777, %v3012, 0.0
        %3092 = vadd.xlane.f32.xlu0 %v3091
        %v3093 = vpop.xlane.xlu0 %3092
        %v3094 = vsel %vm2777, %v3013, 0.0
        %3095 = vadd.xlane.f32.xlu0 %v3094
        %v3096 = vpop.xlane.xlu0 %3095
        %v3097 = vsel %vm2777, %v3014, 0.0
        %3098 = vadd.xlane.f32.xlu0 %v3097
        %v3099 = vpop.xlane.xlu0 %3098
        %v3100 = vsel %vm2777, %v3015, 0.0
        %3101 = vadd.xlane.f32.xlu0 %v3100
        %v3102 = vpop.xlane.xlu0 %3101
        %v3103 = vsel %vm2777, %v3016, 0.0
        %3104 = vadd.xlane.f32.xlu0 %v3103
        %v3105 = vpop.xlane.xlu0 %3104
        %v3106 = vsel %vm2777, %v3017, 0.0
        %3107 = vadd.xlane.f32.xlu0 %v3106
        %v3108 = vpop.xlane.xlu0 %3107
        %v3109 = vsel %vm2777, %v3018, 0.0
        %3110 = vadd.xlane.f32.xlu0 %v3109
        %v3111 = vpop.xlane.xlu0 %3110
        %v3112 = vsel %vm2777, %v3019, 0.0
        %3113 = vadd.xlane.f32.xlu0 %v3112
        %v3114 = vpop.xlane.xlu0 %3113
        %v3115 = vsel %vm2777, %v3020, 0.0
        %3116 = vadd.xlane.f32.xlu0 %v3115
        %v3117 = vpop.xlane.xlu0 %3116
        %v3118 = vsel %vm2777, %v3021, 0.0
        %3119 = vadd.xlane.f32.xlu0 %v3118
        %v3120 = vpop.xlane.xlu0 %3119
        %v3121 = vsel %vm2777, %v3022, 0.0
        %3122 = vadd.xlane.f32.xlu0 %v3121
        %v3123 = vpop.xlane.xlu0 %3122
        %v3124 = vsel %vm2777, %v3023, 0.0
        %3125 = vadd.xlane.f32.xlu0 %v3124
        %v3126 = vpop.xlane.xlu0 %3125
        %v3127 = vsel %vm2777, %v3024, 0.0
        %3128 = vadd.xlane.f32.xlu0 %v3127
        %v3129 = vpop.xlane.xlu0 %3128
        %v3130 = vsel %vm2777, %v3025, 0.0
        %3131 = vadd.xlane.f32.xlu0 %v3130
        %v3132 = vpop.xlane.xlu0 %3131
        %v3133 = vsel %vm2777, %v3026, 0.0
        %3134 = vadd.xlane.f32.xlu0 %v3133
        %v3135 = vpop.xlane.xlu0 %3134
        %v3136 = vsel %vm2777, %v3027, 0.0
        %3137 = vadd.xlane.f32.xlu0 %v3136
        %v3138 = vpop.xlane.xlu0 %3137
        %v3139 = vsel %vm2777, %v3028, 0.0
        %3140 = vadd.xlane.f32.xlu0 %v3139
        %v3141 = vpop.xlane.xlu0 %3140
        %v3142 = vsel %vm2777, %v3029, 0.0
        %3143 = vadd.xlane.f32.xlu0 %v3142
        %v3144 = vpop.xlane.xlu0 %3143
        %v3145 = vsel %vm2777, %v3030, 0.0
        %3146 = vadd.xlane.f32.xlu0 %v3145
        %v3147 = vpop.xlane.xlu0 %3146
        %v3148 = vsel %vm2777, %v3031, 0.0
        %3149 = vadd.xlane.f32.xlu0 %v3148
        %v3150 = vpop.xlane.xlu0 %3149
        %v3151 = vsel %vm2777, %v3032, 0.0
        %3152 = vadd.xlane.f32.xlu0 %v3151
        %v3153 = vpop.xlane.xlu0 %3152
        %v3154 = vsel %vm2777, %v3033, 0.0
        %3155 = vadd.xlane.f32.xlu0 %v3154
        %v3156 = vpop.xlane.xlu0 %3155
        %v3157 = vsel %vm2777, %v3034, 0.0
        %3158 = vadd.xlane.f32.xlu0 %v3157
        %v3159 = vpop.xlane.xlu0 %3158
        %v3160 = vsel %vm2777, %v3035, 0.0
        %3161 = vadd.xlane.f32.xlu0 %v3160
        %v3162 = vpop.xlane.xlu0 %3161
        %v3163 = vsel %vm2777, %v3036, 0.0
        %3164 = vadd.xlane.f32.xlu0 %v3163
        %v3165 = vpop.xlane.xlu0 %3164
        %v3166 = vmul.f32 %v3039, %v2907
        %v3167 = vmul.f32 %v3042, %v2907
        %v3168 = vmul.f32 %v3045, %v2907
        %v3169 = vmul.f32 %v3048, %v2907
        %v3170 = vmul.f32 %v3051, %v2907
        %v3171 = vmul.f32 %v3054, %v2907
        %v3172 = vmul.f32 %v3057, %v2907
        %v3173 = vmul.f32 %v3060, %v2907
        %v3174 = vmul.f32 %v3063, %v2907
        %v3175 = vmul.f32 %v3066, %v2907
        %v3176 = vmul.f32 %v3069, %v2907
        %v3177 = vmul.f32 %v3072, %v2907
        %v3178 = vmul.f32 %v3075, %v2907
        %v3179 = vmul.f32 %v3078, %v2907
        %v3180 = vmul.f32 %v3081, %v2907
        %v3181 = vmul.f32 %v3084, %v2907
        %v3182 = vmul.f32 %v3087, %v2907
        %v3183 = vmul.f32 %v3090, %v2907
        %v3184 = vmul.f32 %v3093, %v2907
        %v3185 = vmul.f32 %v3096, %v2907
        %v3186 = vmul.f32 %v3099, %v2907
        %v3187 = vmul.f32 %v3102, %v2907
        %v3188 = vmul.f32 %v3105, %v2907
        %v3189 = vmul.f32 %v3108, %v2907
        %v3190 = vmul.f32 %v3111, %v2907
        %v3191 = vmul.f32 %v3114, %v2907
        %v3192 = vmul.f32 %v3117, %v2907
        %v3193 = vmul.f32 %v3120, %v2907
        %v3194 = vmul.f32 %v3123, %v2907
        %v3195 = vmul.f32 %v3126, %v2907
        %v3196 = vmul.f32 %v3129, %v2907
        %v3197 = vmul.f32 %v3132, %v2907
        %v3198 = vmul.f32 %v3135, %v2907
        %v3199 = vmul.f32 %v3138, %v2907
        %v3200 = vmul.f32 %v3141, %v2907
        %v3201 = vmul.f32 %v3144, %v2907
        %v3202 = vmul.f32 %v3147, %v2907
        %v3203 = vmul.f32 %v3150, %v2907
        %v3204 = vmul.f32 %v3153, %v2907
        %v3205 = vmul.f32 %v3156, %v2907
        %v3206 = vmul.f32 %v3159, %v2907
        %v3207 = vmul.f32 %v3162, %v2907
        %v3208 = vmul.f32 %v3165, %v2907
        %v3209 = vld [vmem:[%s3] sm:$0xff]
        %v3210 = vld [vmem:[%s3 + $0x8] sm:$0xff]
        %v3211 = vld [vmem:[%s3 + $0x10] sm:$0xff]
        %v3212 = vld [vmem:[%s3 + $0x18] sm:$0xff]
        %v3213 = vld [vmem:[%s3 + $0x20] sm:$0xff]
        %v3214 = vld [vmem:[%s3 + $0x28] sm:$0xff]
        %v3215 = vld [vmem:[%s3 + $0x30] sm:$0xff]
        %v3216 = vld [vmem:[%s3 + $0x38] sm:$0xff]
        %v3217 = vld [vmem:[%s3 + $0x40] sm:$0xff]
        %v3218 = vld [vmem:[%s3 + $0x48] sm:$0xff]
        %v3219 = vld [vmem:[%s3 + $0x50] sm:$0xff]
        %v3220 = vld [vmem:[%s3 + $0x58] sm:$0xff]
        %v3221 = vld [vmem:[%s3 + $0x60] sm:$0xff]
        %v3222 = vld [vmem:[%s3 + $0x68] sm:$0xff]
        %v3223 = vld [vmem:[%s3 + $0x70] sm:$0xff]
        %v3224 = vld [vmem:[%s3 + $0x78] sm:$0xff]
        %v3225 = vld [vmem:[%s3 + $0x80] sm:$0xff]
        %v3226 = vld [vmem:[%s3 + $0x88] sm:$0xff]
        %v3227 = vld [vmem:[%s3 + $0x90] sm:$0xff]
        %v3228 = vld [vmem:[%s3 + $0x98] sm:$0xff]
        %v3229 = vld [vmem:[%s3 + $0xa0] sm:$0xff]
        %v3230 = vld [vmem:[%s3 + $0xa8] sm:$0xff]
        %v3231 = vld [vmem:[%s3 + $0xb0] sm:$0xff]
        %v3232 = vld [vmem:[%s3 + $0xb8] sm:$0xff]
        %v3233 = vld [vmem:[%s3 + $0xc0] sm:$0xff]
        %v3234 = vld [vmem:[%s3 + $0xc8] sm:$0xff]
        %v3235 = vld [vmem:[%s3 + $0xd0] sm:$0xff]
        %v3236 = vld [vmem:[%s3 + $0xd8] sm:$0xff]
        %v3237 = vld [vmem:[%s3 + $0xe0] sm:$0xff]
        %v3238 = vld [vmem:[%s3 + $0xe8] sm:$0xff]
        %v3239 = vld [vmem:[%s3 + $0xf0] sm:$0xff]
        %v3240 = vld [vmem:[%s3 + $0xf8] sm:$0xff]
        %v3241 = vld [vmem:[%s3 + $0x100] sm:$0xff]
        %v3242 = vld [vmem:[%s3 + $0x108] sm:$0xff]
        %v3243 = vld [vmem:[%s3 + $0x110] sm:$0xff]
        %v3244 = vld [vmem:[%s3 + $0x118] sm:$0xff]
        %v3245 = vld [vmem:[%s3 + $0x120] sm:$0xff]
        %v3246 = vld [vmem:[%s3 + $0x128] sm:$0xff]
        %v3247 = vld [vmem:[%s3 + $0x130] sm:$0xff]
        %v3248 = vld [vmem:[%s3 + $0x138] sm:$0xff]
        %v3249 = vld [vmem:[%s3 + $0x140] sm:$0xff]
        %v3250 = vld [vmem:[%s3 + $0x148] sm:$0xff]
        %v3251 = vld [vmem:[%s3 + $0x150] sm:$0xff]
        %v3252 = vadd.f32 %v3166, 1e-05
        %v3253 = vadd.f32 %v3167, 1e-05
        %v3254 = vadd.f32 %v3168, 1e-05
        %v3255 = vadd.f32 %v3169, 1e-05
        %v3256 = vadd.f32 %v3170, 1e-05
        %v3257 = vadd.f32 %v3171, 1e-05
        %v3258 = vadd.f32 %v3172, 1e-05
        %v3259 = vadd.f32 %v3173, 1e-05
        %v3260 = vadd.f32 %v3174, 1e-05
        %v3261 = vadd.f32 %v3175, 1e-05
        %v3262 = vadd.f32 %v3176, 1e-05
        %v3263 = vadd.f32 %v3177, 1e-05
        %v3264 = vadd.f32 %v3178, 1e-05
        %v3265 = vadd.f32 %v3179, 1e-05
        %v3266 = vadd.f32 %v3180, 1e-05
        %v3267 = vadd.f32 %v3181, 1e-05
        %v3268 = vadd.f32 %v3182, 1e-05
        %v3269 = vadd.f32 %v3183, 1e-05
        %v3270 = vadd.f32 %v3184, 1e-05
        %v3271 = vadd.f32 %v3185, 1e-05
        %v3272 = vadd.f32 %v3186, 1e-05
        %v3273 = vadd.f32 %v3187, 1e-05
        %v3274 = vadd.f32 %v3188, 1e-05
        %v3275 = vadd.f32 %v3189, 1e-05
        %v3276 = vadd.f32 %v3190, 1e-05
        %v3277 = vadd.f32 %v3191, 1e-05
        %v3278 = vadd.f32 %v3192, 1e-05
        %v3279 = vadd.f32 %v3193, 1e-05
        %v3280 = vadd.f32 %v3194, 1e-05
        %v3281 = vadd.f32 %v3195, 1e-05
        %v3282 = vadd.f32 %v3196, 1e-05
        %v3283 = vadd.f32 %v3197, 1e-05
        %v3284 = vadd.f32 %v3198, 1e-05
        %v3285 = vadd.f32 %v3199, 1e-05
        %v3286 = vadd.f32 %v3200, 1e-05
        %v3287 = vadd.f32 %v3201, 1e-05
        %v3288 = vadd.f32 %v3202, 1e-05
        %v3289 = vadd.f32 %v3203, 1e-05
        %v3290 = vadd.f32 %v3204, 1e-05
        %v3291 = vadd.f32 %v3205, 1e-05
        %v3292 = vadd.f32 %v3206, 1e-05
        %v3293 = vadd.f32 %v3207, 1e-05
        %v3294 = vadd.f32 %v3208, 1e-05
        %v3295 = vrsqrt.pop %v3252
        %v3296 = vrsqrt.pop %v3253
        %v3297 = vrsqrt.pop %v3254
        %v3298 = vrsqrt.pop %v3255
        %v3299 = vrsqrt.pop %v3256
        %v3300 = vrsqrt.pop %v3257
        %v3301 = vrsqrt.pop %v3258
        %v3302 = vrsqrt.pop %v3259
        %v3303 = vrsqrt.pop %v3260
        %v3304 = vrsqrt.pop %v3261
        %v3305 = vrsqrt.pop %v3262
        %v3306 = vrsqrt.pop %v3263
        %v3307 = vrsqrt.pop %v3264
        %v3308 = vrsqrt.pop %v3265
        %v3309 = vrsqrt.pop %v3266
        %v3310 = vrsqrt.pop %v3267
        %v3311 = vrsqrt.pop %v3268
        %v3312 = vrsqrt.pop %v3269
        %v3313 = vrsqrt.pop %v3270
        %v3314 = vrsqrt.pop %v3271
        %v3315 = vrsqrt.pop %v3272
        %v3316 = vrsqrt.pop %v3273
        %v3317 = vrsqrt.pop %v3274
        %v3318 = vrsqrt.pop %v3275
        %v3319 = vrsqrt.pop %v3276
        %v3320 = vrsqrt.pop %v3277
        %v3321 = vrsqrt.pop %v3278
        %v3322 = vrsqrt.pop %v3279
        %v3323 = vrsqrt.pop %v3280
        %v3324 = vrsqrt.pop %v3281
        %v3325 = vrsqrt.pop %v3282
        %v3326 = vrsqrt.pop %v3283
        %v3327 = vrsqrt.pop %v3284
        %v3328 = vrsqrt.pop %v3285
        %v3329 = vrsqrt.pop %v3286
        %v3330 = vrsqrt.pop %v3287
        %v3331 = vrsqrt.pop %v3288
        %v3332 = vrsqrt.pop %v3289
        %v3333 = vrsqrt.pop %v3290
        %v3334 = vrsqrt.pop %v3291
        %v3335 = vrsqrt.pop %v3292
        %v3336 = vrsqrt.pop %v3293
        %v3337 = vrsqrt.pop %v3294
        %v3338 = vmul.f32 %v3209, %v3295
        %v3339 = vmul.f32 %v3210, %v3296
        %v3340 = vmul.f32 %v3211, %v3297
        %v3341 = vmul.f32 %v3212, %v3298
        %v3342 = vmul.f32 %v3213, %v3299
        %v3343 = vmul.f32 %v3214, %v3300
        %v3344 = vmul.f32 %v3215, %v3301
        %v3345 = vmul.f32 %v3216, %v3302
        %v3346 = vmul.f32 %v3217, %v3303
        %v3347 = vmul.f32 %v3218, %v3304
        %v3348 = vmul.f32 %v3219, %v3305
        %v3349 = vmul.f32 %v3220, %v3306
        %v3350 = vmul.f32 %v3221, %v3307
        %v3351 = vmul.f32 %v3222, %v3308
        %v3352 = vmul.f32 %v3223, %v3309
        %v3353 = vmul.f32 %v3224, %v3310
        %v3354 = vmul.f32 %v3225, %v3311
        %v3355 = vmul.f32 %v3226, %v3312
        %v3356 = vmul.f32 %v3227, %v3313
        %v3357 = vmul.f32 %v3228, %v3314
        %v3358 = vmul.f32 %v3229, %v3315
        %v3359 = vmul.f32 %v3230, %v3316
        %v3360 = vmul.f32 %v3231, %v3317
        %v3361 = vmul.f32 %v3232, %v3318
        %v3362 = vmul.f32 %v3233, %v3319
        %v3363 = vmul.f32 %v3234, %v3320
        %v3364 = vmul.f32 %v3235, %v3321
        %v3365 = vmul.f32 %v3236, %v3322
        %v3366 = vmul.f32 %v3237, %v3323
        %v3367 = vmul.f32 %v3238, %v3324
        %v3368 = vmul.f32 %v3239, %v3325
        %v3369 = vmul.f32 %v3240, %v3326
        %v3370 = vmul.f32 %v3241, %v3327
        %v3371 = vmul.f32 %v3242, %v3328
        %v3372 = vmul.f32 %v3243, %v3329
        %v3373 = vmul.f32 %v3244, %v3330
        %v3374 = vmul.f32 %v3245, %v3331
        %v3375 = vmul.f32 %v3246, %v3332
        %v3376 = vmul.f32 %v3247, %v3333
        %v3377 = vmul.f32 %v3248, %v3334
        %v3378 = vmul.f32 %v3249, %v3335
        %v3379 = vmul.f32 %v3250, %v3336
        %v3380 = vmul.f32 %v3251, %v3337
        %3382 = vset.pattern.permute.xlu0 0
        %3383 = vperm.xlu0 %3382, %v3338
        %v3384 = vpop.permute.xlu0 %3383
        %3387 = vset.pattern.permute.xlu0 0
        %3388 = vperm.xlu0 %3387, %v3339
        %v3389 = vpop.permute.xlu0 %3388
        %3392 = vset.pattern.permute.xlu0 0
        %3393 = vperm.xlu0 %3392, %v3340
        %v3394 = vpop.permute.xlu0 %3393
        %3397 = vset.pattern.permute.xlu0 0
        %3398 = vperm.xlu0 %3397, %v3341
        %v3399 = vpop.permute.xlu0 %3398
        %3402 = vset.pattern.permute.xlu0 0
        %3403 = vperm.xlu0 %3402, %v3342
        %v3404 = vpop.permute.xlu0 %3403
        %3407 = vset.pattern.permute.xlu0 0
        %3408 = vperm.xlu0 %3407, %v3343
        %v3409 = vpop.permute.xlu0 %3408
        %3412 = vset.pattern.permute.xlu0 0
        %3413 = vperm.xlu0 %3412, %v3344
        %v3414 = vpop.permute.xlu0 %3413
        %3417 = vset.pattern.permute.xlu0 0
        %3418 = vperm.xlu0 %3417, %v3345
        %v3419 = vpop.permute.xlu0 %3418
        %3422 = vset.pattern.permute.xlu0 0
        %3423 = vperm.xlu0 %3422, %v3346
        %v3424 = vpop.permute.xlu0 %3423
        %3427 = vset.pattern.permute.xlu0 0
        %3428 = vperm.xlu0 %3427, %v3347
        %v3429 = vpop.permute.xlu0 %3428
        %3432 = vset.pattern.permute.xlu0 0
        %3433 = vperm.xlu0 %3432, %v3348
        %v3434 = vpop.permute.xlu0 %3433
        %3437 = vset.pattern.permute.xlu0 0
        %3438 = vperm.xlu0 %3437, %v3349
        %v3439 = vpop.permute.xlu0 %3438
        %3442 = vset.pattern.permute.xlu0 0
        %3443 = vperm.xlu0 %3442, %v3350
        %v3444 = vpop.permute.xlu0 %3443
        %3447 = vset.pattern.permute.xlu0 0
        %3448 = vperm.xlu0 %3447, %v3351
        %v3449 = vpop.permute.xlu0 %3448
        %3452 = vset.pattern.permute.xlu0 0
        %3453 = vperm.xlu0 %3452, %v3352
        %v3454 = vpop.permute.xlu0 %3453
        %3457 = vset.pattern.permute.xlu0 0
        %3458 = vperm.xlu0 %3457, %v3353
        %v3459 = vpop.permute.xlu0 %3458
        %3462 = vset.pattern.permute.xlu0 0
        %3463 = vperm.xlu0 %3462, %v3354
        %v3464 = vpop.permute.xlu0 %3463
        %3467 = vset.pattern.permute.xlu0 0
        %3468 = vperm.xlu0 %3467, %v3355
        %v3469 = vpop.permute.xlu0 %3468
        %3472 = vset.pattern.permute.xlu0 0
        %3473 = vperm.xlu0 %3472, %v3356
        %v3474 = vpop.permute.xlu0 %3473
        %3477 = vset.pattern.permute.xlu0 0
        %3478 = vperm.xlu0 %3477, %v3357
        %v3479 = vpop.permute.xlu0 %3478
        %3482 = vset.pattern.permute.xlu0 0
        %3483 = vperm.xlu0 %3482, %v3358
        %v3484 = vpop.permute.xlu0 %3483
        %3487 = vset.pattern.permute.xlu0 0
        %3488 = vperm.xlu0 %3487, %v3359
        %v3489 = vpop.permute.xlu0 %3488
        %3492 = vset.pattern.permute.xlu0 0
        %3493 = vperm.xlu0 %3492, %v3360
        %v3494 = vpop.permute.xlu0 %3493
        %3497 = vset.pattern.permute.xlu0 0
        %3498 = vperm.xlu0 %3497, %v3361
        %v3499 = vpop.permute.xlu0 %3498
        %3502 = vset.pattern.permute.xlu0 0
        %3503 = vperm.xlu0 %3502, %v3362
        %v3504 = vpop.permute.xlu0 %3503
        %3507 = vset.pattern.permute.xlu0 0
        %3508 = vperm.xlu0 %3507, %v3363
        %v3509 = vpop.permute.xlu0 %3508
        %3512 = vset.pattern.permute.xlu0 0
        %3513 = vperm.xlu0 %3512, %v3364
        %v3514 = vpop.permute.xlu0 %3513
        %3517 = vset.pattern.permute.xlu0 0
        %3518 = vperm.xlu0 %3517, %v3365
        %v3519 = vpop.permute.xlu0 %3518
        %3522 = vset.pattern.permute.xlu0 0
        %3523 = vperm.xlu0 %3522, %v3366
        %v3524 = vpop.permute.xlu0 %3523
        %3527 = vset.pattern.permute.xlu0 0
        %3528 = vperm.xlu0 %3527, %v3367
        %v3529 = vpop.permute.xlu0 %3528
        %3532 = vset.pattern.permute.xlu0 0
        %3533 = vperm.xlu0 %3532, %v3368
        %v3534 = vpop.permute.xlu0 %3533
        %3537 = vset.pattern.permute.xlu0 0
        %3538 = vperm.xlu0 %3537, %v3369
        %v3539 = vpop.permute.xlu0 %3538
        %3542 = vset.pattern.permute.xlu0 0
        %3543 = vperm.xlu0 %3542, %v3370
        %v3544 = vpop.permute.xlu0 %3543
        %3547 = vset.pattern.permute.xlu0 0
        %3548 = vperm.xlu0 %3547, %v3371
        %v3549 = vpop.permute.xlu0 %3548
        %3552 = vset.pattern.permute.xlu0 0
        %3553 = vperm.xlu0 %3552, %v3372
        %v3554 = vpop.permute.xlu0 %3553
        %3557 = vset.pattern.permute.xlu0 0
        %3558 = vperm.xlu0 %3557, %v3373
        %v3559 = vpop.permute.xlu0 %3558
        %3562 = vset.pattern.permute.xlu0 0
        %3563 = vperm.xlu0 %3562, %v3374
        %v3564 = vpop.permute.xlu0 %3563
        %3567 = vset.pattern.permute.xlu0 0
        %3568 = vperm.xlu0 %3567, %v3375
        %v3569 = vpop.permute.xlu0 %3568
        %3572 = vset.pattern.permute.xlu0 0
        %3573 = vperm.xlu0 %3572, %v3376
        %v3574 = vpop.permute.xlu0 %3573
        %3577 = vset.pattern.permute.xlu0 0
        %3578 = vperm.xlu0 %3577, %v3377
        %v3579 = vpop.permute.xlu0 %3578
        %3582 = vset.pattern.permute.xlu0 0
        %3583 = vperm.xlu0 %3582, %v3378
        %v3584 = vpop.permute.xlu0 %3583
        %3587 = vset.pattern.permute.xlu0 0
        %3588 = vperm.xlu0 %3587, %v3379
        %v3589 = vpop.permute.xlu0 %3588
        %3592 = vset.pattern.permute.xlu0 0
        %3593 = vperm.xlu0 %3592, %v3380
        %v3594 = vpop.permute.xlu0 %3593
        %v3596 = vmul.f32 %v2951, %v3384
        %v3597 = vmul.f32 %v2952, %v3389
        %v3598 = vmul.f32 %v2953, %v3394
        %v3599 = vmul.f32 %v2954, %v3399
        %v3600 = vmul.f32 %v2955, %v3404
        %v3601 = vmul.f32 %v2956, %v3409
        %v3602 = vmul.f32 %v2957, %v3414
        %v3603 = vmul.f32 %v2958, %v3419
        %v3604 = vmul.f32 %v2959, %v3424
        %v3605 = vmul.f32 %v2960, %v3429
        %v3606 = vmul.f32 %v2961, %v3434
        %v3607 = vmul.f32 %v2962, %v3439
        %v3608 = vmul.f32 %v2963, %v3444
        %v3609 = vmul.f32 %v2964, %v3449
        %v3610 = vmul.f32 %v2965, %v3454
        %v3611 = vmul.f32 %v2966, %v3459
        %v3612 = vmul.f32 %v2967, %v3464
        %v3613 = vmul.f32 %v2968, %v3469
        %v3614 = vmul.f32 %v2969, %v3474
        %v3615 = vmul.f32 %v2970, %v3479
        %v3616 = vmul.f32 %v2971, %v3484
        %v3617 = vmul.f32 %v2972, %v3489
        %v3618 = vmul.f32 %v2973, %v3494
        %v3619 = vmul.f32 %v2974, %v3499
        %v3620 = vmul.f32 %v2975, %v3504
        %v3621 = vmul.f32 %v2976, %v3509
        %v3622 = vmul.f32 %v2977, %v3514
        %v3623 = vmul.f32 %v2978, %v3519
        %v3624 = vmul.f32 %v2979, %v3524
        %v3625 = vmul.f32 %v2980, %v3529
        %v3626 = vmul.f32 %v2981, %v3534
        %v3627 = vmul.f32 %v2982, %v3539
        %v3628 = vmul.f32 %v2983, %v3544
        %v3629 = vmul.f32 %v2984, %v3549
        %v3630 = vmul.f32 %v2985, %v3554
        %v3631 = vmul.f32 %v2986, %v3559
        %v3632 = vmul.f32 %v2987, %v3564
        %v3633 = vmul.f32 %v2988, %v3569
        %v3634 = vmul.f32 %v2989, %v3574
        %v3635 = vmul.f32 %v2990, %v3579
        %v3636 = vmul.f32 %v2991, %v3584
        %v3637 = vmul.f32 %v2992, %v3589
        %v3638 = vmul.f32 %v2993, %v3594
        %v3639 = vld [vmem:[%s4] sm:$0xff]
        %v3640 = vld [vmem:[%s4 + $0x8] sm:$0xff]
        %v3641 = vld [vmem:[%s4 + $0x10] sm:$0xff]
        %v3642 = vld [vmem:[%s4 + $0x18] sm:$0xff]
        %v3643 = vld [vmem:[%s4 + $0x20] sm:$0xff]
        %v3644 = vld [vmem:[%s4 + $0x28] sm:$0xff]
        %v3645 = vld [vmem:[%s4 + $0x30] sm:$0xff]
        %v3646 = vld [vmem:[%s4 + $0x38] sm:$0xff]
        %v3647 = vld [vmem:[%s4 + $0x40] sm:$0xff]
        %v3648 = vld [vmem:[%s4 + $0x48] sm:$0xff]
        %v3649 = vld [vmem:[%s4 + $0x50] sm:$0xff]
        %v3650 = vld [vmem:[%s4 + $0x58] sm:$0xff]
        %v3651 = vld [vmem:[%s4 + $0x60] sm:$0xff]
        %v3652 = vld [vmem:[%s4 + $0x68] sm:$0xff]
        %v3653 = vld [vmem:[%s4 + $0x70] sm:$0xff]
        %v3654 = vld [vmem:[%s4 + $0x78] sm:$0xff]
        %v3655 = vld [vmem:[%s4 + $0x80] sm:$0xff]
        %v3656 = vld [vmem:[%s4 + $0x88] sm:$0xff]
        %v3657 = vld [vmem:[%s4 + $0x90] sm:$0xff]
        %v3658 = vld [vmem:[%s4 + $0x98] sm:$0xff]
        %v3659 = vld [vmem:[%s4 + $0xa0] sm:$0xff]
        %v3660 = vld [vmem:[%s4 + $0xa8] sm:$0xff]
        %v3661 = vld [vmem:[%s4 + $0xb0] sm:$0xff]
        %v3662 = vld [vmem:[%s4 + $0xb8] sm:$0xff]
        %v3663 = vld [vmem:[%s4 + $0xc0] sm:$0xff]
        %v3664 = vld [vmem:[%s4 + $0xc8] sm:$0xff]
        %v3665 = vld [vmem:[%s4 + $0xd0] sm:$0xff]
        %v3666 = vld [vmem:[%s4 + $0xd8] sm:$0xff]
        %v3667 = vld [vmem:[%s4 + $0xe0] sm:$0xff]
        %v3668 = vld [vmem:[%s4 + $0xe8] sm:$0xff]
        %v3669 = vld [vmem:[%s4 + $0xf0] sm:$0xff]
        %v3670 = vld [vmem:[%s4 + $0xf8] sm:$0xff]
        %v3671 = vld [vmem:[%s4 + $0x100] sm:$0xff]
        %v3672 = vld [vmem:[%s4 + $0x108] sm:$0xff]
        %v3673 = vld [vmem:[%s4 + $0x110] sm:$0xff]
        %v3674 = vld [vmem:[%s4 + $0x118] sm:$0xff]
        %v3675 = vld [vmem:[%s4 + $0x120] sm:$0xff]
        %v3676 = vld [vmem:[%s4 + $0x128] sm:$0xff]
        %v3677 = vld [vmem:[%s4 + $0x130] sm:$0xff]
        %v3678 = vld [vmem:[%s4 + $0x138] sm:$0xff]
        %v3679 = vld [vmem:[%s4 + $0x140] sm:$0xff]
        %v3680 = vld [vmem:[%s4 + $0x148] sm:$0xff]
        %v3681 = vld [vmem:[%s4 + $0x150] sm:$0xff]
        %3683 = vset.pattern.permute.xlu0 0
        %3684 = vperm.xlu0 %3683, %v3639
        %v3685 = vpop.permute.xlu0 %3684
        %3688 = vset.pattern.permute.xlu0 0
        %3689 = vperm.xlu0 %3688, %v3640
        %v3690 = vpop.permute.xlu0 %3689
        %3693 = vset.pattern.permute.xlu0 0
        %3694 = vperm.xlu0 %3693, %v3641
        %v3695 = vpop.permute.xlu0 %3694
        %3698 = vset.pattern.permute.xlu0 0
        %3699 = vperm.xlu0 %3698, %v3642
        %v3700 = vpop.permute.xlu0 %3699
        %3703 = vset.pattern.permute.xlu0 0
        %3704 = vperm.xlu0 %3703, %v3643
        %v3705 = vpop.permute.xlu0 %3704
        %3708 = vset.pattern.permute.xlu0 0
        %3709 = vperm.xlu0 %3708, %v3644
        %v3710 = vpop.permute.xlu0 %3709
        %3713 = vset.pattern.permute.xlu0 0
        %3714 = vperm.xlu0 %3713, %v3645
        %v3715 = vpop.permute.xlu0 %3714
        %3718 = vset.pattern.permute.xlu0 0
        %3719 = vperm.xlu0 %3718, %v3646
        %v3720 = vpop.permute.xlu0 %3719
        %3723 = vset.pattern.permute.xlu0 0
        %3724 = vperm.xlu0 %3723, %v3647
        %v3725 = vpop.permute.xlu0 %3724
        %3728 = vset.pattern.permute.xlu0 0
        %3729 = vperm.xlu0 %3728, %v3648
        %v3730 = vpop.permute.xlu0 %3729
        %3733 = vset.pattern.permute.xlu0 0
        %3734 = vperm.xlu0 %3733, %v3649
        %v3735 = vpop.permute.xlu0 %3734
        %3738 = vset.pattern.permute.xlu0 0
        %3739 = vperm.xlu0 %3738, %v3650
        %v3740 = vpop.permute.xlu0 %3739
        %3743 = vset.pattern.permute.xlu0 0
        %3744 = vperm.xlu0 %3743, %v3651
        %v3745 = vpop.permute.xlu0 %3744
        %3748 = vset.pattern.permute.xlu0 0
        %3749 = vperm.xlu0 %3748, %v3652
        %v3750 = vpop.permute.xlu0 %3749
        %3753 = vset.pattern.permute.xlu0 0
        %3754 = vperm.xlu0 %3753, %v3653
        %v3755 = vpop.permute.xlu0 %3754
        %3758 = vset.pattern.permute.xlu0 0
        %3759 = vperm.xlu0 %3758, %v3654
        %v3760 = vpop.permute.xlu0 %3759
        %3763 = vset.pattern.permute.xlu0 0
        %3764 = vperm.xlu0 %3763, %v3655
        %v3765 = vpop.permute.xlu0 %3764
        %3768 = vset.pattern.permute.xlu0 0
        %3769 = vperm.xlu0 %3768, %v3656
        %v3770 = vpop.permute.xlu0 %3769
        %3773 = vset.pattern.permute.xlu0 0
        %3774 = vperm.xlu0 %3773, %v3657
        %v3775 = vpop.permute.xlu0 %3774
        %3778 = vset.pattern.permute.xlu0 0
        %3779 = vperm.xlu0 %3778, %v3658
        %v3780 = vpop.permute.xlu0 %3779
        %3783 = vset.pattern.permute.xlu0 0
        %3784 = vperm.xlu0 %3783, %v3659
        %v3785 = vpop.permute.xlu0 %3784
        %3788 = vset.pattern.permute.xlu0 0
        %3789 = vperm.xlu0 %3788, %v3660
        %v3790 = vpop.permute.xlu0 %3789
        %3793 = vset.pattern.permute.xlu0 0
        %3794 = vperm.xlu0 %3793, %v3661
        %v3795 = vpop.permute.xlu0 %3794
        %3798 = vset.pattern.permute.xlu0 0
        %3799 = vperm.xlu0 %3798, %v3662
        %v3800 = vpop.permute.xlu0 %3799
        %3803 = vset.pattern.permute.xlu0 0
        %3804 = vperm.xlu0 %3803, %v3663
        %v3805 = vpop.permute.xlu0 %3804
        %3808 = vset.pattern.permute.xlu0 0
        %3809 = vperm.xlu0 %3808, %v3664
        %v3810 = vpop.permute.xlu0 %3809
        %3813 = vset.pattern.permute.xlu0 0
        %3814 = vperm.xlu0 %3813, %v3665
        %v3815 = vpop.permute.xlu0 %3814
        %3818 = vset.pattern.permute.xlu0 0
        %3819 = vperm.xlu0 %3818, %v3666
        %v3820 = vpop.permute.xlu0 %3819
        %3823 = vset.pattern.permute.xlu0 0
        %3824 = vperm.xlu0 %3823, %v3667
        %v3825 = vpop.permute.xlu0 %3824
        %3828 = vset.pattern.permute.xlu0 0
        %3829 = vperm.xlu0 %3828, %v3668
        %v3830 = vpop.permute.xlu0 %3829
        %3833 = vset.pattern.permute.xlu0 0
        %3834 = vperm.xlu0 %3833, %v3669
        %v3835 = vpop.permute.xlu0 %3834
        %3838 = vset.pattern.permute.xlu0 0
        %3839 = vperm.xlu0 %3838, %v3670
        %v3840 = vpop.permute.xlu0 %3839
        %3843 = vset.pattern.permute.xlu0 0
        %3844 = vperm.xlu0 %3843, %v3671
        %v3845 = vpop.permute.xlu0 %3844
        %3848 = vset.pattern.permute.xlu0 0
        %3849 = vperm.xlu0 %3848, %v3672
        %v3850 = vpop.permute.xlu0 %3849
        %3853 = vset.pattern.permute.xlu0 0
        %3854 = vperm.xlu0 %3853, %v3673
        %v3855 = vpop.permute.xlu0 %3854
        %3858 = vset.pattern.permute.xlu0 0
        %3859 = vperm.xlu0 %3858, %v3674
        %v3860 = vpop.permute.xlu0 %3859
        %3863 = vset.pattern.permute.xlu0 0
        %3864 = vperm.xlu0 %3863, %v3675
        %v3865 = vpop.permute.xlu0 %3864
        %3868 = vset.pattern.permute.xlu0 0
        %3869 = vperm.xlu0 %3868, %v3676
        %v3870 = vpop.permute.xlu0 %3869
        %3873 = vset.pattern.permute.xlu0 0
        %3874 = vperm.xlu0 %3873, %v3677
        %v3875 = vpop.permute.xlu0 %3874
        %3878 = vset.pattern.permute.xlu0 0
        %3879 = vperm.xlu0 %3878, %v3678
        %v3880 = vpop.permute.xlu0 %3879
        %3883 = vset.pattern.permute.xlu0 0
        %3884 = vperm.xlu0 %3883, %v3679
        %v3885 = vpop.permute.xlu0 %3884
        %3888 = vset.pattern.permute.xlu0 0
        %3889 = vperm.xlu0 %3888, %v3680
        %v3890 = vpop.permute.xlu0 %3889
        %3893 = vset.pattern.permute.xlu0 0
        %3894 = vperm.xlu0 %3893, %v3681
        %v3895 = vpop.permute.xlu0 %3894
        %v3897 = vadd.f32 %v3596, %v3685
        %v3898 = vadd.f32 %v3597, %v3690
        %v3899 = vadd.f32 %v3598, %v3695
        %v3900 = vadd.f32 %v3599, %v3700
        %v3901 = vadd.f32 %v3600, %v3705
        %v3902 = vadd.f32 %v3601, %v3710
        %v3903 = vadd.f32 %v3602, %v3715
        %v3904 = vadd.f32 %v3603, %v3720
        %v3905 = vadd.f32 %v3604, %v3725
        %v3906 = vadd.f32 %v3605, %v3730
        %v3907 = vadd.f32 %v3606, %v3735
        %v3908 = vadd.f32 %v3607, %v3740
        %v3909 = vadd.f32 %v3608, %v3745
        %v3910 = vadd.f32 %v3609, %v3750
        %v3911 = vadd.f32 %v3610, %v3755
        %v3912 = vadd.f32 %v3611, %v3760
        %v3913 = vadd.f32 %v3612, %v3765
        %v3914 = vadd.f32 %v3613, %v3770
        %v3915 = vadd.f32 %v3614, %v3775
        %v3916 = vadd.f32 %v3615, %v3780
        %v3917 = vadd.f32 %v3616, %v3785
        %v3918 = vadd.f32 %v3617, %v3790
        %v3919 = vadd.f32 %v3618, %v3795
        %v3920 = vadd.f32 %v3619, %v3800
        %v3921 = vadd.f32 %v3620, %v3805
        %v3922 = vadd.f32 %v3621, %v3810
        %v3923 = vadd.f32 %v3622, %v3815
        %v3924 = vadd.f32 %v3623, %v3820
        %v3925 = vadd.f32 %v3624, %v3825
        %v3926 = vadd.f32 %v3625, %v3830
        %v3927 = vadd.f32 %v3626, %v3835
        %v3928 = vadd.f32 %v3627, %v3840
        %v3929 = vadd.f32 %v3628, %v3845
        %v3930 = vadd.f32 %v3629, %v3850
        %v3931 = vadd.f32 %v3630, %v3855
        %v3932 = vadd.f32 %v3631, %v3860
        %v3933 = vadd.f32 %v3632, %v3865
        %v3934 = vadd.f32 %v3633, %v3870
        %v3935 = vadd.f32 %v3634, %v3875
        %v3936 = vadd.f32 %v3635, %v3880
        %v3937 = vadd.f32 %v3636, %v3885
        %v3938 = vadd.f32 %v3637, %v3890
        %v3939 = vadd.f32 %v3638, %v3895
        %v3940 = vpack.c.bf16 %v3898, %v3897
        %v3941 = vpack.c.bf16 %v3900, %v3899
        %v3942 = vpack.c.bf16 %v3902, %v3901
        %v3943 = vpack.c.bf16 %v3904, %v3903
        %v3944 = vpack.c.bf16 %v3906, %v3905
        %v3945 = vpack.c.bf16 %v3908, %v3907
        %v3946 = vpack.c.bf16 %v3910, %v3909
        %v3947 = vpack.c.bf16 %v3912, %v3911
        %v3948 = vpack.c.bf16 %v3914, %v3913
        %v3949 = vpack.c.bf16 %v3916, %v3915
        %v3950 = vpack.c.bf16 %v3918, %v3917
        %v3951 = vpack.c.bf16 %v3920, %v3919
        %v3952 = vpack.c.bf16 %v3922, %v3921
        %v3953 = vpack.c.bf16 %v3924, %v3923
        %v3954 = vpack.c.bf16 %v3926, %v3925
        %v3955 = vpack.c.bf16 %v3928, %v3927
        %v3956 = vpack.c.bf16 %v3930, %v3929
        %v3957 = vpack.c.bf16 %v3932, %v3931
        %v3958 = vpack.c.bf16 %v3934, %v3933
        %v3959 = vpack.c.bf16 %v3936, %v3935
        %v3960 = vpack.c.bf16 %v3938, %v3937
        %v3961 = vpack.c.bf16 %v3939, %v3939
        %v3984 = vunpack.c.l.b16 %v3940
        %v3985 = vunpack.c.h.b16 %v3940
        %v3986 = vunpack.c.l.b16 %v3941
        %v3987 = vunpack.c.h.b16 %v3941
        %v3988 = vunpack.c.l.b16 %v3942
        %v3989 = vunpack.c.h.b16 %v3942
        %v3990 = vunpack.c.l.b16 %v3943
        %v3991 = vunpack.c.h.b16 %v3943
        %v3992 = vunpack.c.l.b16 %v3944
        %v3993 = vunpack.c.h.b16 %v3944
        %v3994 = vunpack.c.l.b16 %v3945
        %v3995 = vunpack.c.h.b16 %v3945
        %v3996 = vunpack.c.l.b16 %v3946
        %v3997 = vunpack.c.h.b16 %v3946
        %v3998 = vunpack.c.l.b16 %v3947
        %v3999 = vunpack.c.h.b16 %v3947
        %v4000 = vunpack.c.l.b16 %v3948
        %v4001 = vunpack.c.h.b16 %v3948
        %v4002 = vunpack.c.l.b16 %v3949
        %v4003 = vunpack.c.h.b16 %v3949
        %v4004 = vunpack.c.l.b16 %v3950
        %v4005 = vunpack.c.h.b16 %v3950
        %v4006 = vunpack.c.l.b16 %v3951
        %v4007 = vunpack.c.h.b16 %v3951
        %v4008 = vunpack.c.l.b16 %v3952
        %v4009 = vunpack.c.h.b16 %v3952
        %v4010 = vunpack.c.l.b16 %v3953
        %v4011 = vunpack.c.h.b16 %v3953
        %v4012 = vunpack.c.l.b16 %v3954
        %v4013 = vunpack.c.h.b16 %v3954
        %v4014 = vunpack.c.l.b16 %v3955
        %v4015 = vunpack.c.h.b16 %v3955
        %v4016 = vunpack.c.l.b16 %v3956
        %v4017 = vunpack.c.h.b16 %v3956
        %v4018 = vunpack.c.l.b16 %v3957
        %v4019 = vunpack.c.h.b16 %v3957
        %v4020 = vunpack.c.l.b16 %v3958
        %v4021 = vunpack.c.h.b16 %v3958
        %v4022 = vunpack.c.l.b16 %v3959
        %v4023 = vunpack.c.h.b16 %v3959
        %v4024 = vunpack.c.l.b16 %v3960
        %v4025 = vunpack.c.h.b16 %v3960
        %v4026 = vunpack.c.l.b16 %v3961
        %v4027 = vpack.c.b16 %v3984, %v3984
        %v4028 = vpack.c.b16 %v3985, %v3985
        %v4029 = vpack.c.b16 %v3986, %v3986
        %v4030 = vpack.c.b16 %v3987, %v3987
        %v4031 = vpack.c.b16 %v3988, %v3988
        %v4032 = vpack.c.b16 %v3989, %v3989
        %v4033 = vpack.c.b16 %v3990, %v3990
        %v4034 = vpack.c.b16 %v3991, %v3991
        %v4035 = vpack.c.b16 %v3992, %v3992
        %v4036 = vpack.c.b16 %v3993, %v3993
        %v4037 = vpack.c.b16 %v3994, %v3994
        %v4038 = vpack.c.b16 %v3995, %v3995
        %v4039 = vpack.c.b16 %v3996, %v3996
        %v4040 = vpack.c.b16 %v3997, %v3997
        %v4041 = vpack.c.b16 %v3998, %v3998
        %v4042 = vpack.c.b16 %v3999, %v3999
        %v4043 = vpack.c.b16 %v4000, %v4000
        %v4044 = vpack.c.b16 %v4001, %v4001
        %v4045 = vpack.c.b16 %v4002, %v4002
        %v4046 = vpack.c.b16 %v4003, %v4003
        %v4047 = vpack.c.b16 %v4004, %v4004
        %v4048 = vpack.c.b16 %v4005, %v4005
        %v4049 = vpack.c.b16 %v4006, %v4006
        %v4050 = vpack.c.b16 %v4007, %v4007
        %v4051 = vpack.c.b16 %v4008, %v4008
        %v4052 = vpack.c.b16 %v4009, %v4009
        %v4053 = vpack.c.b16 %v4010, %v4010
        %v4054 = vpack.c.b16 %v4011, %v4011
        %v4055 = vpack.c.b16 %v4012, %v4012
        %v4056 = vpack.c.b16 %v4013, %v4013
        %v4057 = vpack.c.b16 %v4014, %v4014
        %v4058 = vpack.c.b16 %v4015, %v4015
        %v4059 = vpack.c.b16 %v4016, %v4016
        %v4060 = vpack.c.b16 %v4017, %v4017
        %v4061 = vpack.c.b16 %v4018, %v4018
        %v4062 = vpack.c.b16 %v4019, %v4019
        %v4063 = vpack.c.b16 %v4020, %v4020
        %v4064 = vpack.c.b16 %v4021, %v4021
        %v4065 = vpack.c.b16 %v4022, %v4022
        %v4066 = vpack.c.b16 %v4023, %v4023
        %v4067 = vpack.c.b16 %v4024, %v4024
        %v4068 = vpack.c.b16 %v4025, %v4025
        %v4069 = vpack.c.b16 %v4026, %v4026
        %vm4113 = vcmask 396288
        %4114 = vst.msk [vmem:[#allocation2] sm:$0xf] %vm4113, %v4027
        %4115 = vst.msk [vmem:[#allocation2 + $0x4] sm:$0xf] %vm4113, %v4028
        %4116 = vst.msk [vmem:[#allocation2 + $0x8] sm:$0xf] %vm4113, %v4029
        %4117 = vst.msk [vmem:[#allocation2 + $0xc] sm:$0xf] %vm4113, %v4030
        %4118 = vst.msk [vmem:[#allocation2 + $0x10] sm:$0xf] %vm4113, %v4031
        %4119 = vst.msk [vmem:[#allocation2 + $0x14] sm:$0xf] %vm4113, %v4032
        %4120 = vst.msk [vmem:[#allocation2 + $0x18] sm:$0xf] %vm4113, %v4033
        %4121 = vst.msk [vmem:[#allocation2 + $0x1c] sm:$0xf] %vm4113, %v4034
        %4122 = vst.msk [vmem:[#allocation2 + $0x20] sm:$0xf] %vm4113, %v4035
        %4123 = vst.msk [vmem:[#allocation2 + $0x24] sm:$0xf] %vm4113, %v4036
        %4124 = vst.msk [vmem:[#allocation2 + $0x28] sm:$0xf] %vm4113, %v4037
        %4125 = vst.msk [vmem:[#allocation2 + $0x2c] sm:$0xf] %vm4113, %v4038
        %4126 = vst.msk [vmem:[#allocation2 + $0x30] sm:$0xf] %vm4113, %v4039
        %4127 = vst.msk [vmem:[#allocation2 + $0x34] sm:$0xf] %vm4113, %v4040
        %4128 = vst.msk [vmem:[#allocation2 + $0x38] sm:$0xf] %vm4113, %v4041
        %4129 = vst.msk [vmem:[#allocation2 + $0x3c] sm:$0xf] %vm4113, %v4042
        %4130 = vst.msk [vmem:[#allocation2 + $0x40] sm:$0xf] %vm4113, %v4043
        %4131 = vst.msk [vmem:[#allocation2 + $0x44] sm:$0xf] %vm4113, %v4044
        %4132 = vst.msk [vmem:[#allocation2 + $0x48] sm:$0xf] %vm4113, %v4045
        %4133 = vst.msk [vmem:[#allocation2 + $0x4c] sm:$0xf] %vm4113, %v4046
        %4134 = vst.msk [vmem:[#allocation2 + $0x50] sm:$0xf] %vm4113, %v4047
        %4135 = vst.msk [vmem:[#allocation2 + $0x54] sm:$0xf] %vm4113, %v4048
        %4136 = vst.msk [vmem:[#allocation2 + $0x58] sm:$0xf] %vm4113, %v4049
        %4137 = vst.msk [vmem:[#allocation2 + $0x5c] sm:$0xf] %vm4113, %v4050
        %4138 = vst.msk [vmem:[#allocation2 + $0x60] sm:$0xf] %vm4113, %v4051
        %4139 = vst.msk [vmem:[#allocation2 + $0x64] sm:$0xf] %vm4113, %v4052
        %4140 = vst.msk [vmem:[#allocation2 + $0x68] sm:$0xf] %vm4113, %v4053
        %4141 = vst.msk [vmem:[#allocation2 + $0x6c] sm:$0xf] %vm4113, %v4054
        %4142 = vst.msk [vmem:[#allocation2 + $0x70] sm:$0xf] %vm4113, %v4055
        %4143 = vst.msk [vmem:[#allocation2 + $0x74] sm:$0xf] %vm4113, %v4056
        %4144 = vst.msk [vmem:[#allocation2 + $0x78] sm:$0xf] %vm4113, %v4057
        %4145 = vst.msk [vmem:[#allocation2 + $0x7c] sm:$0xf] %vm4113, %v4058
        %4146 = vst.msk [vmem:[#allocation2 + $0x80] sm:$0xf] %vm4113, %v4059
        %4147 = vst.msk [vmem:[#allocation2 + $0x84] sm:$0xf] %vm4113, %v4060
        %4148 = vst.msk [vmem:[#allocation2 + $0x88] sm:$0xf] %vm4113, %v4061
        %4149 = vst.msk [vmem:[#allocation2 + $0x8c] sm:$0xf] %vm4113, %v4062
        %4150 = vst.msk [vmem:[#allocation2 + $0x90] sm:$0xf] %vm4113, %v4063
        %4151 = vst.msk [vmem:[#allocation2 + $0x94] sm:$0xf] %vm4113, %v4064
        %4152 = vst.msk [vmem:[#allocation2 + $0x98] sm:$0xf] %vm4113, %v4065
        %4153 = vst.msk [vmem:[#allocation2 + $0x9c] sm:$0xf] %vm4113, %v4066
        %4154 = vst.msk [vmem:[#allocation2 + $0xa0] sm:$0xf] %vm4113, %v4067
        %4155 = vst.msk [vmem:[#allocation2 + $0xa4] sm:$0xf] %vm4113, %v4068
        %4156 = vst.msk [vmem:[#allocation2 + $0xa8] sm:$0xf] %vm4113, %v4069
      $region48: #{forward.1} parent=43 // pred_fallthru
        _
      %v4157 = vld [vmem:[%s280] sm:$0xff]
      %v4158 = vld [vmem:[%s280 + $0x8] sm:$0xff]
      %v4159 = vld [vmem:[%s280 + $0x10] sm:$0xff]
      %v4160 = vld [vmem:[%s280 + $0x18] sm:$0xff]
      %v4161 = vld [vmem:[%s280 + $0x20] sm:$0xff]
      %v4162 = vld [vmem:[%s280 + $0x28] sm:$0xff]
      %v4163 = vld [vmem:[%s280 + $0x30] sm:$0xff]
      %v4164 = vld [vmem:[%s280 + $0x38] sm:$0xff]
      %v4165 = vld [vmem:[%s280 + $0x40] sm:$0xff]
      %v4166 = vld [vmem:[%s280 + $0x48] sm:$0xff]
      %v4167 = vld [vmem:[%s280 + $0x50] sm:$0xff]
      %v4168 = vld [vmem:[%s280 + $0x58] sm:$0xff]
      %v4169 = vld [vmem:[%s280 + $0x60] sm:$0xff]
      %v4170 = vld [vmem:[%s280 + $0x68] sm:$0xff]
      %v4171 = vld [vmem:[%s280 + $0x70] sm:$0xff]
      %v4172 = vld [vmem:[%s280 + $0x78] sm:$0xff]
      %v4173 = vld [vmem:[%s280 + $0x80] sm:$0xff]
      %v4174 = vld [vmem:[%s280 + $0x88] sm:$0xff]
      %v4175 = vld [vmem:[%s280 + $0x90] sm:$0xff]
      %v4176 = vld [vmem:[%s280 + $0x98] sm:$0xff]
      %v4177 = vld [vmem:[%s280 + $0xa0] sm:$0xff]
      %v4178 = vld [vmem:[%s280 + $0xa8] sm:$0xff]
      %v4179 = vld [vmem:[%s280 + $0xb0] sm:$0xff]
      %v4180 = vld [vmem:[%s280 + $0xb8] sm:$0xff]
      %v4181 = vld [vmem:[%s280 + $0xc0] sm:$0xff]
      %v4182 = vld [vmem:[%s280 + $0xc8] sm:$0xff]
      %v4183 = vld [vmem:[%s280 + $0xd0] sm:$0xff]
      %v4184 = vld [vmem:[%s280 + $0xd8] sm:$0xff]
      %v4185 = vld [vmem:[%s280 + $0xe0] sm:$0xff]
      %v4186 = vld [vmem:[%s280 + $0xe8] sm:$0xff]
      %v4187 = vld [vmem:[%s280 + $0xf0] sm:$0xff]
      %v4188 = vld [vmem:[%s280 + $0xf8] sm:$0xff]
      %v4189 = vld [vmem:[%s280 + $0x100] sm:$0xff]
      %v4190 = vld [vmem:[%s280 + $0x108] sm:$0xff]
      %v4191 = vld [vmem:[%s280 + $0x110] sm:$0xff]
      %v4192 = vld [vmem:[%s280 + $0x118] sm:$0xff]
      %v4193 = vld [vmem:[%s280 + $0x120] sm:$0xff]
      %v4194 = vld [vmem:[%s280 + $0x128] sm:$0xff]
      %v4195 = vld [vmem:[%s280 + $0x130] sm:$0xff]
      %v4196 = vld [vmem:[%s280 + $0x138] sm:$0xff]
      %v4197 = vld [vmem:[%s280 + $0x140] sm:$0xff]
      %v4198 = vld [vmem:[%s280 + $0x148] sm:$0xff]
      %v4199 = vld [vmem:[%s280 + $0x150] sm:$0xff]
      %v4200 = vld [vmem:[%s280 + $0x158] sm:$0xff]
      %v4201 = vld [vmem:[%s280 + $0x160] sm:$0xff]
      %v4202 = vld [vmem:[%s280 + $0x168] sm:$0xff]
      %v4203 = vld [vmem:[%s280 + $0x170] sm:$0xff]
      %v4204 = vld [vmem:[%s280 + $0x178] sm:$0xff]
      %v4205 = vld [vmem:[%s280 + $0x180] sm:$0xff]
      %v4206 = vld [vmem:[%s280 + $0x188] sm:$0xff]
      %v4207 = vld [vmem:[%s280 + $0x190] sm:$0xff]
      %v4208 = vld [vmem:[%s280 + $0x198] sm:$0xff]
      %v4209 = vld [vmem:[%s280 + $0x1a0] sm:$0xff]
      %v4210 = vld [vmem:[%s280 + $0x1a8] sm:$0xff]
      %v4211 = vld [vmem:[%s280 + $0x1b0] sm:$0xff]
      %v4212 = vld [vmem:[%s280 + $0x1b8] sm:$0xff]
      %v4213 = vld [vmem:[%s280 + $0x1c0] sm:$0xff]
      %v4214 = vld [vmem:[%s280 + $0x1c8] sm:$0xff]
      %v4215 = vld [vmem:[%s280 + $0x1d0] sm:$0xff]
      %v4216 = vld [vmem:[%s280 + $0x1d8] sm:$0xff]
      %v4217 = vld [vmem:[%s280 + $0x1e0] sm:$0xff]
      %v4218 = vld [vmem:[%s280 + $0x1e8] sm:$0xff]
      %v4219 = vld [vmem:[%s280 + $0x1f0] sm:$0xff]
      %v4220 = vld [vmem:[%s280 + $0x1f8] sm:$0xff]
      %v4221 = vld [vmem:[%s280 + $0x200] sm:$0xff]
      %v4222 = vld [vmem:[%s280 + $0x208] sm:$0xff]
      %v4223 = vld [vmem:[%s280 + $0x210] sm:$0xff]
      %v4224 = vld [vmem:[%s280 + $0x218] sm:$0xff]
      %v4225 = vld [vmem:[%s280 + $0x220] sm:$0xff]
      %v4226 = vld [vmem:[%s280 + $0x228] sm:$0xff]
      %v4227 = vld [vmem:[%s280 + $0x230] sm:$0xff]
      %v4228 = vld [vmem:[%s280 + $0x238] sm:$0xff]
      %v4229 = vld [vmem:[%s280 + $0x240] sm:$0xff]
      %v4230 = vld [vmem:[%s280 + $0x248] sm:$0xff]
      %v4231 = vld [vmem:[%s280 + $0x250] sm:$0xff]
      %v4232 = vld [vmem:[%s280 + $0x258] sm:$0xff]
      %v4233 = vld [vmem:[%s280 + $0x260] sm:$0xff]
      %v4234 = vld [vmem:[%s280 + $0x268] sm:$0xff]
      %v4235 = vld [vmem:[%s280 + $0x270] sm:$0xff]
      %v4236 = vld [vmem:[%s280 + $0x278] sm:$0xff]
      %v4237 = vld [vmem:[%s280 + $0x280] sm:$0xff]
      %v4238 = vld [vmem:[%s280 + $0x288] sm:$0xff]
      %v4239 = vld [vmem:[%s280 + $0x290] sm:$0xff]
      %v4240 = vld [vmem:[%s280 + $0x298] sm:$0xff]
      %v4241 = vld [vmem:[%s280 + $0x2a0] sm:$0xff]
      %v4242 = vld [vmem:[%s280 + $0x2a8] sm:$0xff]
      %v4243 = vld [vmem:[%s280 + $0x2b0] sm:$0xff]
      %v4244 = vld [vmem:[%s280 + $0x2b8] sm:$0xff]
      %v4245 = vld [vmem:[%s280 + $0x2c0] sm:$0xff]
      %v4246 = vld [vmem:[%s280 + $0x2c8] sm:$0xff]
      %v4247 = vld [vmem:[%s280 + $0x2d0] sm:$0xff]
      %v4248 = vld [vmem:[%s280 + $0x2d8] sm:$0xff]
      %v4249 = vld [vmem:[%s280 + $0x2e0] sm:$0xff]
      %v4250 = vld [vmem:[%s280 + $0x2e8] sm:$0xff]
      %v4251 = vld [vmem:[%s280 + $0x2f0] sm:$0xff]
      %v4252 = vld [vmem:[%s280 + $0x2f8] sm:$0xff]
      %v4253 = vld [vmem:[%s280 + $0x300] sm:$0xff]
      %v4254 = vld [vmem:[%s280 + $0x308] sm:$0xff]
      %v4255 = vld [vmem:[%s280 + $0x310] sm:$0xff]
      %v4256 = vld [vmem:[%s280 + $0x318] sm:$0xff]
      %v4257 = vld [vmem:[%s280 + $0x320] sm:$0xff]
      %v4258 = vld [vmem:[%s280 + $0x328] sm:$0xff]
      %v4259 = vld [vmem:[%s280 + $0x330] sm:$0xff]
      %v4260 = vld [vmem:[%s280 + $0x338] sm:$0xff]
      %v4261 = vld [vmem:[%s280 + $0x340] sm:$0xff]
      %v4262 = vld [vmem:[%s280 + $0x348] sm:$0xff]
      %v4263 = vld [vmem:[%s280 + $0x350] sm:$0xff]
      %v4264 = vld [vmem:[%s280 + $0x358] sm:$0xff]
      %v4265 = vld [vmem:[%s280 + $0x360] sm:$0xff]
      %v4266 = vld [vmem:[%s280 + $0x368] sm:$0xff]
      %v4267 = vld [vmem:[%s280 + $0x370] sm:$0xff]
      %v4268 = vld [vmem:[%s280 + $0x378] sm:$0xff]
      %v4269 = vld [vmem:[%s280 + $0x380] sm:$0xff]
      %v4270 = vld [vmem:[%s280 + $0x388] sm:$0xff]
      %v4271 = vld [vmem:[%s280 + $0x390] sm:$0xff]
      %v4272 = vld [vmem:[%s280 + $0x398] sm:$0xff]
      %v4273 = vld [vmem:[%s280 + $0x3a0] sm:$0xff]
      %v4274 = vld [vmem:[%s280 + $0x3a8] sm:$0xff]
      %v4275 = vld [vmem:[%s280 + $0x3b0] sm:$0xff]
      %v4276 = vld [vmem:[%s280 + $0x3b8] sm:$0xff]
      %v4277 = vld [vmem:[%s280 + $0x3c0] sm:$0xff]
      %v4278 = vld [vmem:[%s280 + $0x3c8] sm:$0xff]
      %v4279 = vld [vmem:[%s280 + $0x3d0] sm:$0xff]
      %v4280 = vld [vmem:[%s280 + $0x3d8] sm:$0xff]
      %v4281 = vld [vmem:[%s280 + $0x3e0] sm:$0xff]
      %v4282 = vld [vmem:[%s280 + $0x3e8] sm:$0xff]
      %v4283 = vld [vmem:[%s280 + $0x3f0] sm:$0xff]
      %v4284 = vld [vmem:[%s280 + $0x3f8] sm:$0xff]
      %v4285 = vld [vmem:[%s280 + $0x400] sm:$0xff]
      %v4286 = vld [vmem:[%s280 + $0x408] sm:$0xff]
      %v4287 = vld [vmem:[%s280 + $0x410] sm:$0xff]
      %v4288 = vld [vmem:[%s280 + $0x418] sm:$0xff]
      %v4289 = vld [vmem:[%s280 + $0x420] sm:$0xff]
      %v4290 = vld [vmem:[%s280 + $0x428] sm:$0xff]
      %v4291 = vld [vmem:[%s280 + $0x430] sm:$0xff]
      %v4292 = vld [vmem:[%s280 + $0x438] sm:$0xff]
      %v4293 = vld [vmem:[%s280 + $0x440] sm:$0xff]
      %v4294 = vld [vmem:[%s280 + $0x448] sm:$0xff]
      %v4295 = vld [vmem:[%s280 + $0x450] sm:$0xff]
      %v4296 = vld [vmem:[%s280 + $0x458] sm:$0xff]
      %v4297 = vld [vmem:[%s280 + $0x460] sm:$0xff]
      %v4298 = vld [vmem:[%s280 + $0x468] sm:$0xff]
      %v4299 = vld [vmem:[%s280 + $0x470] sm:$0xff]
      %v4300 = vld [vmem:[%s280 + $0x478] sm:$0xff]
      %v4301 = vld [vmem:[%s280 + $0x480] sm:$0xff]
      %v4302 = vld [vmem:[%s280 + $0x488] sm:$0xff]
      %v4303 = vld [vmem:[%s280 + $0x490] sm:$0xff]
      %v4304 = vld [vmem:[%s280 + $0x498] sm:$0xff]
      %v4305 = vld [vmem:[%s280 + $0x4a0] sm:$0xff]
      %v4306 = vld [vmem:[%s280 + $0x4a8] sm:$0xff]
      %v4307 = vld [vmem:[%s280 + $0x4b0] sm:$0xff]
      %v4308 = vld [vmem:[%s280 + $0x4b8] sm:$0xff]
      %v4309 = vld [vmem:[%s280 + $0x4c0] sm:$0xff]
      %v4310 = vld [vmem:[%s280 + $0x4c8] sm:$0xff]
      %v4311 = vld [vmem:[%s280 + $0x4d0] sm:$0xff]
      %v4312 = vld [vmem:[%s280 + $0x4d8] sm:$0xff]
      %v4313 = vld [vmem:[%s280 + $0x4e0] sm:$0xff]
      %v4314 = vld [vmem:[%s280 + $0x4e8] sm:$0xff]
      %v4315 = vld [vmem:[%s280 + $0x4f0] sm:$0xff]
      %v4316 = vld [vmem:[%s280 + $0x4f8] sm:$0xff]
      %v4317 = vld [vmem:[%s280 + $0x500] sm:$0xff]
      %v4318 = vld [vmem:[%s280 + $0x508] sm:$0xff]
      %v4319 = vld [vmem:[%s280 + $0x510] sm:$0xff]
      %v4320 = vld [vmem:[%s280 + $0x518] sm:$0xff]
      %v4321 = vld [vmem:[%s280 + $0x520] sm:$0xff]
      %v4322 = vld [vmem:[%s280 + $0x528] sm:$0xff]
      %v4323 = vld [vmem:[%s280 + $0x530] sm:$0xff]
      %v4324 = vld [vmem:[%s280 + $0x538] sm:$0xff]
      %v4325 = vld [vmem:[%s280 + $0x540] sm:$0xff]
      %v4326 = vld [vmem:[%s280 + $0x548] sm:$0xff]
      %v4327 = vld [vmem:[%s280 + $0x550] sm:$0xff]
      %v4328 = vld [vmem:[%s280 + $0x558] sm:$0xff]
      %v4329 = vld [vmem:[%s280 + $0x560] sm:$0xff]
      %v4330 = vld [vmem:[%s280 + $0x568] sm:$0xff]
      %v4331 = vld [vmem:[%s280 + $0x570] sm:$0xff]
      %v4332 = vld [vmem:[%s280 + $0x578] sm:$0xff]
      %v4333 = vld [vmem:[%s280 + $0x580] sm:$0xff]
      %v4334 = vld [vmem:[%s280 + $0x588] sm:$0xff]
      %v4335 = vld [vmem:[%s280 + $0x590] sm:$0xff]
      %v4336 = vld [vmem:[%s280 + $0x598] sm:$0xff]
      %v4337 = vld [vmem:[%s280 + $0x5a0] sm:$0xff]
      %v4338 = vld [vmem:[%s280 + $0x5a8] sm:$0xff]
      %v4339 = vld [vmem:[%s280 + $0x5b0] sm:$0xff]
      %v4340 = vld [vmem:[%s280 + $0x5b8] sm:$0xff]
      %v4341 = vld [vmem:[%s280 + $0x5c0] sm:$0xff]
      %v4342 = vld [vmem:[%s280 + $0x5c8] sm:$0xff]
      %v4343 = vld [vmem:[%s280 + $0x5d0] sm:$0xff]
      %v4344 = vld [vmem:[%s280 + $0x5d8] sm:$0xff]
      %v4345 = vld [vmem:[%s280 + $0x5e0] sm:$0xff]
      %v4346 = vld [vmem:[%s280 + $0x5e8] sm:$0xff]
      %v4347 = vld [vmem:[%s280 + $0x5f0] sm:$0xff]
      %v4348 = vld [vmem:[%s280 + $0x5f8] sm:$0xff]
      %v4349 = vld [vmem:[%s280 + $0x600] sm:$0xff]
      %v4350 = vld [vmem:[%s280 + $0x608] sm:$0xff]
      %v4351 = vld [vmem:[%s280 + $0x610] sm:$0xff]
      %v4352 = vld [vmem:[%s280 + $0x618] sm:$0xff]
      %v4353 = vld [vmem:[%s280 + $0x620] sm:$0xff]
      %v4354 = vld [vmem:[%s280 + $0x628] sm:$0xff]
      %v4355 = vld [vmem:[%s280 + $0x630] sm:$0xff]
      %v4356 = vld [vmem:[%s280 + $0x638] sm:$0xff]
      %v4357 = vld [vmem:[%s280 + $0x640] sm:$0xff]
      %v4358 = vld [vmem:[%s280 + $0x648] sm:$0xff]
      %v4359 = vld [vmem:[%s280 + $0x650] sm:$0xff]
      %v4360 = vld [vmem:[%s280 + $0x658] sm:$0xff]
      %v4361 = vld [vmem:[%s280 + $0x660] sm:$0xff]
      %v4362 = vld [vmem:[%s280 + $0x668] sm:$0xff]
      %v4363 = vld [vmem:[%s280 + $0x670] sm:$0xff]
      %v4364 = vld [vmem:[%s280 + $0x678] sm:$0xff]
      %v4365 = vld [vmem:[%s280 + $0x680] sm:$0xff]
      %v4366 = vld [vmem:[%s280 + $0x688] sm:$0xff]
      %v4367 = vld [vmem:[%s280 + $0x690] sm:$0xff]
      %v4368 = vld [vmem:[%s280 + $0x698] sm:$0xff]
      %v4369 = vld [vmem:[%s280 + $0x6a0] sm:$0xff]
      %v4370 = vld [vmem:[%s280 + $0x6a8] sm:$0xff]
      %v4371 = vld [vmem:[%s280 + $0x6b0] sm:$0xff]
      %v4372 = vld [vmem:[%s280 + $0x6b8] sm:$0xff]
      %v4373 = vld [vmem:[%s280 + $0x6c0] sm:$0xff]
      %v4374 = vld [vmem:[%s280 + $0x6c8] sm:$0xff]
      %v4375 = vld [vmem:[%s280 + $0x6d0] sm:$0xff]
      %v4376 = vld [vmem:[%s280 + $0x6d8] sm:$0xff]
      %v4377 = vld [vmem:[%s280 + $0x6e0] sm:$0xff]
      %v4378 = vld [vmem:[%s280 + $0x6e8] sm:$0xff]
      %v4379 = vld [vmem:[%s280 + $0x6f0] sm:$0xff]
      %v4380 = vld [vmem:[%s280 + $0x6f8] sm:$0xff]
      %v4381 = vld [vmem:[%s280 + $0x700] sm:$0xff]
      %v4382 = vld [vmem:[%s280 + $0x708] sm:$0xff]
      %v4383 = vld [vmem:[%s280 + $0x710] sm:$0xff]
      %v4384 = vld [vmem:[%s280 + $0x718] sm:$0xff]
      %v4385 = vld [vmem:[%s280 + $0x720] sm:$0xff]
      %v4386 = vld [vmem:[%s280 + $0x728] sm:$0xff]
      %v4387 = vld [vmem:[%s280 + $0x730] sm:$0xff]
      %v4388 = vld [vmem:[%s280 + $0x738] sm:$0xff]
      %v4389 = vld [vmem:[%s280 + $0x740] sm:$0xff]
      %v4390 = vld [vmem:[%s280 + $0x748] sm:$0xff]
      %v4391 = vld [vmem:[%s280 + $0x750] sm:$0xff]
      %v4392 = vld [vmem:[%s280 + $0x758] sm:$0xff]
      %v4393 = vld [vmem:[%s280 + $0x760] sm:$0xff]
      %v4394 = vld [vmem:[%s280 + $0x768] sm:$0xff]
      %v4395 = vld [vmem:[%s280 + $0x770] sm:$0xff]
      %v4396 = vld [vmem:[%s280 + $0x778] sm:$0xff]
      %v4397 = vld [vmem:[%s280 + $0x780] sm:$0xff]
      %v4398 = vld [vmem:[%s280 + $0x788] sm:$0xff]
      %v4399 = vld [vmem:[%s280 + $0x790] sm:$0xff]
      %v4400 = vld [vmem:[%s280 + $0x798] sm:$0xff]
      %v4401 = vld [vmem:[%s280 + $0x7a0] sm:$0xff]
      %v4402 = vld [vmem:[%s280 + $0x7a8] sm:$0xff]
      %v4403 = vld [vmem:[%s280 + $0x7b0] sm:$0xff]
      %v4404 = vld [vmem:[%s280 + $0x7b8] sm:$0xff]
      %v4405 = vld [vmem:[%s280 + $0x7c0] sm:$0xff]
      %v4406 = vld [vmem:[%s280 + $0x7c8] sm:$0xff]
      %v4407 = vld [vmem:[%s280 + $0x7d0] sm:$0xff]
      %v4408 = vld [vmem:[%s280 + $0x7d8] sm:$0xff]
      %v4409 = vld [vmem:[%s280 + $0x7e0] sm:$0xff]
      %v4410 = vld [vmem:[%s280 + $0x7e8] sm:$0xff]
      %v4411 = vld [vmem:[%s280 + $0x7f0] sm:$0xff]
      %v4412 = vld [vmem:[%s280 + $0x7f8] sm:$0xff]
      %v4413 = vld [vmem:[%s280 + $0x800] sm:$0xff]
      %v4414 = vld [vmem:[%s280 + $0x808] sm:$0xff]
      %v4415 = vpack.c.bf16 %v4160, %v4157
      %v4416 = vpack.c.bf16 %v4161, %v4158
      %v4417 = vpack.c.bf16 %v4162, %v4159
      %v4418 = vpack.c.bf16 %v4166, %v4163
      %v4419 = vpack.c.bf16 %v4167, %v4164
      %v4420 = vpack.c.bf16 %v4168, %v4165
      %v4421 = vpack.c.bf16 %v4172, %v4169
      %v4422 = vpack.c.bf16 %v4173, %v4170
      %v4423 = vpack.c.bf16 %v4174, %v4171
      %v4424 = vpack.c.bf16 %v4178, %v4175
      %v4425 = vpack.c.bf16 %v4179, %v4176
      %v4426 = vpack.c.bf16 %v4180, %v4177
      %v4427 = vpack.c.bf16 %v4184, %v4181
      %v4428 = vpack.c.bf16 %v4185, %v4182
      %v4429 = vpack.c.bf16 %v4186, %v4183
      %v4430 = vpack.c.bf16 %v4190, %v4187
      %v4431 = vpack.c.bf16 %v4191, %v4188
      %v4432 = vpack.c.bf16 %v4192, %v4189
      %v4433 = vpack.c.bf16 %v4196, %v4193
      %v4434 = vpack.c.bf16 %v4197, %v4194
      %v4435 = vpack.c.bf16 %v4198, %v4195
      %v4436 = vpack.c.bf16 %v4202, %v4199
      %v4437 = vpack.c.bf16 %v4203, %v4200
      %v4438 = vpack.c.bf16 %v4204, %v4201
      %v4439 = vpack.c.bf16 %v4208, %v4205
      %v4440 = vpack.c.bf16 %v4209, %v4206
      %v4441 = vpack.c.bf16 %v4210, %v4207
      %v4442 = vpack.c.bf16 %v4214, %v4211
      %v4443 = vpack.c.bf16 %v4215, %v4212
      %v4444 = vpack.c.bf16 %v4216, %v4213
      %v4445 = vpack.c.bf16 %v4220, %v4217
      %v4446 = vpack.c.bf16 %v4221, %v4218
      %v4447 = vpack.c.bf16 %v4222, %v4219
      %v4448 = vpack.c.bf16 %v4226, %v4223
      %v4449 = vpack.c.bf16 %v4227, %v4224
      %v4450 = vpack.c.bf16 %v4228, %v4225
      %v4451 = vpack.c.bf16 %v4232, %v4229
      %v4452 = vpack.c.bf16 %v4233, %v4230
      %v4453 = vpack.c.bf16 %v4234, %v4231
      %v4454 = vpack.c.bf16 %v4238, %v4235
      %v4455 = vpack.c.bf16 %v4239, %v4236
      %v4456 = vpack.c.bf16 %v4240, %v4237
      %v4457 = vpack.c.bf16 %v4244, %v4241
      %v4458 = vpack.c.bf16 %v4245, %v4242
      %v4459 = vpack.c.bf16 %v4246, %v4243
      %v4460 = vpack.c.bf16 %v4250, %v4247
      %v4461 = vpack.c.bf16 %v4251, %v4248
      %v4462 = vpack.c.bf16 %v4252, %v4249
      %v4463 = vpack.c.bf16 %v4256, %v4253
      %v4464 = vpack.c.bf16 %v4257, %v4254
      %v4465 = vpack.c.bf16 %v4258, %v4255
      %v4466 = vpack.c.bf16 %v4262, %v4259
      %v4467 = vpack.c.bf16 %v4263, %v4260
      %v4468 = vpack.c.bf16 %v4264, %v4261
      %v4469 = vpack.c.bf16 %v4268, %v4265
      %v4470 = vpack.c.bf16 %v4269, %v4266
      %v4471 = vpack.c.bf16 %v4270, %v4267
      %v4472 = vpack.c.bf16 %v4274, %v4271
      %v4473 = vpack.c.bf16 %v4275, %v4272
      %v4474 = vpack.c.bf16 %v4276, %v4273
      %v4475 = vpack.c.bf16 %v4280, %v4277
      %v4476 = vpack.c.bf16 %v4281, %v4278
      %v4477 = vpack.c.bf16 %v4282, %v4279
      %v4478 = vpack.c.bf16 %v4286, %v4283
      %v4479 = vpack.c.bf16 %v4287, %v4284
      %v4480 = vpack.c.bf16 %v4288, %v4285
      %v4481 = vpack.c.bf16 %v4292, %v4289
      %v4482 = vpack.c.bf16 %v4293, %v4290
      %v4483 = vpack.c.bf16 %v4294, %v4291
      %v4484 = vpack.c.bf16 %v4298, %v4295
      %v4485 = vpack.c.bf16 %v4299, %v4296
      %v4486 = vpack.c.bf16 %v4300, %v4297
      %v4487 = vpack.c.bf16 %v4304, %v4301
      %v4488 = vpack.c.bf16 %v4305, %v4302
      %v4489 = vpack.c.bf16 %v4306, %v4303
      %v4490 = vpack.c.bf16 %v4310, %v4307
      %v4491 = vpack.c.bf16 %v4311, %v4308
      %v4492 = vpack.c.bf16 %v4312, %v4309
      %v4493 = vpack.c.bf16 %v4316, %v4313
      %v4494 = vpack.c.bf16 %v4317, %v4314
      %v4495 = vpack.c.bf16 %v4318, %v4315
      %v4496 = vpack.c.bf16 %v4322, %v4319
      %v4497 = vpack.c.bf16 %v4323, %v4320
      %v4498 = vpack.c.bf16 %v4324, %v4321
      %v4499 = vpack.c.bf16 %v4328, %v4325
      %v4500 = vpack.c.bf16 %v4329, %v4326
      %v4501 = vpack.c.bf16 %v4330, %v4327
      %v4502 = vpack.c.bf16 %v4334, %v4331
      %v4503 = vpack.c.bf16 %v4335, %v4332
      %v4504 = vpack.c.bf16 %v4336, %v4333
      %v4505 = vpack.c.bf16 %v4340, %v4337
      %v4506 = vpack.c.bf16 %v4341, %v4338
      %v4507 = vpack.c.bf16 %v4342, %v4339
      %v4508 = vpack.c.bf16 %v4346, %v4343
      %v4509 = vpack.c.bf16 %v4347, %v4344
      %v4510 = vpack.c.bf16 %v4348, %v4345
      %v4511 = vpack.c.bf16 %v4352, %v4349
      %v4512 = vpack.c.bf16 %v4353, %v4350
      %v4513 = vpack.c.bf16 %v4354, %v4351
      %v4514 = vpack.c.bf16 %v4358, %v4355
      %v4515 = vpack.c.bf16 %v4359, %v4356
      %v4516 = vpack.c.bf16 %v4360, %v4357
      %v4517 = vpack.c.bf16 %v4364, %v4361
      %v4518 = vpack.c.bf16 %v4365, %v4362
      %v4519 = vpack.c.bf16 %v4366, %v4363
      %v4520 = vpack.c.bf16 %v4370, %v4367
      %v4521 = vpack.c.bf16 %v4371, %v4368
      %v4522 = vpack.c.bf16 %v4372, %v4369
      %v4523 = vpack.c.bf16 %v4376, %v4373
      %v4524 = vpack.c.bf16 %v4377, %v4374
      %v4525 = vpack.c.bf16 %v4378, %v4375
      %v4526 = vpack.c.bf16 %v4382, %v4379
      %v4527 = vpack.c.bf16 %v4383, %v4380
      %v4528 = vpack.c.bf16 %v4384, %v4381
      %v4529 = vpack.c.bf16 %v4388, %v4385
      %v4530 = vpack.c.bf16 %v4389, %v4386
      %v4531 = vpack.c.bf16 %v4390, %v4387
      %v4532 = vpack.c.bf16 %v4394, %v4391
      %v4533 = vpack.c.bf16 %v4395, %v4392
      %v4534 = vpack.c.bf16 %v4396, %v4393
      %v4535 = vpack.c.bf16 %v4400, %v4397
      %v4536 = vpack.c.bf16 %v4401, %v4398
      %v4537 = vpack.c.bf16 %v4402, %v4399
      %v4538 = vpack.c.bf16 %v4406, %v4403
      %v4539 = vpack.c.bf16 %v4407, %v4404
      %v4540 = vpack.c.bf16 %v4408, %v4405
      %v4541 = vpack.c.bf16 %v4412, %v4409
      %v4542 = vpack.c.bf16 %v4413, %v4410
      %v4543 = vpack.c.bf16 %v4414, %v4411
      %v4544 = vld [vmem:[#allocation2] sm:$0xf]
      %v4545 = vld [vmem:[#allocation2 + $0x4] sm:$0xf]
      %v4546 = vld [vmem:[#allocation2 + $0x8] sm:$0xf]
      %v4547 = vld [vmem:[#allocation2 + $0xc] sm:$0xf]
      %v4548 = vld [vmem:[#allocation2 + $0x10] sm:$0xf]
      %v4549 = vld [vmem:[#allocation2 + $0x14] sm:$0xf]
      %v4550 = vld [vmem:[#allocation2 + $0x18] sm:$0xf]
      %v4551 = vld [vmem:[#allocation2 + $0x1c] sm:$0xf]
      %v4552 = vld [vmem:[#allocation2 + $0x20] sm:$0xf]
      %v4553 = vld [vmem:[#allocation2 + $0x24] sm:$0xf]
      %v4554 = vld [vmem:[#allocation2 + $0x28] sm:$0xf]
      %v4555 = vld [vmem:[#allocation2 + $0x2c] sm:$0xf]
      %v4556 = vld [vmem:[#allocation2 + $0x30] sm:$0xf]
      %v4557 = vld [vmem:[#allocation2 + $0x34] sm:$0xf]
      %v4558 = vld [vmem:[#allocation2 + $0x38] sm:$0xf]
      %v4559 = vld [vmem:[#allocation2 + $0x3c] sm:$0xf]
      %v4560 = vld [vmem:[#allocation2 + $0x40] sm:$0xf]
      %v4561 = vld [vmem:[#allocation2 + $0x44] sm:$0xf]
      %v4562 = vld [vmem:[#allocation2 + $0x48] sm:$0xf]
      %v4563 = vld [vmem:[#allocation2 + $0x4c] sm:$0xf]
      %v4564 = vld [vmem:[#allocation2 + $0x50] sm:$0xf]
      %v4565 = vld [vmem:[#allocation2 + $0x54] sm:$0xf]
      %v4566 = vld [vmem:[#allocation2 + $0x58] sm:$0xf]
      %v4567 = vld [vmem:[#allocation2 + $0x5c] sm:$0xf]
      %v4568 = vld [vmem:[#allocation2 + $0x60] sm:$0xf]
      %v4569 = vld [vmem:[#allocation2 + $0x64] sm:$0xf]
      %v4570 = vld [vmem:[#allocation2 + $0x68] sm:$0xf]
      %v4571 = vld [vmem:[#allocation2 + $0x6c] sm:$0xf]
      %v4572 = vld [vmem:[#allocation2 + $0x70] sm:$0xf]
      %v4573 = vld [vmem:[#allocation2 + $0x74] sm:$0xf]
      %v4574 = vld [vmem:[#allocation2 + $0x78] sm:$0xf]
      %v4575 = vld [vmem:[#allocation2 + $0x7c] sm:$0xf]
      %v4576 = vld [vmem:[#allocation2 + $0x80] sm:$0xf]
      %v4577 = vld [vmem:[#allocation2 + $0x84] sm:$0xf]
      %v4578 = vld [vmem:[#allocation2 + $0x88] sm:$0xf]
      %v4579 = vld [vmem:[#allocation2 + $0x8c] sm:$0xf]
      %v4580 = vld [vmem:[#allocation2 + $0x90] sm:$0xf]
      %v4581 = vld [vmem:[#allocation2 + $0x94] sm:$0xf]
      %v4582 = vld [vmem:[#allocation2 + $0x98] sm:$0xf]
      %v4583 = vld [vmem:[#allocation2 + $0x9c] sm:$0xf]
      %v4584 = vld [vmem:[#allocation2 + $0xa0] sm:$0xf]
      %v4585 = vld [vmem:[#allocation2 + $0xa4] sm:$0xf]
      %v4586 = vld [vmem:[#allocation2 + $0xa8] sm:$0xf]
      %v4630 = vunpack.c.l.b16 %v4544
      %v4631 = vunpack.c.l.b16 %v4545
      %v4632 = vunpack.c.l.b16 %v4546
      %v4633 = vunpack.c.l.b16 %v4547
      %v4634 = vunpack.c.l.b16 %v4548
      %v4635 = vunpack.c.l.b16 %v4549
      %v4636 = vunpack.c.l.b16 %v4550
      %v4637 = vunpack.c.l.b16 %v4551
      %v4638 = vunpack.c.l.b16 %v4552
      %v4639 = vunpack.c.l.b16 %v4553
      %v4640 = vunpack.c.l.b16 %v4554
      %v4641 = vunpack.c.l.b16 %v4555
      %v4642 = vunpack.c.l.b16 %v4556
      %v4643 = vunpack.c.l.b16 %v4557
      %v4644 = vunpack.c.l.b16 %v4558
      %v4645 = vunpack.c.l.b16 %v4559
      %v4646 = vunpack.c.l.b16 %v4560
      %v4647 = vunpack.c.l.b16 %v4561
      %v4648 = vunpack.c.l.b16 %v4562
      %v4649 = vunpack.c.l.b16 %v4563
      %v4650 = vunpack.c.l.b16 %v4564
      %v4651 = vunpack.c.l.b16 %v4565
      %v4652 = vunpack.c.l.b16 %v4566
      %v4653 = vunpack.c.l.b16 %v4567
      %v4654 = vunpack.c.l.b16 %v4568
      %v4655 = vunpack.c.l.b16 %v4569
      %v4656 = vunpack.c.l.b16 %v4570
      %v4657 = vunpack.c.l.b16 %v4571
      %v4658 = vunpack.c.l.b16 %v4572
      %v4659 = vunpack.c.l.b16 %v4573
      %v4660 = vunpack.c.l.b16 %v4574
      %v4661 = vunpack.c.l.b16 %v4575
      %v4662 = vunpack.c.l.b16 %v4576
      %v4663 = vunpack.c.l.b16 %v4577
      %v4664 = vunpack.c.l.b16 %v4578
      %v4665 = vunpack.c.l.b16 %v4579
      %v4666 = vunpack.c.l.b16 %v4580
      %v4667 = vunpack.c.l.b16 %v4581
      %v4668 = vunpack.c.l.b16 %v4582
      %v4669 = vunpack.c.l.b16 %v4583
      %v4670 = vunpack.c.l.b16 %v4584
      %v4671 = vunpack.c.l.b16 %v4585
      %v4672 = vunpack.c.l.b16 %v4586
      %v4673 = vpack.c.b16 %v4631, %v4630
      %v4674 = vpack.c.b16 %v4633, %v4632
      %v4675 = vpack.c.b16 %v4635, %v4634
      %v4676 = vpack.c.b16 %v4637, %v4636
      %v4677 = vpack.c.b16 %v4639, %v4638
      %v4678 = vpack.c.b16 %v4641, %v4640
      %v4679 = vpack.c.b16 %v4643, %v4642
      %v4680 = vpack.c.b16 %v4645, %v4644
      %v4681 = vpack.c.b16 %v4647, %v4646
      %v4682 = vpack.c.b16 %v4649, %v4648
      %v4683 = vpack.c.b16 %v4651, %v4650
      %v4684 = vpack.c.b16 %v4653, %v4652
      %v4685 = vpack.c.b16 %v4655, %v4654
      %v4686 = vpack.c.b16 %v4657, %v4656
      %v4687 = vpack.c.b16 %v4659, %v4658
      %v4688 = vpack.c.b16 %v4661, %v4660
      %v4689 = vpack.c.b16 %v4663, %v4662
      %v4690 = vpack.c.b16 %v4665, %v4664
      %v4691 = vpack.c.b16 %v4667, %v4666
      %v4692 = vpack.c.b16 %v4669, %v4668
      %v4693 = vpack.c.b16 %v4671, %v4670
      %v4694 = vpack.c.b16 %v4672, %v4672
      %vm4716 = vcmask 719872
      %v4718 = vsel %vm4716, %v4417, 0
      %v4721 = vsel %vm4716, %v4420, 0
      %v4724 = vsel %vm4716, %v4423, 0
      %v4727 = vsel %vm4716, %v4426, 0
      %v4730 = vsel %vm4716, %v4429, 0
      %v4733 = vsel %vm4716, %v4432, 0
      %v4736 = vsel %vm4716, %v4435, 0
      %v4739 = vsel %vm4716, %v4438, 0
      %v4742 = vsel %vm4716, %v4441, 0
      %v4745 = vsel %vm4716, %v4444, 0
      %v4748 = vsel %vm4716, %v4447, 0
      %v4751 = vsel %vm4716, %v4450, 0
      %v4754 = vsel %vm4716, %v4453, 0
      %v4757 = vsel %vm4716, %v4456, 0
      %v4760 = vsel %vm4716, %v4459, 0
      %v4763 = vsel %vm4716, %v4462, 0
      %v4766 = vsel %vm4716, %v4465, 0
      %v4769 = vsel %vm4716, %v4468, 0
      %v4772 = vsel %vm4716, %v4471, 0
      %v4775 = vsel %vm4716, %v4474, 0
      %v4778 = vsel %vm4716, %v4477, 0
      %v4781 = vsel %vm4716, %v4480, 0
      %v4784 = vsel %vm4716, %v4483, 0
      %v4787 = vsel %vm4716, %v4486, 0
      %v4790 = vsel %vm4716, %v4489, 0
      %v4793 = vsel %vm4716, %v4492, 0
      %v4796 = vsel %vm4716, %v4495, 0
      %v4799 = vsel %vm4716, %v4498, 0
      %v4802 = vsel %vm4716, %v4501, 0
      %v4805 = vsel %vm4716, %v4504, 0
      %v4808 = vsel %vm4716, %v4507, 0
      %v4811 = vsel %vm4716, %v4510, 0
      %v4814 = vsel %vm4716, %v4513, 0
      %v4817 = vsel %vm4716, %v4516, 0
      %v4820 = vsel %vm4716, %v4519, 0
      %v4823 = vsel %vm4716, %v4522, 0
      %v4826 = vsel %vm4716, %v4525, 0
      %v4829 = vsel %vm4716, %v4528, 0
      %v4832 = vsel %vm4716, %v4531, 0
      %v4835 = vsel %vm4716, %v4534, 0
      %v4838 = vsel %vm4716, %v4537, 0
      %v4841 = vsel %vm4716, %v4540, 0
      %v4844 = vsel %vm4716, %v4543, 0
      %vm4846 = vcmask 1043456
      %v4848 = vsel %vm4846, %v4694, 0
      %4850 = vmatprep.subr.bf16.mxu0 0
      %4851 = vmatpush1.bf16.msra.mxu0 %v4673
      %4852 = vmatprep.subr.bf16.mxu0 0
      %4853 = vmatpush1.bf16.msra.mxu0 %v4674
      %4854 = vmatprep.subr.bf16.mxu0 0
      %4855 = vmatpush1.bf16.msra.mxu0 %v4675
      %4856 = vmatprep.subr.bf16.mxu0 0
      %4857 = vmatpush1.bf16.msra.mxu0 %v4676
      %4858 = vmatprep.subr.bf16.mxu0 0
      %4859 = vmatpush1.bf16.msra.mxu0 %v4677
      %4860 = vmatprep.subr.bf16.mxu0 0
      %4861 = vmatpush1.bf16.msra.mxu0 %v4678
      %4862 = vmatprep.subr.bf16.mxu0 0
      %4863 = vmatpush1.bf16.msra.mxu0 %v4679
      %4864 = vmatprep.subr.bf16.mxu0 0
      %4865 = vmatpush1.bf16.msra.mxu0 %v4680
      %4866 = vmatprep.subr.bf16.mxu0 0
      %4867 = vmatpush1.bf16.msra.mxu0 %v4681
      %4868 = vmatprep.subr.bf16.mxu0 0
      %4869 = vmatpush1.bf16.msra.mxu0 %v4682
      %4870 = vmatprep.subr.bf16.mxu0 0
      %4871 = vmatpush1.bf16.msra.mxu0 %v4683
      %4872 = vmatprep.subr.bf16.mxu0 0
      %4873 = vmatpush1.bf16.msra.mxu0 %v4684
      %4874 = vmatprep.subr.bf16.mxu0 0
      %4875 = vmatpush1.bf16.msra.mxu0 %v4685
      %4876 = vmatprep.subr.bf16.mxu0 0
      %4877 = vmatpush1.bf16.msra.mxu0 %v4686
      %4878 = vmatprep.subr.bf16.mxu0 0
      %4879 = vmatpush1.bf16.msra.mxu0 %v4687
      %4880 = vmatprep.subr.bf16.mxu0 0
      %4881 = vmatpush1.bf16.msra.mxu0 %v4688
      %4882 = vmatprep.mubr.bf16.mxu0 %v4416
      %4883 = vmatmul.mubr.bf16.gmra.mrb[0].mxu0 %v4415
      %v4884 = vpop.f32.mrb[0].mxu0
      %v4885 = vadd.f32 0.0, %v4884
      %v4886 = vpop.f32.mrb[0].mxu0
      %v4887 = vpop.f32.mrb[0].mxu0
      %v4888 = vadd.f32 0.0, %v4887
      %v4889 = vpop.f32.mrb[0].mxu0
      %4890 = vmatprep.mubr.bf16.mxu0 %v4419
      %4891 = vmatmul.mubr.bf16.gmra.mrb[0].mxu0 %v4418
      %v4892 = vpop.f32.mrb[0].mxu0
      %v4893 = vadd.f32 0.0, %v4892
      %v4894 = vpop.f32.mrb[0].mxu0
      %v4895 = vpop.f32.mrb[0].mxu0
      %v4896 = vadd.f32 0.0, %v4895
      %v4897 = vpop.f32.mrb[0].mxu0
      %4898 = vmatprep.mubr.bf16.mxu0 %v4422
      %4899 = vmatmul.mubr.bf16.gmra.mrb[0].mxu0 %v4421
      %v4900 = vpop.f32.mrb[0].mxu0
      %v4901 = vadd.f32 0.0, %v4900
      %v4902 = vpop.f32.mrb[0].mxu0
      %v4903 = vpop.f32.mrb[0].mxu0
      %v4904 = vadd.f32 0.0, %v4903
      %v4905 = vpop.f32.mrb[0].mxu0
      %4906 = vmatprep.mubr.bf16.mxu0 %v4425
      %4907 = vmatmul.mubr.bf16.gmra.mrb[0].mxu0 %v4424
      %v4908 = vpop.f32.mrb[0].mxu0
      %v4909 = vadd.f32 0.0, %v4908
      %v4910 = vpop.f32.mrb[0].mxu0
      %v4911 = vpop.f32.mrb[0].mxu0
      %v4912 = vadd.f32 0.0, %v4911
      %v4913 = vpop.f32.mrb[0].mxu0
      %4914 = vmatprep.mubr.bf16.mxu0 %v4428
      %4915 = vmatmul.mubr.bf16.gmra.mrb[0].mxu0 %v4427
      %v4916 = vpop.f32.mrb[0].mxu0
      %v4917 = vadd.f32 0.0, %v4916
      %v4918 = vpop.f32.mrb[0].mxu0
      %v4919 = vpop.f32.mrb[0].mxu0
      %v4920 = vadd.f32 0.0, %v4919
      %v4921 = vpop.f32.mrb[0].mxu0
      %4922 = vmatprep.mubr.bf16.mxu0 %v4431
      %4923 = vmatmul.mubr.bf16.gmra.mrb[0].mxu0 %v4430
      %v4924 = vpop.f32.mrb[0].mxu0
      %v4925 = vadd.f32 0.0, %v4924
      %v4926 = vpop.f32.mrb[0].mxu0
      %v4927 = vpop.f32.mrb[0].mxu0
      %v4928 = vadd.f32 0.0, %v4927
      %v4929 = vpop.f32.mrb[0].mxu0
      %4930 = vmatprep.mubr.bf16.mxu0 %v4434
      %4931 = vmatmul.mubr.bf16.gmra.mrb[0].mxu0 %v4433
      %v4932 = vpop.f32.mrb[0].mxu0
      %v4933 = vadd.f32 0.0, %v4932
      %v4934 = vpop.f32.mrb[0].mxu0
      %v4935 = vpop.f32.mrb[0].mxu0
      %v4936 = vadd.f32 0.0, %v4935
      %v4937 = vpop.f32.mrb[0].mxu0
      %4938 = vmatprep.mubr.bf16.mxu0 %v4437
      %4939 = vmatmul.mubr.bf16.gmra.mrb[0].mxu0 %v4436
      %v4940 = vpop.f32.mrb[0].mxu0
      %v4941 = vadd.f32 0.0, %v4940
      %v4942 = vpop.f32.mrb[0].mxu0
      %v4943 = vpop.f32.mrb[0].mxu0
      %v4944 = vadd.f32 0.0, %v4943
      %v4945 = vpop.f32.mrb[0].mxu0
      %4946 = vmatprep.mubr.bf16.mxu0 %v4440
      %4947 = vmatmul.mubr.bf16.gmra.mrb[0].mxu0 %v4439
      %v4948 = vpop.f32.mrb[0].mxu0
      %v4949 = vadd.f32 0.0, %v4948
      %v4950 = vpop.f32.mrb[0].mxu0
      %v4951 = vpop.f32.mrb[0].mxu0
      %v4952 = vadd.f32 0.0, %v4951
      %v4953 = vpop.f32.mrb[0].mxu0
      %4954 = vmatprep.mubr.bf16.mxu0 %v4443
      %4955 = vmatmul.mubr.bf16.gmra.mrb[0].mxu0 %v4442
      %v4956 = vpop.f32.mrb[0].mxu0
      %v4957 = vadd.f32 0.0, %v4956
      %v4958 = vpop.f32.mrb[0].mxu0
      %v4959 = vpop.f32.mrb[0].mxu0
      %v4960 = vadd.f32 0.0, %v4959
      %v4961 = vpop.f32.mrb[0].mxu0
      %4962 = vmatprep.mubr.bf16.mxu0 %v4446
      %4963 = vmatmul.mubr.bf16.gmra.mrb[0].mxu0 %v4445
      %v4964 = vpop.f32.mrb[0].mxu0
      %v4965 = vadd.f32 0.0, %v4964
      %v4966 = vpop.f32.mrb[0].mxu0
      %v4967 = vpop.f32.mrb[0].mxu0
      %v4968 = vadd.f32 0.0, %v4967
      %v4969 = vpop.f32.mrb[0].mxu0
      %4970 = vmatprep.mubr.bf16.mxu0 %v4449
      %4971 = vmatmul.mubr.bf16.gmra.mrb[0].mxu0 %v4448
      %v4972 = vpop.f32.mrb[0].mxu0
      %v4973 = vadd.f32 0.0, %v4972
      %v4974 = vpop.f32.mrb[0].mxu0
      %v4975 = vpop.f32.mrb[0].mxu0
      %v4976 = vadd.f32 0.0, %v4975
      %v4977 = vpop.f32.mrb[0].mxu0
      %4978 = vmatprep.mubr.bf16.mxu0 %v4452
      %4979 = vmatmul.mubr.bf16.gmra.mrb[0].mxu0 %v4451
      %v4980 = vpop.f32.mrb[0].mxu0
      %v4981 = vadd.f32 0.0, %v4980
      %v4982 = vpop.f32.mrb[0].mxu0
      %v4983 = vpop.f32.mrb[0].mxu0
      %v4984 = vadd.f32 0.0, %v4983
      %v4985 = vpop.f32.mrb[0].mxu0
      %4986 = vmatprep.mubr.bf16.mxu0 %v4455
      %4987 = vmatmul.mubr.bf16.gmra.mrb[0].mxu0 %v4454
      %v4988 = vpop.f32.mrb[0].mxu0
      %v4989 = vadd.f32 0.0, %v4988
      %v4990 = vpop.f32.mrb[0].mxu0
      %v4991 = vpop.f32.mrb[0].mxu0
      %v4992 = vadd.f32 0.0, %v4991
      %v4993 = vpop.f32.mrb[0].mxu0
      %4994 = vmatprep.mubr.bf16.mxu0 %v4458
      %4995 = vmatmul.mubr.bf16.gmra.mrb[0].mxu0 %v4457
      %v4996 = vpop.f32.mrb[0].mxu0
      %v4997 = vadd.f32 0.0, %v4996
      %v4998 = vpop.f32.mrb[0].mxu0
      %v4999 = vpop.f32.mrb[0].mxu0
      %v5000 = vadd.f32 0.0, %v4999
      %v5001 = vpop.f32.mrb[0].mxu0
      %5002 = vmatprep.mubr.bf16.mxu0 %v4461
      %5003 = vmatmul.mubr.bf16.gmra.mrb[0].mxu0 %v4460
      %v5004 = vpop.f32.mrb[0].mxu0
      %v5005 = vadd.f32 0.0, %v5004
      %v5006 = vpop.f32.mrb[0].mxu0
      %v5007 = vpop.f32.mrb[0].mxu0
      %v5008 = vadd.f32 0.0, %v5007
      %v5009 = vpop.f32.mrb[0].mxu0
      %5010 = vmatprep.mubr.bf16.mxu0 %v4464
      %5011 = vmatmul.mubr.bf16.gmra.mrb[0].mxu0 %v4463
      %v5012 = vpop.f32.mrb[0].mxu0
      %v5013 = vadd.f32 0.0, %v5012
      %v5014 = vpop.f32.mrb[0].mxu0
      %v5015 = vpop.f32.mrb[0].mxu0
      %v5016 = vadd.f32 0.0, %v5015
      %v5017 = vpop.f32.mrb[0].mxu0
      %5018 = vmatprep.mubr.bf16.mxu0 %v4467
      %5019 = vmatmul.mubr.bf16.gmra.mrb[0].mxu0 %v4466
      %v5020 = vpop.f32.mrb[0].mxu0
      %v5021 = vadd.f32 0.0, %v5020
      %v5022 = vpop.f32.mrb[0].mxu0
      %v5023 = vpop.f32.mrb[0].mxu0
      %v5024 = vadd.f32 0.0, %v5023
      %v5025 = vpop.f32.mrb[0].mxu0
      %5026 = vmatprep.mubr.bf16.mxu0 %v4470
      %5027 = vmatmul.mubr.bf16.gmra.mrb[0].mxu0 %v4469
      %v5028 = vpop.f32.mrb[0].mxu0
      %v5029 = vadd.f32 0.0, %v5028
      %v5030 = vpop.f32.mrb[0].mxu0
      %v5031 = vpop.f32.mrb[0].mxu0
      %v5032 = vadd.f32 0.0, %v5031
      %v5033 = vpop.f32.mrb[0].mxu0
      %5034 = vmatprep.mubr.bf16.mxu0 %v4473
      %5035 = vmatmul.mubr.bf16.gmra.mrb[0].mxu0 %v4472
      %v5036 = vpop.f32.mrb[0].mxu0
      %v5037 = vadd.f32 0.0, %v5036
      %v5038 = vpop.f32.mrb[0].mxu0
      %v5039 = vpop.f32.mrb[0].mxu0
      %v5040 = vadd.f32 0.0, %v5039
      %v5041 = vpop.f32.mrb[0].mxu0
      %5042 = vmatprep.mubr.bf16.mxu0 %v4476
      %5043 = vmatmul.mubr.bf16.gmra.mrb[0].mxu0 %v4475
      %v5044 = vpop.f32.mrb[0].mxu0
      %v5045 = vadd.f32 0.0, %v5044
      %v5046 = vpop.f32.mrb[0].mxu0
      %v5047 = vpop.f32.mrb[0].mxu0
      %v5048 = vadd.f32 0.0, %v5047
      %v5049 = vpop.f32.mrb[0].mxu0
      %5050 = vmatprep.mubr.bf16.mxu0 %v4479
      %5051 = vmatmul.mubr.bf16.gmra.mrb[0].mxu0 %v4478
      %v5052 = vpop.f32.mrb[0].mxu0
      %v5053 = vadd.f32 0.0, %v5052
      %v5054 = vpop.f32.mrb[0].mxu0
      %v5055 = vpop.f32.mrb[0].mxu0
      %v5056 = vadd.f32 0.0, %v5055
      %v5057 = vpop.f32.mrb[0].mxu0
      %5058 = vmatprep.mubr.bf16.mxu0 %v4482
      %5059 = vmatmul.mubr.bf16.gmra.mrb[0].mxu0 %v4481
      %v5060 = vpop.f32.mrb[0].mxu0
      %v5061 = vadd.f32 0.0, %v5060
      %v5062 = vpop.f32.mrb[0].mxu0
      %v5063 = vpop.f32.mrb[0].mxu0
      %v5064 = vadd.f32 0.0, %v5063
      %v5065 = vpop.f32.mrb[0].mxu0
      %5066 = vmatprep.mubr.bf16.mxu0 %v4485
      %5067 = vmatmul.mubr.bf16.gmra.mrb[0].mxu0 %v4484
      %v5068 = vpop.f32.mrb[0].mxu0
      %v5069 = vadd.f32 0.0, %v5068
      %v5070 = vpop.f32.mrb[0].mxu0
      %v5071 = vpop.f32.mrb[0].mxu0
      %v5072 = vadd.f32 0.0, %v5071
      %v5073 = vpop.f32.mrb[0].mxu0
      %5074 = vmatprep.mubr.bf16.mxu0 %v4488
      %5075 = vmatmul.mubr.bf16.gmra.mrb[0].mxu0 %v4487
      %v5076 = vpop.f32.mrb[0].mxu0
      %v5077 = vadd.f32 0.0, %v5076
      %v5078 = vpop.f32.mrb[0].mxu0
      %v5079 = vpop.f32.mrb[0].mxu0
      %v5080 = vadd.f32 0.0, %v5079
      %v5081 = vpop.f32.mrb[0].mxu0
      %5082 = vmatprep.mubr.bf16.mxu0 %v4491
      %5083 = vmatmul.mubr.bf16.gmra.mrb[0].mxu0 %v4490
      %v5084 = vpop.f32.mrb[0].mxu0
      %v5085 = vadd.f32 0.0, %v5084
      %v5086 = vpop.f32.mrb[0].mxu0
      %v5087 = vpop.f32.mrb[0].mxu0
      %v5088 = vadd.f32 0.0, %v5087
      %v5089 = vpop.f32.mrb[0].mxu0
      %5090 = vmatprep.mubr.bf16.mxu0 %v4494
      %5091 = vmatmul.mubr.bf16.gmra.mrb[0].mxu0 %v4493
      %v5092 = vpop.f32.mrb[0].mxu0
      %v5093 = vadd.f32 0.0, %v5092
      %v5094 = vpop.f32.mrb[0].mxu0
      %v5095 = vpop.f32.mrb[0].mxu0
      %v5096 = vadd.f32 0.0, %v5095
      %v5097 = vpop.f32.mrb[0].mxu0
      %5098 = vmatprep.mubr.bf16.mxu0 %v4497
      %5099 = vmatmul.mubr.bf16.gmra.mrb[0].mxu0 %v4496
      %v5100 = vpop.f32.mrb[0].mxu0
      %v5101 = vadd.f32 0.0, %v5100
      %v5102 = vpop.f32.mrb[0].mxu0
      %v5103 = vpop.f32.mrb[0].mxu0
      %v5104 = vadd.f32 0.0, %v5103
      %v5105 = vpop.f32.mrb[0].mxu0
      %5106 = vmatprep.mubr.bf16.mxu0 %v4500
      %5107 = vmatmul.mubr.bf16.gmra.mrb[0].mxu0 %v4499
      %v5108 = vpop.f32.mrb[0].mxu0
      %v5109 = vadd.f32 0.0, %v5108
      %v5110 = vpop.f32.mrb[0].mxu0
      %v5111 = vpop.f32.mrb[0].mxu0
      %v5112 = vadd.f32 0.0, %v5111
      %v5113 = vpop.f32.mrb[0].mxu0
      %5114 = vmatprep.mubr.bf16.mxu0 %v4503
      %5115 = vmatmul.mubr.bf16.gmra.mrb[0].mxu0 %v4502
      %v5116 = vpop.f32.mrb[0].mxu0
      %v5117 = vadd.f32 0.0, %v5116
      %v5118 = vpop.f32.mrb[0].mxu0
      %v5119 = vpop.f32.mrb[0].mxu0
      %v5120 = vadd.f32 0.0, %v5119
      %v5121 = vpop.f32.mrb[0].mxu0
      %5122 = vmatprep.mubr.bf16.mxu0 %v4506
      %5123 = vmatmul.mubr.bf16.gmra.mrb[0].mxu0 %v4505
      %v5124 = vpop.f32.mrb[0].mxu0
      %v5125 = vadd.f32 0.0, %v5124
      %v5126 = vpop.f32.mrb[0].mxu0
      %v5127 = vpop.f32.mrb[0].mxu0
      %v5128 = vadd.f32 0.0, %v5127
      %v5129 = vpop.f32.mrb[0].mxu0
      %5130 = vmatprep.mubr.bf16.mxu0 %v4509
      %5131 = vmatmul.mubr.bf16.gmra.mrb[0].mxu0 %v4508
      %v5132 = vpop.f32.mrb[0].mxu0
      %v5133 = vadd.f32 0.0, %v5132
      %v5134 = vpop.f32.mrb[0].mxu0
      %v5135 = vpop.f32.mrb[0].mxu0
      %v5136 = vadd.f32 0.0, %v5135
      %v5137 = vpop.f32.mrb[0].mxu0
      %5138 = vmatprep.mubr.bf16.mxu0 %v4512
      %5139 = vmatmul.mubr.bf16.gmra.mrb[0].mxu0 %v4511
      %v5140 = vpop.f32.mrb[0].mxu0
      %v5141 = vadd.f32 0.0, %v5140
      %v5142 = vpop.f32.mrb[0].mxu0
      %v5143 = vpop.f32.mrb[0].mxu0
      %v5144 = vadd.f32 0.0, %v5143
      %v5145 = vpop.f32.mrb[0].mxu0
      %5146 = vmatprep.mubr.bf16.mxu0 %v4515
      %5147 = vmatmul.mubr.bf16.gmra.mrb[0].mxu0 %v4514
      %v5148 = vpop.f32.mrb[0].mxu0
      %v5149 = vadd.f32 0.0, %v5148
      %v5150 = vpop.f32.mrb[0].mxu0
      %v5151 = vpop.f32.mrb[0].mxu0
      %v5152 = vadd.f32 0.0, %v5151
      %v5153 = vpop.f32.mrb[0].mxu0
      %5154 = vmatprep.mubr.bf16.mxu0 %v4518
      %5155 = vmatmul.mubr.bf16.gmra.mrb[0].mxu0 %v4517
      %v5156 = vpop.f32.mrb[0].mxu0
      %v5157 = vadd.f32 0.0, %v5156
      %v5158 = vpop.f32.mrb[0].mxu0
      %v5159 = vpop.f32.mrb[0].mxu0
      %v5160 = vadd.f32 0.0, %v5159
      %v5161 = vpop.f32.mrb[0].mxu0
      %5162 = vmatprep.mubr.bf16.mxu0 %v4521
      %5163 = vmatmul.mubr.bf16.gmra.mrb[0].mxu0 %v4520
      %v5164 = vpop.f32.mrb[0].mxu0
      %v5165 = vadd.f32 0.0, %v5164
      %v5166 = vpop.f32.mrb[0].mxu0
      %v5167 = vpop.f32.mrb[0].mxu0
      %v5168 = vadd.f32 0.0, %v5167
      %v5169 = vpop.f32.mrb[0].mxu0
      %5170 = vmatprep.mubr.bf16.mxu0 %v4524
      %5171 = vmatmul.mubr.bf16.gmra.mrb[0].mxu0 %v4523
      %v5172 = vpop.f32.mrb[0].mxu0
      %v5173 = vadd.f32 0.0, %v5172
      %v5174 = vpop.f32.mrb[0].mxu0
      %v5175 = vpop.f32.mrb[0].mxu0
      %v5176 = vadd.f32 0.0, %v5175
      %v5177 = vpop.f32.mrb[0].mxu0
      %5178 = vmatprep.mubr.bf16.mxu0 %v4527
      %5179 = vmatmul.mubr.bf16.gmra.mrb[0].mxu0 %v4526
      %v5180 = vpop.f32.mrb[0].mxu0
      %v5181 = vadd.f32 0.0, %v5180
      %v5182 = vpop.f32.mrb[0].mxu0
      %v5183 = vpop.f32.mrb[0].mxu0
      %v5184 = vadd.f32 0.0, %v5183
      %v5185 = vpop.f32.mrb[0].mxu0
      %5186 = vmatprep.mubr.bf16.mxu0 %v4530
      %5187 = vmatmul.mubr.bf16.gmra.mrb[0].mxu0 %v4529
      %v5188 = vpop.f32.mrb[0].mxu0
      %v5189 = vadd.f32 0.0, %v5188
      %v5190 = vpop.f32.mrb[0].mxu0
      %v5191 = vpop.f32.mrb[0].mxu0
      %v5192 = vadd.f32 0.0, %v5191
      %v5193 = vpop.f32.mrb[0].mxu0
      %5194 = vmatprep.mubr.bf16.mxu0 %v4533
      %5195 = vmatmul.mubr.bf16.gmra.mrb[0].mxu0 %v4532
      %v5196 = vpop.f32.mrb[0].mxu0
      %v5197 = vadd.f32 0.0, %v5196
      %v5198 = vpop.f32.mrb[0].mxu0
      %v5199 = vpop.f32.mrb[0].mxu0
      %v5200 = vadd.f32 0.0, %v5199
      %v5201 = vpop.f32.mrb[0].mxu0
      %5202 = vmatprep.mubr.bf16.mxu0 %v4536
      %5203 = vmatmul.mubr.bf16.gmra.mrb[0].mxu0 %v4535
      %v5204 = vpop.f32.mrb[0].mxu0
      %v5205 = vadd.f32 0.0, %v5204
      %v5206 = vpop.f32.mrb[0].mxu0
      %v5207 = vpop.f32.mrb[0].mxu0
      %v5208 = vadd.f32 0.0, %v5207
      %v5209 = vpop.f32.mrb[0].mxu0
      %5210 = vmatprep.mubr.bf16.mxu0 %v4539
      %5211 = vmatmul.mubr.bf16.gmra.mrb[0].mxu0 %v4538
      %v5212 = vpop.f32.mrb[0].mxu0
      %v5213 = vadd.f32 0.0, %v5212
      %v5214 = vpop.f32.mrb[0].mxu0
      %v5215 = vpop.f32.mrb[0].mxu0
      %v5216 = vadd.f32 0.0, %v5215
      %v5217 = vpop.f32.mrb[0].mxu0
      %5218 = vmatprep.mubr.bf16.mxu0 %v4542
      %5219 = vmatmul.mubr.bf16.gmra.mrb[0].mxu0 %v4541
      %v5220 = vpop.f32.mrb[0].mxu0
      %v5221 = vadd.f32 0.0, %v5220
      %v5222 = vpop.f32.mrb[0].mxu0
      %v5223 = vpop.f32.mrb[0].mxu0
      %v5224 = vadd.f32 0.0, %v5223
      %v5225 = vpop.f32.mrb[0].mxu0
      %5226 = vdwg.mxu0
      %5227 = vmatprep.subr.bf16.mxu0 0
      %5228 = vmatpush1.bf16.msra.mxu0 %v4689
      %5229 = vmatprep.subr.bf16.mxu0 0
      %5230 = vmatpush1.bf16.msra.mxu0 %v4690
      %5231 = vmatprep.subr.bf16.mxu0 0
      %5232 = vmatpush1.bf16.msra.mxu0 %v4691
      %5233 = vmatprep.subr.bf16.mxu0 0
      %5234 = vmatpush1.bf16.msra.mxu0 %v4692
      %5235 = vmatprep.subr.bf16.mxu0 0
      %5236 = vmatpush1.bf16.msra.mxu0 %v4693
      %5237 = vmatprep.subr.bf16.mxu0 0
      %5238 = vmatpush1.bf16.msra.mxu0 %v4848
      %5239 = vmatprep.subr.bf16.mxu0 0
      %5240 = vmatpush1.bf16.msra.mxu0 0
      %5241 = vmatprep.subr.bf16.mxu0 0
      %5242 = vmatpush1.bf16.msra.mxu0 0
      %5243 = vmatprep.subr.bf16.mxu0 0
      %5244 = vmatpush1.bf16.msra.mxu0 0
      %5245 = vmatprep.subr.bf16.mxu0 0
      %5246 = vmatpush1.bf16.msra.mxu0 0
      %5247 = vmatprep.subr.bf16.mxu0 0
      %5248 = vmatpush1.bf16.msra.mxu0 0
      %5249 = vmatprep.subr.bf16.mxu0 0
      %5250 = vmatpush1.bf16.msra.mxu0 0
      %5251 = vmatprep.subr.bf16.mxu0 0
      %5252 = vmatpush1.bf16.msra.mxu0 0
      %5253 = vmatprep.subr.bf16.mxu0 0
      %5254 = vmatpush1.bf16.msra.mxu0 0
      %5255 = vmatprep.subr.bf16.mxu0 0
      %5256 = vmatpush1.bf16.msra.mxu0 0
      %5257 = vmatprep.subr.bf16.mxu0 0
      %5258 = vmatpush1.bf16.msra.mxu0 0
      %5259 = vmatprep.mubr.bf16.mxu0 0
      %5260 = vmatmul.mubr.bf16.gmra.mrb[0].mxu0 %v4718
      %v5261 = vpop.f32.mrb[0].mxu0
      %v5262 = vadd.f32 %v4885, %v5261
      %v5263 = vpop.f32.mrb[0].mxu0
      %v5264 = vpop.f32.mrb[0].mxu0
      %v5265 = vadd.f32 %v4888, %v5264
      %v5266 = vpop.f32.mrb[0].mxu0
      %5267 = vmatprep.mubr.bf16.mxu0 0
      %5268 = vmatmul.mubr.bf16.gmra.mrb[0].mxu0 %v4721
      %v5269 = vpop.f32.mrb[0].mxu0
      %v5270 = vadd.f32 %v4893, %v5269
      %v5271 = vpop.f32.mrb[0].mxu0
      %v5272 = vpop.f32.mrb[0].mxu0
      %v5273 = vadd.f32 %v4896, %v5272
      %v5274 = vpop.f32.mrb[0].mxu0
      %5275 = vmatprep.mubr.bf16.mxu0 0
      %5276 = vmatmul.mubr.bf16.gmra.mrb[0].mxu0 %v4724
      %v5277 = vpop.f32.mrb[0].mxu0
      %v5278 = vadd.f32 %v4901, %v5277
      %v5279 = vpop.f32.mrb[0].mxu0
      %v5280 = vpop.f32.mrb[0].mxu0
      %v5281 = vadd.f32 %v4904, %v5280
      %v5282 = vpop.f32.mrb[0].mxu0
      %5283 = vmatprep.mubr.bf16.mxu0 0
      %5284 = vmatmul.mubr.bf16.gmra.mrb[0].mxu0 %v4727
      %v5285 = vpop.f32.mrb[0].mxu0
      %v5286 = vadd.f32 %v4909, %v5285
      %v5287 = vpop.f32.mrb[0].mxu0
      %v5288 = vpop.f32.mrb[0].mxu0
      %v5289 = vadd.f32 %v4912, %v5288
      %v5290 = vpop.f32.mrb[0].mxu0
      %5291 = vmatprep.mubr.bf16.mxu0 0
      %5292 = vmatmul.mubr.bf16.gmra.mrb[0].mxu0 %v4730
      %v5293 = vpop.f32.mrb[0].mxu0
      %v5294 = vadd.f32 %v4917, %v5293
      %v5295 = vpop.f32.mrb[0].mxu0
      %v5296 = vpop.f32.mrb[0].mxu0
      %v5297 = vadd.f32 %v4920, %v5296
      %v5298 = vpop.f32.mrb[0].mxu0
      %5299 = vmatprep.mubr.bf16.mxu0 0
      %5300 = vmatmul.mubr.bf16.gmra.mrb[0].mxu0 %v4733
      %v5301 = vpop.f32.mrb[0].mxu0
      %v5302 = vadd.f32 %v4925, %v5301
      %v5303 = vpop.f32.mrb[0].mxu0
      %v5304 = vpop.f32.mrb[0].mxu0
      %v5305 = vadd.f32 %v4928, %v5304
      %v5306 = vpop.f32.mrb[0].mxu0
      %5307 = vmatprep.mubr.bf16.mxu0 0
      %5308 = vmatmul.mubr.bf16.gmra.mrb[0].mxu0 %v4736
      %v5309 = vpop.f32.mrb[0].mxu0
      %v5310 = vadd.f32 %v4933, %v5309
      %v5311 = vpop.f32.mrb[0].mxu0
      %v5312 = vpop.f32.mrb[0].mxu0
      %v5313 = vadd.f32 %v4936, %v5312
      %v5314 = vpop.f32.mrb[0].mxu0
      %5315 = vmatprep.mubr.bf16.mxu0 0
      %5316 = vmatmul.mubr.bf16.gmra.mrb[0].mxu0 %v4739
      %v5317 = vpop.f32.mrb[0].mxu0
      %v5318 = vadd.f32 %v4941, %v5317
      %v5319 = vpop.f32.mrb[0].mxu0
      %v5320 = vpop.f32.mrb[0].mxu0
      %v5321 = vadd.f32 %v4944, %v5320
      %v5322 = vpop.f32.mrb[0].mxu0
      %5323 = vmatprep.mubr.bf16.mxu0 0
      %5324 = vmatmul.mubr.bf16.gmra.mrb[0].mxu0 %v4742
      %v5325 = vpop.f32.mrb[0].mxu0
      %v5326 = vadd.f32 %v4949, %v5325
      %v5327 = vpop.f32.mrb[0].mxu0
      %v5328 = vpop.f32.mrb[0].mxu0
      %v5329 = vadd.f32 %v4952, %v5328
      %v5330 = vpop.f32.mrb[0].mxu0
      %5331 = vmatprep.mubr.bf16.mxu0 0
      %5332 = vmatmul.mubr.bf16.gmra.mrb[0].mxu0 %v4745
      %v5333 = vpop.f32.mrb[0].mxu0
      %v5334 = vadd.f32 %v4957, %v5333
      %v5335 = vpop.f32.mrb[0].mxu0
      %v5336 = vpop.f32.mrb[0].mxu0
      %v5337 = vadd.f32 %v4960, %v5336
      %v5338 = vpop.f32.mrb[0].mxu0
      %5339 = vmatprep.mubr.bf16.mxu0 0
      %5340 = vmatmul.mubr.bf16.gmra.mrb[0].mxu0 %v4748
      %v5341 = vpop.f32.mrb[0].mxu0
      %v5342 = vadd.f32 %v4965, %v5341
      %v5343 = vpop.f32.mrb[0].mxu0
      %v5344 = vpop.f32.mrb[0].mxu0
      %v5345 = vadd.f32 %v4968, %v5344
      %v5346 = vpop.f32.mrb[0].mxu0
      %5347 = vmatprep.mubr.bf16.mxu0 0
      %5348 = vmatmul.mubr.bf16.gmra.mrb[0].mxu0 %v4751
      %v5349 = vpop.f32.mrb[0].mxu0
      %v5350 = vadd.f32 %v4973, %v5349
      %v5351 = vpop.f32.mrb[0].mxu0
      %v5352 = vpop.f32.mrb[0].mxu0
      %v5353 = vadd.f32 %v4976, %v5352
      %v5354 = vpop.f32.mrb[0].mxu0
      %5355 = vmatprep.mubr.bf16.mxu0 0
      %5356 = vmatmul.mubr.bf16.gmra.mrb[0].mxu0 %v4754
      %v5357 = vpop.f32.mrb[0].mxu0
      %v5358 = vadd.f32 %v4981, %v5357
      %v5359 = vpop.f32.mrb[0].mxu0
      %v5360 = vpop.f32.mrb[0].mxu0
      %v5361 = vadd.f32 %v4984, %v5360
      %v5362 = vpop.f32.mrb[0].mxu0
      %5363 = vmatprep.mubr.bf16.mxu0 0
      %5364 = vmatmul.mubr.bf16.gmra.mrb[0].mxu0 %v4757
      %v5365 = vpop.f32.mrb[0].mxu0
      %v5366 = vadd.f32 %v4989, %v5365
      %v5367 = vpop.f32.mrb[0].mxu0
      %v5368 = vpop.f32.mrb[0].mxu0
      %v5369 = vadd.f32 %v4992, %v5368
      %v5370 = vpop.f32.mrb[0].mxu0
      %5371 = vmatprep.mubr.bf16.mxu0 0
      %5372 = vmatmul.mubr.bf16.gmra.mrb[0].mxu0 %v4760
      %v5373 = vpop.f32.mrb[0].mxu0
      %v5374 = vadd.f32 %v4997, %v5373
      %v5375 = vpop.f32.mrb[0].mxu0
      %v5376 = vpop.f32.mrb[0].mxu0
      %v5377 = vadd.f32 %v5000, %v5376
      %v5378 = vpop.f32.mrb[0].mxu0
      %5379 = vmatprep.mubr.bf16.mxu0 0
      %5380 = vmatmul.mubr.bf16.gmra.mrb[0].mxu0 %v4763
      %v5381 = vpop.f32.mrb[0].mxu0
      %v5382 = vadd.f32 %v5005, %v5381
      %v5383 = vpop.f32.mrb[0].mxu0
      %v5384 = vpop.f32.mrb[0].mxu0
      %v5385 = vadd.f32 %v5008, %v5384
      %v5386 = vpop.f32.mrb[0].mxu0
      %5387 = vmatprep.mubr.bf16.mxu0 0
      %5388 = vmatmul.mubr.bf16.gmra.mrb[0].mxu0 %v4766
      %v5389 = vpop.f32.mrb[0].mxu0
      %v5390 = vadd.f32 %v5013, %v5389
      %v5391 = vpop.f32.mrb[0].mxu0
      %v5392 = vpop.f32.mrb[0].mxu0
      %v5393 = vadd.f32 %v5016, %v5392
      %v5394 = vpop.f32.mrb[0].mxu0
      %5395 = vmatprep.mubr.bf16.mxu0 0
      %5396 = vmatmul.mubr.bf16.gmra.mrb[0].mxu0 %v4769
      %v5397 = vpop.f32.mrb[0].mxu0
      %v5398 = vadd.f32 %v5021, %v5397
      %v5399 = vpop.f32.mrb[0].mxu0
      %v5400 = vpop.f32.mrb[0].mxu0
      %v5401 = vadd.f32 %v5024, %v5400
      %v5402 = vpop.f32.mrb[0].mxu0
      %5403 = vmatprep.mubr.bf16.mxu0 0
      %5404 = vmatmul.mubr.bf16.gmra.mrb[0].mxu0 %v4772
      %v5405 = vpop.f32.mrb[0].mxu0
      %v5406 = vadd.f32 %v5029, %v5405
      %v5407 = vpop.f32.mrb[0].mxu0
      %v5408 = vpop.f32.mrb[0].mxu0
      %v5409 = vadd.f32 %v5032, %v5408
      %v5410 = vpop.f32.mrb[0].mxu0
      %5411 = vmatprep.mubr.bf16.mxu0 0
      %5412 = vmatmul.mubr.bf16.gmra.mrb[0].mxu0 %v4775
      %v5413 = vpop.f32.mrb[0].mxu0
      %v5414 = vadd.f32 %v5037, %v5413
      %v5415 = vpop.f32.mrb[0].mxu0
      %v5416 = vpop.f32.mrb[0].mxu0
      %v5417 = vadd.f32 %v5040, %v5416
      %v5418 = vpop.f32.mrb[0].mxu0
      %5419 = vmatprep.mubr.bf16.mxu0 0
      %5420 = vmatmul.mubr.bf16.gmra.mrb[0].mxu0 %v4778
      %v5421 = vpop.f32.mrb[0].mxu0
      %v5422 = vadd.f32 %v5045, %v5421
      %v5423 = vpop.f32.mrb[0].mxu0
      %v5424 = vpop.f32.mrb[0].mxu0
      %v5425 = vadd.f32 %v5048, %v5424
      %v5426 = vpop.f32.mrb[0].mxu0
      %5427 = vmatprep.mubr.bf16.mxu0 0
      %5428 = vmatmul.mubr.bf16.gmra.mrb[0].mxu0 %v4781
      %v5429 = vpop.f32.mrb[0].mxu0
      %v5430 = vadd.f32 %v5053, %v5429
      %v5431 = vpop.f32.mrb[0].mxu0
      %v5432 = vpop.f32.mrb[0].mxu0
      %v5433 = vadd.f32 %v5056, %v5432
      %v5434 = vpop.f32.mrb[0].mxu0
      %5435 = vmatprep.mubr.bf16.mxu0 0
      %5436 = vmatmul.mubr.bf16.gmra.mrb[0].mxu0 %v4784
      %v5437 = vpop.f32.mrb[0].mxu0
      %v5438 = vadd.f32 %v5061, %v5437
      %v5439 = vpop.f32.mrb[0].mxu0
      %v5440 = vpop.f32.mrb[0].mxu0
      %v5441 = vadd.f32 %v5064, %v5440
      %v5442 = vpop.f32.mrb[0].mxu0
      %5443 = vmatprep.mubr.bf16.mxu0 0
      %5444 = vmatmul.mubr.bf16.gmra.mrb[0].mxu0 %v4787
      %v5445 = vpop.f32.mrb[0].mxu0
      %v5446 = vadd.f32 %v5069, %v5445
      %v5447 = vpop.f32.mrb[0].mxu0
      %v5448 = vpop.f32.mrb[0].mxu0
      %v5449 = vadd.f32 %v5072, %v5448
      %v5450 = vpop.f32.mrb[0].mxu0
      %5451 = vmatprep.mubr.bf16.mxu0 0
      %5452 = vmatmul.mubr.bf16.gmra.mrb[0].mxu0 %v4790
      %v5453 = vpop.f32.mrb[0].mxu0
      %v5454 = vadd.f32 %v5077, %v5453
      %v5455 = vpop.f32.mrb[0].mxu0
      %v5456 = vpop.f32.mrb[0].mxu0
      %v5457 = vadd.f32 %v5080, %v5456
      %v5458 = vpop.f32.mrb[0].mxu0
      %5459 = vmatprep.mubr.bf16.mxu0 0
      %5460 = vmatmul.mubr.bf16.gmra.mrb[0].mxu0 %v4793
      %v5461 = vpop.f32.mrb[0].mxu0
      %v5462 = vadd.f32 %v5085, %v5461
      %v5463 = vpop.f32.mrb[0].mxu0
      %v5464 = vpop.f32.mrb[0].mxu0
      %v5465 = vadd.f32 %v5088, %v5464
      %v5466 = vpop.f32.mrb[0].mxu0
      %5467 = vmatprep.mubr.bf16.mxu0 0
      %5468 = vmatmul.mubr.bf16.gmra.mrb[0].mxu0 %v4796
      %v5469 = vpop.f32.mrb[0].mxu0
      %v5470 = vadd.f32 %v5093, %v5469
      %v5471 = vpop.f32.mrb[0].mxu0
      %v5472 = vpop.f32.mrb[0].mxu0
      %v5473 = vadd.f32 %v5096, %v5472
      %v5474 = vpop.f32.mrb[0].mxu0
      %5475 = vmatprep.mubr.bf16.mxu0 0
      %5476 = vmatmul.mubr.bf16.gmra.mrb[0].mxu0 %v4799
      %v5477 = vpop.f32.mrb[0].mxu0
      %v5478 = vadd.f32 %v5101, %v5477
      %v5479 = vpop.f32.mrb[0].mxu0
      %v5480 = vpop.f32.mrb[0].mxu0
      %v5481 = vadd.f32 %v5104, %v5480
      %v5482 = vpop.f32.mrb[0].mxu0
      %5483 = vmatprep.mubr.bf16.mxu0 0
      %5484 = vmatmul.mubr.bf16.gmra.mrb[0].mxu0 %v4802
      %v5485 = vpop.f32.mrb[0].mxu0
      %v5486 = vadd.f32 %v5109, %v5485
      %v5487 = vpop.f32.mrb[0].mxu0
      %v5488 = vpop.f32.mrb[0].mxu0
      %v5489 = vadd.f32 %v5112, %v5488
      %v5490 = vpop.f32.mrb[0].mxu0
      %5491 = vmatprep.mubr.bf16.mxu0 0
      %5492 = vmatmul.mubr.bf16.gmra.mrb[0].mxu0 %v4805
      %v5493 = vpop.f32.mrb[0].mxu0
      %v5494 = vadd.f32 %v5117, %v5493
      %v5495 = vpop.f32.mrb[0].mxu0
      %v5496 = vpop.f32.mrb[0].mxu0
      %v5497 = vadd.f32 %v5120, %v5496
      %v5498 = vpop.f32.mrb[0].mxu0
      %5499 = vmatprep.mubr.bf16.mxu0 0
      %5500 = vmatmul.mubr.bf16.gmra.mrb[0].mxu0 %v4808
      %v5501 = vpop.f32.mrb[0].mxu0
      %v5502 = vadd.f32 %v5125, %v5501
      %v5503 = vpop.f32.mrb[0].mxu0
      %v5504 = vpop.f32.mrb[0].mxu0
      %v5505 = vadd.f32 %v5128, %v5504
      %v5506 = vpop.f32.mrb[0].mxu0
      %5507 = vmatprep.mubr.bf16.mxu0 0
      %5508 = vmatmul.mubr.bf16.gmra.mrb[0].mxu0 %v4811
      %v5509 = vpop.f32.mrb[0].mxu0
      %v5510 = vadd.f32 %v5133, %v5509
      %v5511 = vpop.f32.mrb[0].mxu0
      %v5512 = vpop.f32.mrb[0].mxu0
      %v5513 = vadd.f32 %v5136, %v5512
      %v5514 = vpop.f32.mrb[0].mxu0
      %5515 = vmatprep.mubr.bf16.mxu0 0
      %5516 = vmatmul.mubr.bf16.gmra.mrb[0].mxu0 %v4814
      %v5517 = vpop.f32.mrb[0].mxu0
      %v5518 = vadd.f32 %v5141, %v5517
      %v5519 = vpop.f32.mrb[0].mxu0
      %v5520 = vpop.f32.mrb[0].mxu0
      %v5521 = vadd.f32 %v5144, %v5520
      %v5522 = vpop.f32.mrb[0].mxu0
      %5523 = vmatprep.mubr.bf16.mxu0 0
      %5524 = vmatmul.mubr.bf16.gmra.mrb[0].mxu0 %v4817
      %v5525 = vpop.f32.mrb[0].mxu0
      %v5526 = vadd.f32 %v5149, %v5525
      %v5527 = vpop.f32.mrb[0].mxu0
      %v5528 = vpop.f32.mrb[0].mxu0
      %v5529 = vadd.f32 %v5152, %v5528
      %v5530 = vpop.f32.mrb[0].mxu0
      %5531 = vmatprep.mubr.bf16.mxu0 0
      %5532 = vmatmul.mubr.bf16.gmra.mrb[0].mxu0 %v4820
      %v5533 = vpop.f32.mrb[0].mxu0
      %v5534 = vadd.f32 %v5157, %v5533
      %v5535 = vpop.f32.mrb[0].mxu0
      %v5536 = vpop.f32.mrb[0].mxu0
      %v5537 = vadd.f32 %v5160, %v5536
      %v5538 = vpop.f32.mrb[0].mxu0
      %5539 = vmatprep.mubr.bf16.mxu0 0
      %5540 = vmatmul.mubr.bf16.gmra.mrb[0].mxu0 %v4823
      %v5541 = vpop.f32.mrb[0].mxu0
      %v5542 = vadd.f32 %v5165, %v5541
      %v5543 = vpop.f32.mrb[0].mxu0
      %v5544 = vpop.f32.mrb[0].mxu0
      %v5545 = vadd.f32 %v5168, %v5544
      %v5546 = vpop.f32.mrb[0].mxu0
      %5547 = vmatprep.mubr.bf16.mxu0 0
      %5548 = vmatmul.mubr.bf16.gmra.mrb[0].mxu0 %v4826
      %v5549 = vpop.f32.mrb[0].mxu0
      %v5550 = vadd.f32 %v5173, %v5549
      %v5551 = vpop.f32.mrb[0].mxu0
      %v5552 = vpop.f32.mrb[0].mxu0
      %v5553 = vadd.f32 %v5176, %v5552
      %v5554 = vpop.f32.mrb[0].mxu0
      %5555 = vmatprep.mubr.bf16.mxu0 0
      %5556 = vmatmul.mubr.bf16.gmra.mrb[0].mxu0 %v4829
      %v5557 = vpop.f32.mrb[0].mxu0
      %v5558 = vadd.f32 %v5181, %v5557
      %v5559 = vpop.f32.mrb[0].mxu0
      %v5560 = vpop.f32.mrb[0].mxu0
      %v5561 = vadd.f32 %v5184, %v5560
      %v5562 = vpop.f32.mrb[0].mxu0
      %5563 = vmatprep.mubr.bf16.mxu0 0
      %5564 = vmatmul.mubr.bf16.gmra.mrb[0].mxu0 %v4832
      %v5565 = vpop.f32.mrb[0].mxu0
      %v5566 = vadd.f32 %v5189, %v5565
      %v5567 = vpop.f32.mrb[0].mxu0
      %v5568 = vpop.f32.mrb[0].mxu0
      %v5569 = vadd.f32 %v5192, %v5568
      %v5570 = vpop.f32.mrb[0].mxu0
      %5571 = vmatprep.mubr.bf16.mxu0 0
      %5572 = vmatmul.mubr.bf16.gmra.mrb[0].mxu0 %v4835
      %v5573 = vpop.f32.mrb[0].mxu0
      %v5574 = vadd.f32 %v5197, %v5573
      %v5575 = vpop.f32.mrb[0].mxu0
      %v5576 = vpop.f32.mrb[0].mxu0
      %v5577 = vadd.f32 %v5200, %v5576
      %v5578 = vpop.f32.mrb[0].mxu0
      %5579 = vmatprep.mubr.bf16.mxu0 0
      %5580 = vmatmul.mubr.bf16.gmra.mrb[0].mxu0 %v4838
      %v5581 = vpop.f32.mrb[0].mxu0
      %v5582 = vadd.f32 %v5205, %v5581
      %v5583 = vpop.f32.mrb[0].mxu0
      %v5584 = vpop.f32.mrb[0].mxu0
      %v5585 = vadd.f32 %v5208, %v5584
      %v5586 = vpop.f32.mrb[0].mxu0
      %5587 = vmatprep.mubr.bf16.mxu0 0
      %5588 = vmatmul.mubr.bf16.gmra.mrb[0].mxu0 %v4841
      %v5589 = vpop.f32.mrb[0].mxu0
      %v5590 = vadd.f32 %v5213, %v5589
      %v5591 = vpop.f32.mrb[0].mxu0
      %v5592 = vpop.f32.mrb[0].mxu0
      %v5593 = vadd.f32 %v5216, %v5592
      %v5594 = vpop.f32.mrb[0].mxu0
      %5595 = vmatprep.mubr.bf16.mxu0 0
      %5596 = vmatmul.mubr.bf16.gmra.mrb[0].mxu0 %v4844
      %v5597 = vpop.f32.mrb[0].mxu0
      %v5598 = vadd.f32 %v5221, %v5597
      %v5599 = vpop.f32.mrb[0].mxu0
      %v5600 = vpop.f32.mrb[0].mxu0
      %v5601 = vadd.f32 %v5224, %v5600
      %v5602 = vpop.f32.mrb[0].mxu0
      %5603 = vdwg.mxu0
      %vm5604 = vcmask 400384
      %5605 = vst.msk [vmem:[%s290] sm:$0xff] %vm5604, %v5262
      %5606 = vst.msk [vmem:[%s290 + $0x8] sm:$0xff] %vm5604, %v5265
      %5607 = vst.msk [vmem:[%s290 + $0x10] sm:$0xff] %vm5604, %v5270
      %5608 = vst.msk [vmem:[%s290 + $0x18] sm:$0xff] %vm5604, %v5273
      %5609 = vst.msk [vmem:[%s290 + $0x20] sm:$0xff] %vm5604, %v5278
      %5610 = vst.msk [vmem:[%s290 + $0x28] sm:$0xff] %vm5604, %v5281
      %5611 = vst.msk [vmem:[%s290 + $0x30] sm:$0xff] %vm5604, %v5286
      %5612 = vst.msk [vmem:[%s290 + $0x38] sm:$0xff] %vm5604, %v5289
      %5613 = vst.msk [vmem:[%s290 + $0x40] sm:$0xff] %vm5604, %v5294
      %5614 = vst.msk [vmem:[%s290 + $0x48] sm:$0xff] %vm5604, %v5297
      %5615 = vst.msk [vmem:[%s290 + $0x50] sm:$0xff] %vm5604, %v5302
      %5616 = vst.msk [vmem:[%s290 + $0x58] sm:$0xff] %vm5604, %v5305
      %5617 = vst.msk [vmem:[%s290 + $0x60] sm:$0xff] %vm5604, %v5310
      %5618 = vst.msk [vmem:[%s290 + $0x68] sm:$0xff] %vm5604, %v5313
      %5619 = vst.msk [vmem:[%s290 + $0x70] sm:$0xff] %vm5604, %v5318
      %5620 = vst.msk [vmem:[%s290 + $0x78] sm:$0xff] %vm5604, %v5321
      %5621 = vst.msk [vmem:[%s290 + $0x80] sm:$0xff] %vm5604, %v5326
      %5622 = vst.msk [vmem:[%s290 + $0x88] sm:$0xff] %vm5604, %v5329
      %5623 = vst.msk [vmem:[%s290 + $0x90] sm:$0xff] %vm5604, %v5334
      %5624 = vst.msk [vmem:[%s290 + $0x98] sm:$0xff] %vm5604, %v5337
      %5625 = vst.msk [vmem:[%s290 + $0xa0] sm:$0xff] %vm5604, %v5342
      %5626 = vst.msk [vmem:[%s290 + $0xa8] sm:$0xff] %vm5604, %v5345
      %5627 = vst.msk [vmem:[%s290 + $0xb0] sm:$0xff] %vm5604, %v5350
      %5628 = vst.msk [vmem:[%s290 + $0xb8] sm:$0xff] %vm5604, %v5353
      %5629 = vst.msk [vmem:[%s290 + $0xc0] sm:$0xff] %vm5604, %v5358
      %5630 = vst.msk [vmem:[%s290 + $0xc8] sm:$0xff] %vm5604, %v5361
      %5631 = vst.msk [vmem:[%s290 + $0xd0] sm:$0xff] %vm5604, %v5366
      %5632 = vst.msk [vmem:[%s290 + $0xd8] sm:$0xff] %vm5604, %v5369
      %5633 = vst.msk [vmem:[%s290 + $0xe0] sm:$0xff] %vm5604, %v5374
      %5634 = vst.msk [vmem:[%s290 + $0xe8] sm:$0xff] %vm5604, %v5377
      %5635 = vst.msk [vmem:[%s290 + $0xf0] sm:$0xff] %vm5604, %v5382
      %5636 = vst.msk [vmem:[%s290 + $0xf8] sm:$0xff] %vm5604, %v5385
      %5637 = vst.msk [vmem:[%s290 + $0x100] sm:$0xff] %vm5604, %v5390
      %5638 = vst.msk [vmem:[%s290 + $0x108] sm:$0xff] %vm5604, %v5393
      %5639 = vst.msk [vmem:[%s290 + $0x110] sm:$0xff] %vm5604, %v5398
      %5640 = vst.msk [vmem:[%s290 + $0x118] sm:$0xff] %vm5604, %v5401
      %5641 = vst.msk [vmem:[%s290 + $0x120] sm:$0xff] %vm5604, %v5406
      %5642 = vst.msk [vmem:[%s290 + $0x128] sm:$0xff] %vm5604, %v5409
      %5643 = vst.msk [vmem:[%s290 + $0x130] sm:$0xff] %vm5604, %v5414
      %5644 = vst.msk [vmem:[%s290 + $0x138] sm:$0xff] %vm5604, %v5417
      %5645 = vst.msk [vmem:[%s290 + $0x140] sm:$0xff] %vm5604, %v5422
      %5646 = vst.msk [vmem:[%s290 + $0x148] sm:$0xff] %vm5604, %v5425
      %5647 = vst.msk [vmem:[%s290 + $0x150] sm:$0xff] %vm5604, %v5430
      %5648 = vst.msk [vmem:[%s290 + $0x158] sm:$0xff] %vm5604, %v5433
      %5649 = vst.msk [vmem:[%s290 + $0x160] sm:$0xff] %vm5604, %v5438
      %5650 = vst.msk [vmem:[%s290 + $0x168] sm:$0xff] %vm5604, %v5441
      %5651 = vst.msk [vmem:[%s290 + $0x170] sm:$0xff] %vm5604, %v5446
      %5652 = vst.msk [vmem:[%s290 + $0x178] sm:$0xff] %vm5604, %v5449
      %5653 = vst.msk [vmem:[%s290 + $0x180] sm:$0xff] %vm5604, %v5454
      %5654 = vst.msk [vmem:[%s290 + $0x188] sm:$0xff] %vm5604, %v5457
      %5655 = vst.msk [vmem:[%s290 + $0x190] sm:$0xff] %vm5604, %v5462
      %5656 = vst.msk [vmem:[%s290 + $0x198] sm:$0xff] %vm5604, %v5465
      %5657 = vst.msk [vmem:[%s290 + $0x1a0] sm:$0xff] %vm5604, %v5470
      %5658 = vst.msk [vmem:[%s290 + $0x1a8] sm:$0xff] %vm5604, %v5473
      %5659 = vst.msk [vmem:[%s290 + $0x1b0] sm:$0xff] %vm5604, %v5478
      %5660 = vst.msk [vmem:[%s290 + $0x1b8] sm:$0xff] %vm5604, %v5481
      %5661 = vst.msk [vmem:[%s290 + $0x1c0] sm:$0xff] %vm5604, %v5486
      %5662 = vst.msk [vmem:[%s290 + $0x1c8] sm:$0xff] %vm5604, %v5489
      %5663 = vst.msk [vmem:[%s290 + $0x1d0] sm:$0xff] %vm5604, %v5494
      %5664 = vst.msk [vmem:[%s290 + $0x1d8] sm:$0xff] %vm5604, %v5497
      %5665 = vst.msk [vmem:[%s290 + $0x1e0] sm:$0xff] %vm5604, %v5502
      %5666 = vst.msk [vmem:[%s290 + $0x1e8] sm:$0xff] %vm5604, %v5505
      %5667 = vst.msk [vmem:[%s290 + $0x1f0] sm:$0xff] %vm5604, %v5510
      %5668 = vst.msk [vmem:[%s290 + $0x1f8] sm:$0xff] %vm5604, %v5513
      %5669 = vst.msk [vmem:[%s290 + $0x200] sm:$0xff] %vm5604, %v5518
      %5670 = vst.msk [vmem:[%s290 + $0x208] sm:$0xff] %vm5604, %v5521
      %5671 = vst.msk [vmem:[%s290 + $0x210] sm:$0xff] %vm5604, %v5526
      %5672 = vst.msk [vmem:[%s290 + $0x218] sm:$0xff] %vm5604, %v5529
      %5673 = vst.msk [vmem:[%s290 + $0x220] sm:$0xff] %vm5604, %v5534
      %5674 = vst.msk [vmem:[%s290 + $0x228] sm:$0xff] %vm5604, %v5537
      %5675 = vst.msk [vmem:[%s290 + $0x230] sm:$0xff] %vm5604, %v5542
      %5676 = vst.msk [vmem:[%s290 + $0x238] sm:$0xff] %vm5604, %v5545
      %5677 = vst.msk [vmem:[%s290 + $0x240] sm:$0xff] %vm5604, %v5550
      %5678 = vst.msk [vmem:[%s290 + $0x248] sm:$0xff] %vm5604, %v5553
      %5679 = vst.msk [vmem:[%s290 + $0x250] sm:$0xff] %vm5604, %v5558
      %5680 = vst.msk [vmem:[%s290 + $0x258] sm:$0xff] %vm5604, %v5561
      %5681 = vst.msk [vmem:[%s290 + $0x260] sm:$0xff] %vm5604, %v5566
      %5682 = vst.msk [vmem:[%s290 + $0x268] sm:$0xff] %vm5604, %v5569
      %5683 = vst.msk [vmem:[%s290 + $0x270] sm:$0xff] %vm5604, %v5574
      %5684 = vst.msk [vmem:[%s290 + $0x278] sm:$0xff] %vm5604, %v5577
      %5685 = vst.msk [vmem:[%s290 + $0x280] sm:$0xff] %vm5604, %v5582
      %5686 = vst.msk [vmem:[%s290 + $0x288] sm:$0xff] %vm5604, %v5585
      %5687 = vst.msk [vmem:[%s290 + $0x290] sm:$0xff] %vm5604, %v5590
      %5688 = vst.msk [vmem:[%s290 + $0x298] sm:$0xff] %vm5604, %v5593
      %5689 = vst.msk [vmem:[%s290 + $0x2a0] sm:$0xff] %vm5604, %v5598
      %5690 = vst.msk [vmem:[%s290 + $0x2a8] sm:$0xff] %vm5604, %v5601
      %s5691 = smul.u32 %s21, 3
      %s5692 = sadd.s32 %s5691, %s22
      %s5693 = smul.u32 86, %s5692
      %p5694 = scmp.lt.s32.totalorder %s5693, 257
      %s5695 = scalar_select %p5694, %s5693, 257
      %s5696 = smul.addr %s5695, 8
      %s5697 = scalar_lea.vmem %s6, %s5696
      // Predicated region
      $region49: #{forward.1} parent=43 // pred_check
        %p5698 = pneg %p186
      $region50: #{forward.1} parent=43 // pred_check_branch
        %5700 = sbr.rel (%p5698) target = $region52
      $region51: #{forward.1} parent=43 // pred_region
        %s5701 = smul.u32 %s21, 3
        %s5702 = sadd.s32 %s5701, %s22
        %s5703 = smul.u32 86, %s5702
      $region52: #{forward.1} parent=43 // pred_fallthru
        _
    $region44: #{forward.1} parent=5 // pred_fallthru
      _
    %p5704 = scmp.le.s32.totalorder 2, %s12
    // Predicated region
    $region53: #{forward.1} parent=5 // pred_check
      %p5705 = pneg %p5704
    $region54: #{forward.1} parent=5 // pred_check_branch
      %5707 = sbr.rel (%p5705) target = $region56
    $region55: #{forward.1} parent=5 // pred_region
      %s5708 = ssub.s32 %s12, 2
      // Predicated region
      $region57: #{forward.1} parent=55 // pred_check
        %p5709 = pneg %p192
      $region58: #{forward.1} parent=55 // pred_check_branch
        %5711 = sbr.rel (%p5709) target = $region60
      $region59: #{forward.1} parent=55 // pred_region
        %s5712 = smul.u32 %s23, 3
        %s5713 = sadd.s32 %s5712, %s24
        %s5714 = smul.u32 86, %s5713
        %p5715 = scmp.lt.s32.totalorder %s5714, 257
        %s5716 = scalar_select %p5715, %s5714, 257
        %s5717 = smul.addr %s5716, 8
        %s5718 = scalar_lea.vmem %s6, %s5717
      $region60: #{forward.1} parent=55 // pred_fallthru
        _
    $region56: #{forward.1} parent=5 // pred_fallthru
      _
  $region6: #{forward.1} parent=0 // loop_footer
    %s16 = sadd.s32 1, %s12
  $region7: #{forward.1} parent=0 // loop_footer_branch
    %11 = sbr.rel target = $region3
  $region8: #{forward.1} parent=0 // loop_exit
    _

</llo_original>
